<compile_context>
chip_gen: v7x
topology: tpu7x:2x2x1
jax: 0.10.0
libtpu: 0.0.40
codegen_flags: <defaults>
</compile_context>

<pallas_src>
import math
import jax
import jax.numpy as jnp
from jax.experimental import pallas as pl
from jax.experimental.pallas import tpu as pltpu

# ----------------------------- hyper-parameters ------------------------------
B = 2                       # batch
S = 8                       # sequence length
T = B * S                   # folded token axis
D_MODEL = 32                # d_model
N_LAYERS = 2                # n_transformer_layers
N_Q = 4                     # query heads
N_KV = 2                    # key/value heads (GQA)
GROUP = N_Q // N_KV
HEAD_DIM = D_MODEL // N_Q
HALF = HEAD_DIM // 2
QD = N_Q * HEAD_DIM         # 32
KD = N_KV * HEAD_DIM        # 16
PROJ = QD + 2 * KD + QD + KD   # fused projection width: [q | k | v | rot(q) | rot(k)] = 112
FF_DIM = D_MODEL * 3        # 96
FEATURE_VOCABS = {"pitch_type": 11, "balls": 7, "strikes": 5}
PITCHER_VOCAB = 13
LN_EPS = 1e-5
NEG = -1e30                 # additive-mask value (exp underflows to exactly 0.0)

# packed token slab columns: [x | cos_q | sin_q | cos_k | sin_k] -> 128 lanes (lane-dense)
TOK_W = D_MODEL + QD + QD + KD + KD
assert TOK_W == 128
# packed per-layer vector params: one (8, 128) vreg per layer
VEC_ROWS = 8
VEC_W = 128


def _gelu(x):
    # TODO(synk): PyTorch nn.GELU() defaults to the exact erf form; the tanh
    # approximation is used here for guaranteed Mosaic lowering.
    return jax.nn.gelu(x, approximate=True)


def _layernorm(x, gamma, beta):
    mu = jnp.mean(x, axis=-1, keepdims=True)
    var = jnp.mean(jnp.square(x - mu), axis=-1, keepdims=True)
    return (x - mu) * jax.lax.rsqrt(var + LN_EPS) * gamma + beta


# --------------------------------- kernel ------------------------------------
def darvish_kernel(bias_ref, poolw_ref, tok_ref,
                   wqkv_ref, wo_ref, w1_ref, w2_ref, vec_ref,
                   out_ref):
    f32 = jnp.float32
    tok = tok_ref[...]                          # (T, 128) lane-dense packed slab
    x    = tok[:, 0:D_MODEL]
    cosq = tok[:, D_MODEL:D_MODEL + QD]
    sinq = tok[:, D_MODEL + QD:D_MODEL + 2 * QD]
    cosk = tok[:, D_MODEL + 2 * QD:D_MODEL + 2 * QD + KD]
    sink = tok[:, D_MODEL + 2 * QD + KD:TOK_W]
    bias = bias_ref[...]                        # (GROUP*T, T): block-diag batch + key padding

    h = _gelu(x)                                # summed-embedding input activation

    for l in range(N_LAYERS):                   # static unroll over layers
        vec = vec_ref[l]                        # (8, 128): all 1-D params for this layer
        bqkv = vec[0:1, 0:PROJ]
        bo   = vec[1:2, 0:D_MODEL]
        ln1g = vec[2:3, 0:D_MODEL]
        ln1b = vec[3:4, 0:D_MODEL]
        ln2g = vec[4:5, 0:D_MODEL]
        ln2b = vec[5:6, 0:D_MODEL]
        b1   = vec[6:7, 0:FF_DIM]
        b2   = vec[7:8, 0:D_MODEL]

        # ---- fused QKV (+ pre-rotated q/k) projection, pre-norm ----
        xn = _layernorm(h, ln1g, ln1b)
        proj = jnp.dot(xn, wqkv_ref[l], preferred_element_type=f32) + bqkv
        q  = proj[:, 0:QD]                       # already scaled by 1/sqrt(head_dim)
        k  = proj[:, QD:QD + KD]
        v  = proj[:, QD + KD:QD + 2 * KD]
        qr = proj[:, QD + 2 * KD:2 * QD + 2 * KD]   # rotate_half(q), via weight-folded R
        kr = proj[:, 2 * QD + 2 * KD:PROJ]          # rotate_half(k)
        # rotate-half RoPE: only two full-width multiply-adds remain here (pure VPU)
        q = q * cosq + qr * sinq                 # (T, QD)
        k = k * cosk + kr * sink                 # (T, KD)

        # ---- grouped-query attention: one score/PV matmul per KV head ----
        head_outs = []
        for g in range(N_KV):                    # each KV group serves GROUP query heads
            qg = jnp.concatenate(
                [q[:, (GROUP * g + j) * HEAD_DIM:(GROUP * g + j + 1) * HEAD_DIM]
                 for j in range(GROUP)], axis=0)                  # (GROUP*T, hd)
            kg = k[:, g * HEAD_DIM:(g + 1) * HEAD_DIM]            # (T, hd)
            vg = v[:, g * HEAD_DIM:(g + 1) * HEAD_DIM]            # (T, hd)
            s = jax.lax.dot_general(qg, kg, (((1,), (1,)), ((), ())),
                                    preferred_element_type=f32)   # (GROUP*T, T)
            s = s + bias
            s = s - jnp.max(s, axis=-1, keepdims=True)
            p = jnp.exp(s)
            p = p * pl.reciprocal(jnp.sum(p, axis=-1, keepdims=True), approx=True)
            og = jnp.dot(p, vg, preferred_element_type=f32)       # (GROUP*T, hd)
            for j in range(GROUP):
                head_outs.append(og[j * T:(j + 1) * T])           # (T, hd), head 2g+j
        attn = jnp.concatenate(head_outs, axis=-1)                # (T, QD), head-major
        h = h + jnp.dot(attn, wo_ref[l], preferred_element_type=f32) + bo

        # ---- feed-forward ----
        hn = _layernorm(h, ln2g, ln2b)
        ff = _gelu(jnp.dot(hn, w1_ref[l], preferred_element_type=f32) + b1)
        h = h + jnp.dot(ff, w2_ref[l], preferred_element_type=f32) + b2

    # ---- masked mean pool per batch as one small matmul -> (B, D_MODEL) output ----
    out_ref[...] = jnp.dot(poolw_ref[...], h, preferred_element_type=f32)


# --------------------------------- wrapper ------------------------------------
WEIGHT_ORDER = ["wqkv", "wo", "w1", "w2", "vecs"]


def _full_spec(shape):
    nd = len(shape)
    return pl.BlockSpec(shape, lambda i, _nd=nd: (0,) * _nd)


@jax.jit
def darvish_forward(feat_tokens, pitcher_ids, mask, params):
    # --- embedding lookups (glue, plain JAX gathers) ---
    xemb = jnp.zeros((B, S, D_MODEL), jnp.float32)
    for name in FEATURE_VOCABS:
        xemb = xemb + jnp.take(params["emb_" + name], feat_tokens[name], axis=0)
    xflat = xemb.reshape(T, D_MODEL)
    pitch = jnp.take(params["pitcher_emb"], pitcher_ids, axis=0)          # (B, D)

    # additive attention bias over the folded token axis:
    # key must be a valid (non-padded) token of the SAME batch segment.
    valid = jnp.logical_not(jnp.isinf(mask)).reshape(T)                   # (T,)
    batch_id = jnp.repeat(jnp.arange(B, dtype=jnp.int32), S)              # (T,)
    same = batch_id[:, None] == batch_id[None, :]
    bias2d = jnp.where(same & valid[None, :], 0.0, NEG).astype(jnp.float32)
    bias = jnp.tile(bias2d, (GROUP, 1))                                   # (GROUP*T, T)

    # masked-mean pooling weights: poolw[b, t] = valid(t) * [batch(t)==b] / count_b
    validf = valid.astype(jnp.float32)
    sel = (batch_id[None, :] == jnp.arange(B, dtype=jnp.int32)[:, None]).astype(jnp.float32)
    selw = sel * validf[None, :]
    poolw = selw / jnp.sum(selw, axis=-1, keepdims=True)                  # (B, T)

    # rotary tables (rotate-half convention), tiled over heads and the folded batch
    pos = jnp.arange(S, dtype=jnp.float32)[:, None]
    inv_freq = 1.0 / (10000.0 ** (jnp.arange(0, HEAD_DIM, 2, dtype=jnp.float32) / HEAD_DIM))
    ang = pos * inv_freq[None, :]                                         # (S, hd/2)
    cos_h = jnp.concatenate([jnp.cos(ang), jnp.cos(ang)], axis=-1)        # (S, hd)
    sin_h = jnp.concatenate([jnp.sin(ang), jnp.sin(ang)], axis=-1)
    cosq = jnp.tile(cos_h, (B, N_Q))                                      # (T, QD)
    sinq = jnp.tile(sin_h, (B, N_Q))
    cosk = jnp.tile(cos_h, (B, N_KV))                                     # (T, KD)
    sink = jnp.tile(sin_h, (B, N_KV))

    # lane-dense (T, 128) packed token slab: [x | cosq | sinq | cosk | sink]
    tok = jnp.concatenate([xflat, cosq, sinq, cosk, sink], axis=-1).astype(jnp.float32)

    operands = [bias, poolw, tok] + [params[n] for n in WEIGHT_ORDER]
    in_specs = [_full_spec(op.shape) for op in operands]

    pooled = pl.pallas_call(
        darvish_kernel,
        out_shape=jax.ShapeDtypeStruct((B, D_MODEL), jnp.float32),
        grid_spec=pltpu.PrefetchScalarGridSpec(
            num_scalar_prefetch=0,
            grid=(1,),                                    # single step: whole problem in VMEM
            in_specs=in_specs,
            out_specs=pl.BlockSpec((B, D_MODEL), lambda i: (0, 0)),
        ),
        compiler_params=pltpu.CompilerParams(dimension_semantics=("arbitrary",)),
    )(*operands)

    # finish the (tiny) pitcher-embedding dot product outside the kernel
    return jnp.sum(pooled * pitch, axis=-1)                               # (B,)


# ------------------------------ parameter init --------------------------------
def init_params(key):
    mats = {
        "wq": (N_LAYERS, D_MODEL, QD),
        "wk": (N_LAYERS, D_MODEL, KD),
        "wv": (N_LAYERS, D_MODEL, KD),
        "wo": (N_LAYERS, QD, D_MODEL),
        "w1": (N_LAYERS, D_MODEL, FF_DIM),
        "w2": (N_LAYERS, FF_DIM, D_MODEL),
        "bq": (N_LAYERS, 1, QD),
        "bk": (N_LAYERS, 1, KD),
        "bv": (N_LAYERS, 1, KD),
        "bo": (N_LAYERS, 1, D_MODEL),
        "b1": (N_LAYERS, 1, FF_DIM),
        "b2": (N_LAYERS, 1, D_MODEL),
    }
    keys = jax.random.split(key, len(mats) + len(FEATURE_VOCABS) + 1)
    raw = {}
    ki = 0
    for name, shape in mats.items():
        raw[name] = 0.02 * jax.random.normal(keys[ki], shape, jnp.float32)
        ki += 1

    params = {}
    # fold the 1/sqrt(head_dim) attention scale into the Q projection (one-time)
    scale = 1.0 / math.sqrt(HEAD_DIM)
    wq = raw["wq"] * scale
    bq = raw["bq"] * scale
    # rotate-half as a right-multiply: rot(x) = x @ R, R = blockdiag_heads([[0, I],[-I, 0]])
    r_head = jnp.block([[jnp.zeros((HALF, HALF)), jnp.eye(HALF)],
                        [-jnp.eye(HALF), jnp.zeros((HALF, HALF))]]).astype(jnp.float32)
    rq = jnp.kron(jnp.eye(N_Q, dtype=jnp.float32), r_head)      # (QD, QD)
    rk = jnp.kron(jnp.eye(N_KV, dtype=jnp.float32), r_head)     # (KD, KD)
    # fused projection columns: [q | k | v | rot(q) | rot(k)]
    params["wqkv"] = jnp.concatenate(
        [wq, raw["wk"], raw["wv"], wq @ rq, raw["wk"] @ rk], axis=-1)     # (L, D, 112)
    bqkv = jnp.concatenate(
        [bq, raw["bk"], raw["bv"], bq @ rq, raw["bk"] @ rk], axis=-1)     # (L, 1, 112)
    for name in ["wo", "w1", "w2"]:
        params[name] = raw[name]

    # pack all per-layer 1-D parameters into one (L, 8, 128) vreg-aligned slab
    ln1g = jnp.ones((N_LAYERS, 1, D_MODEL), jnp.float32)
    ln1b = jnp.zeros((N_LAYERS, 1, D_MODEL), jnp.float32)
    ln2g = jnp.ones((N_LAYERS, 1, D_MODEL), jnp.float32)
    ln2b = jnp.zeros((N_LAYERS, 1, D_MODEL), jnp.float32)
    vec = jnp.zeros((N_LAYERS, VEC_ROWS, VEC_W), jnp.float32)
    segs = [bqkv, raw["bo"], ln1g, ln1b, ln2g, ln2b, raw["b1"], raw["b2"]]
    for r, seg in enumerate(segs):
        vec = vec.at[:, r:r + 1, 0:seg.shape[-1]].set(seg)
    params["vecs"] = vec

    for name, vocab in FEATURE_VOCABS.items():
        params["emb_" + name] = 0.02 * jax.random.normal(keys[ki], (vocab, D_MODEL), jnp.float32)
        ki += 1
    params["pitcher_emb"] = 0.02 * jax.random.normal(keys[ki], (PITCHER_VOCAB, D_MODEL), jnp.float32)
    return params


# ----------------------------------- main --------------------------------------
if __name__ == "__main__":
    key = jax.random.PRNGKey(0)
    pkey, dkey = jax.random.split(key)
    params = init_params(pkey)

    ks = jax.random.split(dkey, len(FEATURE_VOCABS) + 1)
    feat_tokens = {}
    for i, (name, vocab) in enumerate(FEATURE_VOCABS.items()):
        feat_tokens[name] = jax.random.randint(ks[i], (B, S), 0, vocab)
    pitcher_ids = jax.random.randint(ks[-1], (B,), 0, PITCHER_VOCAB)

    # padding mask: 0.0 for valid tokens, -inf for padding (as the module expects)
    lengths = jnp.array([6, 8], dtype=jnp.int32)
    positions = jnp.arange(S)[None, :]
    mask = jnp.where(positions < lengths[:, None], 0.0, -jnp.inf).astype(jnp.float32)

    out = darvish_forward(feat_tokens, pitcher_ids, mask, params)
    jax.block_until_ready(out)
    assert out.shape == (B,) and bool(jnp.all(jnp.isfinite(out)))
    print("KERNEL_OK")
</pallas_src>

<mosaic_0001>
module attributes {stable_mosaic.version = 11 : i64} {
  func.func @darvish_kernel(%arg0: i32, %arg1: memref<32x16xf32, #tpu.memory_space<vmem>>, %arg2: memref<2x16xf32, #tpu.memory_space<vmem>>, %arg3: memref<16x128xf32, #tpu.memory_space<vmem>>, %arg4: memref<2x32x112xf32, #tpu.memory_space<vmem>>, %arg5: memref<2x32x32xf32, #tpu.memory_space<vmem>>, %arg6: memref<2x32x96xf32, #tpu.memory_space<vmem>>, %arg7: memref<2x96x32xf32, #tpu.memory_space<vmem>>, %arg8: memref<2x8x128xf32, #tpu.memory_space<vmem>>, %arg9: memref<2x32xf32, #tpu.memory_space<vmem>>) attributes {dimension_semantics = [#tpu.dimension_semantics<arbitrary>], iteration_bounds = array<i64: 1>, scalar_prefetch = 0 : i64, scratch_operands = 0 : i64, tpu.core_type = #tpu.core_type<tc>, window_params = [{pipeline_mode = #tpu.pipeline_mode<synchronous>, transform_indices = @transform_0, window_bounds = array<i64: 32, 16>}, {pipeline_mode = #tpu.pipeline_mode<synchronous>, transform_indices = @transform_1, window_bounds = array<i64: 2, 16>}, {pipeline_mode = #tpu.pipeline_mode<synchronous>, transform_indices = @transform_2, window_bounds = array<i64: 16, 128>}, {pipeline_mode = #tpu.pipeline_mode<synchronous>, transform_indices = @transform_3, window_bounds = array<i64: 2, 32, 112>}, {pipeline_mode = #tpu.pipeline_mode<synchronous>, transform_indices = @transform_4, window_bounds = array<i64: 2, 32, 32>}, {pipeline_mode = #tpu.pipeline_mode<synchronous>, transform_indices = @transform_5, window_bounds = array<i64: 2, 32, 96>}, {pipeline_mode = #tpu.pipeline_mode<synchronous>, transform_indices = @transform_6, window_bounds = array<i64: 2, 96, 32>}, {pipeline_mode = #tpu.pipeline_mode<synchronous>, transform_indices = @transform_7, window_bounds = array<i64: 2, 8, 128>}, {pipeline_mode = #tpu.pipeline_mode<synchronous>, transform_indices = @transform_8, window_bounds = array<i64: 2, 32>}]} {
    %c0 = arith.constant 0 : index
    %c0_0 = arith.constant 0 : index
    %0 = vector.load %arg3[%c0, %c0_0] : memref<16x128xf32, #tpu.memory_space<vmem>>, vector<16x128xf32>
    %1 = vector.extract_strided_slice %0 {offsets = [0, 0], sizes = [16, 32], strides = [1, 1]} : vector<16x128xf32> to vector<16x32xf32>
    %2 = vector.extract_strided_slice %0 {offsets = [0, 32], sizes = [16, 32], strides = [1, 1]} : vector<16x128xf32> to vector<16x32xf32>
    %3 = vector.extract_strided_slice %0 {offsets = [0, 64], sizes = [16, 32], strides = [1, 1]} : vector<16x128xf32> to vector<16x32xf32>
    %4 = vector.extract_strided_slice %0 {offsets = [0, 96], sizes = [16, 16], strides = [1, 1]} : vector<16x128xf32> to vector<16x16xf32>
    %5 = vector.extract_strided_slice %0 {offsets = [0, 112], sizes = [16, 16], strides = [1, 1]} : vector<16x128xf32> to vector<16x16xf32>
    %c0_1 = arith.constant 0 : index
    %c0_2 = arith.constant 0 : index
    %6 = vector.load %arg1[%c0_1, %c0_2] : memref<32x16xf32, #tpu.memory_space<vmem>>, vector<32x16xf32>
    %7 = arith.mulf %1, %1 : vector<16x32xf32>
    %8 = arith.mulf %1, %7 : vector<16x32xf32>
    %cst = arith.constant 4.471500e-02 : f32
    %9 = vector.broadcast %cst : f32 to vector<16x32xf32>
    %10 = arith.mulf %9, %8 : vector<16x32xf32>
    %11 = arith.addf %1, %10 : vector<16x32xf32>
    %cst_3 = arith.constant 0.797884583 : f32
    %12 = vector.broadcast %cst_3 : f32 to vector<16x32xf32>
    %13 = arith.mulf %12, %11 : vector<16x32xf32>
    %14 = math.tanh %13 : vector<16x32xf32>
    %cst_4 = arith.constant 1.000000e+00 : f32
    %15 = vector.broadcast %cst_4 : f32 to vector<16x32xf32>
    %16 = arith.addf %15, %14 : vector<16x32xf32>
    %cst_5 = arith.constant 5.000000e-01 : f32
    %17 = vector.broadcast %cst_5 : f32 to vector<16x32xf32>
    %18 = arith.mulf %17, %16 : vector<16x32xf32>
    %19 = arith.mulf %1, %18 : vector<16x32xf32>
    %c0_6 = arith.constant 0 : index
    %c0_7 = arith.constant 0 : index
    %c0_8 = arith.constant 0 : index
    %20 = vector.load %arg8[%c0_6, %c0_7, %c0_8] : memref<2x8x128xf32, #tpu.memory_space<vmem>>, vector<1x8x128xf32>
    %21 = vector.shape_cast %20 : vector<1x8x128xf32> to vector<8x128xf32>
    %22 = vector.extract_strided_slice %21 {offsets = [0, 0], sizes = [1, 112], strides = [1, 1]} : vector<8x128xf32> to vector<1x112xf32>
    %23 = vector.extract_strided_slice %21 {offsets = [1, 0], sizes = [1, 32], strides = [1, 1]} : vector<8x128xf32> to vector<1x32xf32>
    %24 = vector.extract_strided_slice %21 {offsets = [2, 0], sizes = [1, 32], strides = [1, 1]} : vector<8x128xf32> to vector<1x32xf32>
    %25 = vector.extract_strided_slice %21 {offsets = [3, 0], sizes = [1, 32], strides = [1, 1]} : vector<8x128xf32> to vector<1x32xf32>
    %26 = vector.extract_strided_slice %21 {offsets = [4, 0], sizes = [1, 32], strides = [1, 1]} : vector<8x128xf32> to vector<1x32xf32>
    %27 = vector.extract_strided_slice %21 {offsets = [5, 0], sizes = [1, 32], strides = [1, 1]} : vector<8x128xf32> to vector<1x32xf32>
    %28 = vector.extract_strided_slice %21 {offsets = [6, 0], sizes = [1, 96], strides = [1, 1]} : vector<8x128xf32> to vector<1x96xf32>
    %29 = vector.extract_strided_slice %21 {offsets = [7, 0], sizes = [1, 32], strides = [1, 1]} : vector<8x128xf32> to vector<1x32xf32>
    %cst_9 = arith.constant dense<0.000000e+00> : vector<16xf32>
    %30 = vector.multi_reduction <add>, %19, %cst_9 [1] : vector<16x32xf32> to vector<16xf32>
    %31 = vector.shape_cast %30 : vector<16xf32> to vector<16x1xf32>
    %cst_10 = arith.constant 3.200000e+01 : f32
    %32 = vector.broadcast %cst_10 : f32 to vector<16x1xf32>
    %33 = arith.divf %31, %32 : vector<16x1xf32>
    %34 = vector.broadcast %33 : vector<16x1xf32> to vector<16x32xf32>
    %35 = arith.subf %19, %34 : vector<16x32xf32>
    %36 = arith.mulf %35, %35 : vector<16x32xf32>
    %cst_11 = arith.constant dense<0.000000e+00> : vector<16xf32>
    %37 = vector.multi_reduction <add>, %36, %cst_11 [1] : vector<16x32xf32> to vector<16xf32>
    %38 = vector.shape_cast %37 : vector<16xf32> to vector<16x1xf32>
    %cst_12 = arith.constant 3.200000e+01 : f32
    %39 = vector.broadcast %cst_12 : f32 to vector<16x1xf32>
    %40 = arith.divf %38, %39 : vector<16x1xf32>
    %41 = vector.broadcast %33 : vector<16x1xf32> to vector<16x32xf32>
    %42 = arith.subf %19, %41 : vector<16x32xf32>
    %cst_13 = arith.constant 9.99999974E-6 : f32
    %43 = vector.broadcast %cst_13 : f32 to vector<16x1xf32>
    %44 = arith.addf %40, %43 : vector<16x1xf32>
    %45 = math.rsqrt %44 : vector<16x1xf32>
    %46 = vector.broadcast %45 : vector<16x1xf32> to vector<16x32xf32>
    %47 = arith.mulf %42, %46 : vector<16x32xf32>
    %48 = vector.broadcast %24 : vector<1x32xf32> to vector<16x32xf32>
    %49 = arith.mulf %47, %48 : vector<16x32xf32>
    %50 = vector.broadcast %25 : vector<1x32xf32> to vector<16x32xf32>
    %51 = arith.addf %49, %50 : vector<16x32xf32>
    %c0_14 = arith.constant 0 : index
    %c0_15 = arith.constant 0 : index
    %c0_16 = arith.constant 0 : index
    %52 = vector.load %arg4[%c0_14, %c0_15, %c0_16] : memref<2x32x112xf32, #tpu.memory_space<vmem>>, vector<1x32x112xf32>
    %53 = vector.shape_cast %52 : vector<1x32x112xf32> to vector<32x112xf32>
    %cst_17 = arith.constant dense<0.000000e+00> : vector<16x112xf32>
    %54 = tpu.matmul %51, %53, %cst_17 {dimension_numbers = #tpu.dot_dimension_numbers<[1], [0], [0], [1], [0, 0, 1, 1], [], []>} : vector<16x32xf32>, vector<32x112xf32>, vector<16x112xf32> -> vector<16x112xf32>
    %55 = vector.broadcast %22 : vector<1x112xf32> to vector<16x112xf32>
    %56 = arith.addf %54, %55 : vector<16x112xf32>
    %57 = vector.extract_strided_slice %56 {offsets = [0, 0], sizes = [16, 32], strides = [1, 1]} : vector<16x112xf32> to vector<16x32xf32>
    %58 = vector.extract_strided_slice %56 {offsets = [0, 32], sizes = [16, 16], strides = [1, 1]} : vector<16x112xf32> to vector<16x16xf32>
    %59 = vector.extract_strided_slice %56 {offsets = [0, 48], sizes = [16, 16], strides = [1, 1]} : vector<16x112xf32> to vector<16x16xf32>
    %60 = vector.extract_strided_slice %56 {offsets = [0, 64], sizes = [16, 32], strides = [1, 1]} : vector<16x112xf32> to vector<16x32xf32>
    %61 = vector.extract_strided_slice %56 {offsets = [0, 96], sizes = [16, 16], strides = [1, 1]} : vector<16x112xf32> to vector<16x16xf32>
    %62 = arith.mulf %57, %2 : vector<16x32xf32>
    %63 = arith.mulf %60, %3 : vector<16x32xf32>
    %64 = arith.addf %62, %63 : vector<16x32xf32>
    %65 = arith.mulf %58, %4 : vector<16x16xf32>
    %66 = arith.mulf %61, %5 : vector<16x16xf32>
    %67 = arith.addf %65, %66 : vector<16x16xf32>
    %68 = vector.extract_strided_slice %64 {offsets = [0, 0], sizes = [16, 8], strides = [1, 1]} : vector<16x32xf32> to vector<16x8xf32>
    %69 = vector.extract_strided_slice %64 {offsets = [0, 8], sizes = [16, 8], strides = [1, 1]} : vector<16x32xf32> to vector<16x8xf32>
    %70 = tpu.concatenate %68, %69 in 0 : vector<16x8xf32>, vector<16x8xf32> -> vector<32x8xf32>
    %71 = vector.extract_strided_slice %67 {offsets = [0, 0], sizes = [16, 8], strides = [1, 1]} : vector<16x16xf32> to vector<16x8xf32>
    %72 = vector.extract_strided_slice %59 {offsets = [0, 0], sizes = [16, 8], strides = [1, 1]} : vector<16x16xf32> to vector<16x8xf32>
    %cst_18 = arith.constant dense<0.000000e+00> : vector<32x16xf32>
    %73 = tpu.matmul %70, %71, %cst_18 {dimension_numbers = #tpu.dot_dimension_numbers<[1], [1], [0], [0], [0, 0, 1, 0], [], []>} : vector<32x8xf32>, vector<16x8xf32>, vector<32x16xf32> -> vector<32x16xf32>
    %74 = arith.addf %73, %6 : vector<32x16xf32>
    %cst_19 = arith.constant dense<0xFF800000> : vector<32xf32>
    %75 = vector.multi_reduction <maximumf>, %74, %cst_19 [1] : vector<32x16xf32> to vector<32xf32>
    %76 = vector.shape_cast %75 : vector<32xf32> to vector<32x1xf32>
    %77 = vector.broadcast %76 : vector<32x1xf32> to vector<32x16xf32>
    %78 = arith.subf %74, %77 : vector<32x16xf32>
    %79 = math.exp %78 : vector<32x16xf32>
    %cst_20 = arith.constant dense<0.000000e+00> : vector<32xf32>
    %80 = vector.multi_reduction <add>, %79, %cst_20 [1] : vector<32x16xf32> to vector<32xf32>
    %81 = vector.shape_cast %80 : vector<32xf32> to vector<32x1xf32>
    %82 = tpu.reciprocal %81 {approx = true} : vector<32x1xf32> -> vector<32x1xf32>
    %83 = vector.broadcast %82 : vector<32x1xf32> to vector<32x16xf32>
    %84 = arith.mulf %79, %83 : vector<32x16xf32>
    %cst_21 = arith.constant dense<0.000000e+00> : vector<32x8xf32>
    %85 = tpu.matmul %84, %72, %cst_21 {dimension_numbers = #tpu.dot_dimension_numbers<[1], [0], [0], [1], [0, 0, 1, 1], [], []>} : vector<32x16xf32>, vector<16x8xf32>, vector<32x8xf32> -> vector<32x8xf32>
    %86 = vector.extract_strided_slice %85 {offsets = [0, 0], sizes = [16, 8], strides = [1, 1]} : vector<32x8xf32> to vector<16x8xf32>
    %87 = vector.extract_strided_slice %85 {offsets = [16, 0], sizes = [16, 8], strides = [1, 1]} : vector<32x8xf32> to vector<16x8xf32>
    %88 = vector.extract_strided_slice %64 {offsets = [0, 16], sizes = [16, 8], strides = [1, 1]} : vector<16x32xf32> to vector<16x8xf32>
    %89 = vector.extract_strided_slice %64 {offsets = [0, 24], sizes = [16, 8], strides = [1, 1]} : vector<16x32xf32> to vector<16x8xf32>
    %90 = tpu.concatenate %88, %89 in 0 : vector<16x8xf32>, vector<16x8xf32> -> vector<32x8xf32>
    %91 = vector.extract_strided_slice %67 {offsets = [0, 8], sizes = [16, 8], strides = [1, 1]} : vector<16x16xf32> to vector<16x8xf32>
    %92 = vector.extract_strided_slice %59 {offsets = [0, 8], sizes = [16, 8], strides = [1, 1]} : vector<16x16xf32> to vector<16x8xf32>
    %cst_22 = arith.constant dense<0.000000e+00> : vector<32x16xf32>
    %93 = tpu.matmul %90, %91, %cst_22 {dimension_numbers = #tpu.dot_dimension_numbers<[1], [1], [0], [0], [0, 0, 1, 0], [], []>} : vector<32x8xf32>, vector<16x8xf32>, vector<32x16xf32> -> vector<32x16xf32>
    %94 = arith.addf %93, %6 : vector<32x16xf32>
    %cst_23 = arith.constant dense<0xFF800000> : vector<32xf32>
    %95 = vector.multi_reduction <maximumf>, %94, %cst_23 [1] : vector<32x16xf32> to vector<32xf32>
    %96 = vector.shape_cast %95 : vector<32xf32> to vector<32x1xf32>
    %97 = vector.broadcast %96 : vector<32x1xf32> to vector<32x16xf32>
    %98 = arith.subf %94, %97 : vector<32x16xf32>
    %99 = math.exp %98 : vector<32x16xf32>
    %cst_24 = arith.constant dense<0.000000e+00> : vector<32xf32>
    %100 = vector.multi_reduction <add>, %99, %cst_24 [1] : vector<32x16xf32> to vector<32xf32>
    %101 = vector.shape_cast %100 : vector<32xf32> to vector<32x1xf32>
    %102 = tpu.reciprocal %101 {approx = true} : vector<32x1xf32> -> vector<32x1xf32>
    %103 = vector.broadcast %102 : vector<32x1xf32> to vector<32x16xf32>
    %104 = arith.mulf %99, %103 : vector<32x16xf32>
    %cst_25 = arith.constant dense<0.000000e+00> : vector<32x8xf32>
    %105 = tpu.matmul %104, %92, %cst_25 {dimension_numbers = #tpu.dot_dimension_numbers<[1], [0], [0], [1], [0, 0, 1, 1], [], []>} : vector<32x16xf32>, vector<16x8xf32>, vector<32x8xf32> -> vector<32x8xf32>
    %106 = vector.extract_strided_slice %105 {offsets = [0, 0], sizes = [16, 8], strides = [1, 1]} : vector<32x8xf32> to vector<16x8xf32>
    %107 = vector.extract_strided_slice %105 {offsets = [16, 0], sizes = [16, 8], strides = [1, 1]} : vector<32x8xf32> to vector<16x8xf32>
    %108 = tpu.concatenate %86, %87, %106, %107 in 1 : vector<16x8xf32>, vector<16x8xf32>, vector<16x8xf32>, vector<16x8xf32> -> vector<16x32xf32>
    %c0_26 = arith.constant 0 : index
    %c0_27 = arith.constant 0 : index
    %c0_28 = arith.constant 0 : index
    %109 = vector.load %arg5[%c0_26, %c0_27, %c0_28] : memref<2x32x32xf32, #tpu.memory_space<vmem>>, vector<1x32x32xf32>
    %110 = vector.shape_cast %109 : vector<1x32x32xf32> to vector<32x32xf32>
    %cst_29 = arith.constant dense<0.000000e+00> : vector<16x32xf32>
    %111 = tpu.matmul %108, %110, %cst_29 {dimension_numbers = #tpu.dot_dimension_numbers<[1], [0], [0], [1], [0, 0, 1, 1], [], []>} : vector<16x32xf32>, vector<32x32xf32>, vector<16x32xf32> -> vector<16x32xf32>
    %112 = arith.addf %19, %111 : vector<16x32xf32>
    %113 = vector.broadcast %23 : vector<1x32xf32> to vector<16x32xf32>
    %114 = arith.addf %112, %113 : vector<16x32xf32>
    %cst_30 = arith.constant dense<0.000000e+00> : vector<16xf32>
    %115 = vector.multi_reduction <add>, %114, %cst_30 [1] : vector<16x32xf32> to vector<16xf32>
    %116 = vector.shape_cast %115 : vector<16xf32> to vector<16x1xf32>
    %cst_31 = arith.constant 3.200000e+01 : f32
    %117 = vector.broadcast %cst_31 : f32 to vector<16x1xf32>
    %118 = arith.divf %116, %117 : vector<16x1xf32>
    %119 = vector.broadcast %118 : vector<16x1xf32> to vector<16x32xf32>
    %120 = arith.subf %114, %119 : vector<16x32xf32>
    %121 = arith.mulf %120, %120 : vector<16x32xf32>
    %cst_32 = arith.constant dense<0.000000e+00> : vector<16xf32>
    %122 = vector.multi_reduction <add>, %121, %cst_32 [1] : vector<16x32xf32> to vector<16xf32>
    %123 = vector.shape_cast %122 : vector<16xf32> to vector<16x1xf32>
    %cst_33 = arith.constant 3.200000e+01 : f32
    %124 = vector.broadcast %cst_33 : f32 to vector<16x1xf32>
    %125 = arith.divf %123, %124 : vector<16x1xf32>
    %126 = vector.broadcast %118 : vector<16x1xf32> to vector<16x32xf32>
    %127 = arith.subf %114, %126 : vector<16x32xf32>
    %cst_34 = arith.constant 9.99999974E-6 : f32
    %128 = vector.broadcast %cst_34 : f32 to vector<16x1xf32>
    %129 = arith.addf %125, %128 : vector<16x1xf32>
    %130 = math.rsqrt %129 : vector<16x1xf32>
    %131 = vector.broadcast %130 : vector<16x1xf32> to vector<16x32xf32>
    %132 = arith.mulf %127, %131 : vector<16x32xf32>
    %133 = vector.broadcast %26 : vector<1x32xf32> to vector<16x32xf32>
    %134 = arith.mulf %132, %133 : vector<16x32xf32>
    %135 = vector.broadcast %27 : vector<1x32xf32> to vector<16x32xf32>
    %136 = arith.addf %134, %135 : vector<16x32xf32>
    %c0_35 = arith.constant 0 : index
    %c0_36 = arith.constant 0 : index
    %c0_37 = arith.constant 0 : index
    %137 = vector.load %arg6[%c0_35, %c0_36, %c0_37] : memref<2x32x96xf32, #tpu.memory_space<vmem>>, vector<1x32x96xf32>
    %138 = vector.shape_cast %137 : vector<1x32x96xf32> to vector<32x96xf32>
    %cst_38 = arith.constant dense<0.000000e+00> : vector<16x96xf32>
    %139 = tpu.matmul %136, %138, %cst_38 {dimension_numbers = #tpu.dot_dimension_numbers<[1], [0], [0], [1], [0, 0, 1, 1], [], []>} : vector<16x32xf32>, vector<32x96xf32>, vector<16x96xf32> -> vector<16x96xf32>
    %140 = vector.broadcast %28 : vector<1x96xf32> to vector<16x96xf32>
    %141 = arith.addf %139, %140 : vector<16x96xf32>
    %142 = arith.mulf %141, %141 : vector<16x96xf32>
    %143 = arith.mulf %141, %142 : vector<16x96xf32>
    %cst_39 = arith.constant 4.471500e-02 : f32
    %144 = vector.broadcast %cst_39 : f32 to vector<16x96xf32>
    %145 = arith.mulf %144, %143 : vector<16x96xf32>
    %146 = arith.addf %141, %145 : vector<16x96xf32>
    %cst_40 = arith.constant 0.797884583 : f32
    %147 = vector.broadcast %cst_40 : f32 to vector<16x96xf32>
    %148 = arith.mulf %147, %146 : vector<16x96xf32>
    %149 = math.tanh %148 : vector<16x96xf32>
    %cst_41 = arith.constant 1.000000e+00 : f32
    %150 = vector.broadcast %cst_41 : f32 to vector<16x96xf32>
    %151 = arith.addf %150, %149 : vector<16x96xf32>
    %cst_42 = arith.constant 5.000000e-01 : f32
    %152 = vector.broadcast %cst_42 : f32 to vector<16x96xf32>
    %153 = arith.mulf %152, %151 : vector<16x96xf32>
    %154 = arith.mulf %141, %153 : vector<16x96xf32>
    %c0_43 = arith.constant 0 : index
    %c0_44 = arith.constant 0 : index
    %c0_45 = arith.constant 0 : index
    %155 = vector.load %arg7[%c0_43, %c0_44, %c0_45] : memref<2x96x32xf32, #tpu.memory_space<vmem>>, vector<1x96x32xf32>
    %156 = vector.shape_cast %155 : vector<1x96x32xf32> to vector<96x32xf32>
    %cst_46 = arith.constant dense<0.000000e+00> : vector<16x32xf32>
    %157 = tpu.matmul %154, %156, %cst_46 {dimension_numbers = #tpu.dot_dimension_numbers<[1], [0], [0], [1], [0, 0, 1, 1], [], []>} : vector<16x96xf32>, vector<96x32xf32>, vector<16x32xf32> -> vector<16x32xf32>
    %158 = arith.addf %114, %157 : vector<16x32xf32>
    %159 = vector.broadcast %29 : vector<1x32xf32> to vector<16x32xf32>
    %160 = arith.addf %158, %159 : vector<16x32xf32>
    %c1 = arith.constant 1 : index
    %c0_47 = arith.constant 0 : index
    %c0_48 = arith.constant 0 : index
    %161 = vector.load %arg8[%c1, %c0_47, %c0_48] : memref<2x8x128xf32, #tpu.memory_space<vmem>>, vector<1x8x128xf32>
    %162 = vector.shape_cast %161 : vector<1x8x128xf32> to vector<8x128xf32>
    %163 = vector.extract_strided_slice %162 {offsets = [0, 0], sizes = [1, 112], strides = [1, 1]} : vector<8x128xf32> to vector<1x112xf32>
    %164 = vector.extract_strided_slice %162 {offsets = [1, 0], sizes = [1, 32], strides = [1, 1]} : vector<8x128xf32> to vector<1x32xf32>
    %165 = vector.extract_strided_slice %162 {offsets = [2, 0], sizes = [1, 32], strides = [1, 1]} : vector<8x128xf32> to vector<1x32xf32>
    %166 = vector.extract_strided_slice %162 {offsets = [3, 0], sizes = [1, 32], strides = [1, 1]} : vector<8x128xf32> to vector<1x32xf32>
    %167 = vector.extract_strided_slice %162 {offsets = [4, 0], sizes = [1, 32], strides = [1, 1]} : vector<8x128xf32> to vector<1x32xf32>
    %168 = vector.extract_strided_slice %162 {offsets = [5, 0], sizes = [1, 32], strides = [1, 1]} : vector<8x128xf32> to vector<1x32xf32>
    %169 = vector.extract_strided_slice %162 {offsets = [6, 0], sizes = [1, 96], strides = [1, 1]} : vector<8x128xf32> to vector<1x96xf32>
    %170 = vector.extract_strided_slice %162 {offsets = [7, 0], sizes = [1, 32], strides = [1, 1]} : vector<8x128xf32> to vector<1x32xf32>
    %cst_49 = arith.constant dense<0.000000e+00> : vector<16xf32>
    %171 = vector.multi_reduction <add>, %160, %cst_49 [1] : vector<16x32xf32> to vector<16xf32>
    %172 = vector.shape_cast %171 : vector<16xf32> to vector<16x1xf32>
    %cst_50 = arith.constant 3.200000e+01 : f32
    %173 = vector.broadcast %cst_50 : f32 to vector<16x1xf32>
    %174 = arith.divf %172, %173 : vector<16x1xf32>
    %175 = vector.broadcast %174 : vector<16x1xf32> to vector<16x32xf32>
    %176 = arith.subf %160, %175 : vector<16x32xf32>
    %177 = arith.mulf %176, %176 : vector<16x32xf32>
    %cst_51 = arith.constant dense<0.000000e+00> : vector<16xf32>
    %178 = vector.multi_reduction <add>, %177, %cst_51 [1] : vector<16x32xf32> to vector<16xf32>
    %179 = vector.shape_cast %178 : vector<16xf32> to vector<16x1xf32>
    %cst_52 = arith.constant 3.200000e+01 : f32
    %180 = vector.broadcast %cst_52 : f32 to vector<16x1xf32>
    %181 = arith.divf %179, %180 : vector<16x1xf32>
    %182 = vector.broadcast %174 : vector<16x1xf32> to vector<16x32xf32>
    %183 = arith.subf %160, %182 : vector<16x32xf32>
    %cst_53 = arith.constant 9.99999974E-6 : f32
    %184 = vector.broadcast %cst_53 : f32 to vector<16x1xf32>
    %185 = arith.addf %181, %184 : vector<16x1xf32>
    %186 = math.rsqrt %185 : vector<16x1xf32>
    %187 = vector.broadcast %186 : vector<16x1xf32> to vector<16x32xf32>
    %188 = arith.mulf %183, %187 : vector<16x32xf32>
    %189 = vector.broadcast %165 : vector<1x32xf32> to vector<16x32xf32>
    %190 = arith.mulf %188, %189 : vector<16x32xf32>
    %191 = vector.broadcast %166 : vector<1x32xf32> to vector<16x32xf32>
    %192 = arith.addf %190, %191 : vector<16x32xf32>
    %c1_54 = arith.constant 1 : index
    %c0_55 = arith.constant 0 : index
    %c0_56 = arith.constant 0 : index
    %193 = vector.load %arg4[%c1_54, %c0_55, %c0_56] : memref<2x32x112xf32, #tpu.memory_space<vmem>>, vector<1x32x112xf32>
    %194 = vector.shape_cast %193 : vector<1x32x112xf32> to vector<32x112xf32>
    %cst_57 = arith.constant dense<0.000000e+00> : vector<16x112xf32>
    %195 = tpu.matmul %192, %194, %cst_57 {dimension_numbers = #tpu.dot_dimension_numbers<[1], [0], [0], [1], [0, 0, 1, 1], [], []>} : vector<16x32xf32>, vector<32x112xf32>, vector<16x112xf32> -> vector<16x112xf32>
    %196 = vector.broadcast %163 : vector<1x112xf32> to vector<16x112xf32>
    %197 = arith.addf %195, %196 : vector<16x112xf32>
    %198 = vector.extract_strided_slice %197 {offsets = [0, 0], sizes = [16, 32], strides = [1, 1]} : vector<16x112xf32> to vector<16x32xf32>
    %199 = vector.extract_strided_slice %197 {offsets = [0, 32], sizes = [16, 16], strides = [1, 1]} : vector<16x112xf32> to vector<16x16xf32>
    %200 = vector.extract_strided_slice %197 {offsets = [0, 48], sizes = [16, 16], strides = [1, 1]} : vector<16x112xf32> to vector<16x16xf32>
    %201 = vector.extract_strided_slice %197 {offsets = [0, 64], sizes = [16, 32], strides = [1, 1]} : vector<16x112xf32> to vector<16x32xf32>
    %202 = vector.extract_strided_slice %197 {offsets = [0, 96], sizes = [16, 16], strides = [1, 1]} : vector<16x112xf32> to vector<16x16xf32>
    %203 = arith.mulf %198, %2 : vector<16x32xf32>
    %204 = arith.mulf %201, %3 : vector<16x32xf32>
    %205 = arith.addf %203, %204 : vector<16x32xf32>
    %206 = arith.mulf %199, %4 : vector<16x16xf32>
    %207 = arith.mulf %202, %5 : vector<16x16xf32>
    %208 = arith.addf %206, %207 : vector<16x16xf32>
    %209 = vector.extract_strided_slice %205 {offsets = [0, 0], sizes = [16, 8], strides = [1, 1]} : vector<16x32xf32> to vector<16x8xf32>
    %210 = vector.extract_strided_slice %205 {offsets = [0, 8], sizes = [16, 8], strides = [1, 1]} : vector<16x32xf32> to vector<16x8xf32>
    %211 = tpu.concatenate %209, %210 in 0 : vector<16x8xf32>, vector<16x8xf32> -> vector<32x8xf32>
    %212 = vector.extract_strided_slice %208 {offsets = [0, 0], sizes = [16, 8], strides = [1, 1]} : vector<16x16xf32> to vector<16x8xf32>
    %213 = vector.extract_strided_slice %200 {offsets = [0, 0], sizes = [16, 8], strides = [1, 1]} : vector<16x16xf32> to vector<16x8xf32>
    %cst_58 = arith.constant dense<0.000000e+00> : vector<32x16xf32>
    %214 = tpu.matmul %211, %212, %cst_58 {dimension_numbers = #tpu.dot_dimension_numbers<[1], [1], [0], [0], [0, 0, 1, 0], [], []>} : vector<32x8xf32>, vector<16x8xf32>, vector<32x16xf32> -> vector<32x16xf32>
    %215 = arith.addf %214, %6 : vector<32x16xf32>
    %cst_59 = arith.constant dense<0xFF800000> : vector<32xf32>
    %216 = vector.multi_reduction <maximumf>, %215, %cst_59 [1] : vector<32x16xf32> to vector<32xf32>
    %217 = vector.shape_cast %216 : vector<32xf32> to vector<32x1xf32>
    %218 = vector.broadcast %217 : vector<32x1xf32> to vector<32x16xf32>
    %219 = arith.subf %215, %218 : vector<32x16xf32>
    %220 = math.exp %219 : vector<32x16xf32>
    %cst_60 = arith.constant dense<0.000000e+00> : vector<32xf32>
    %221 = vector.multi_reduction <add>, %220, %cst_60 [1] : vector<32x16xf32> to vector<32xf32>
    %222 = vector.shape_cast %221 : vector<32xf32> to vector<32x1xf32>
    %223 = tpu.reciprocal %222 {approx = true} : vector<32x1xf32> -> vector<32x1xf32>
    %224 = vector.broadcast %223 : vector<32x1xf32> to vector<32x16xf32>
    %225 = arith.mulf %220, %224 : vector<32x16xf32>
    %cst_61 = arith.constant dense<0.000000e+00> : vector<32x8xf32>
    %226 = tpu.matmul %225, %213, %cst_61 {dimension_numbers = #tpu.dot_dimension_numbers<[1], [0], [0], [1], [0, 0, 1, 1], [], []>} : vector<32x16xf32>, vector<16x8xf32>, vector<32x8xf32> -> vector<32x8xf32>
    %227 = vector.extract_strided_slice %226 {offsets = [0, 0], sizes = [16, 8], strides = [1, 1]} : vector<32x8xf32> to vector<16x8xf32>
    %228 = vector.extract_strided_slice %226 {offsets = [16, 0], sizes = [16, 8], strides = [1, 1]} : vector<32x8xf32> to vector<16x8xf32>
    %229 = vector.extract_strided_slice %205 {offsets = [0, 16], sizes = [16, 8], strides = [1, 1]} : vector<16x32xf32> to vector<16x8xf32>
    %230 = vector.extract_strided_slice %205 {offsets = [0, 24], sizes = [16, 8], strides = [1, 1]} : vector<16x32xf32> to vector<16x8xf32>
    %231 = tpu.concatenate %229, %230 in 0 : vector<16x8xf32>, vector<16x8xf32> -> vector<32x8xf32>
    %232 = vector.extract_strided_slice %208 {offsets = [0, 8], sizes = [16, 8], strides = [1, 1]} : vector<16x16xf32> to vector<16x8xf32>
    %233 = vector.extract_strided_slice %200 {offsets = [0, 8], sizes = [16, 8], strides = [1, 1]} : vector<16x16xf32> to vector<16x8xf32>
    %cst_62 = arith.constant dense<0.000000e+00> : vector<32x16xf32>
    %234 = tpu.matmul %231, %232, %cst_62 {dimension_numbers = #tpu.dot_dimension_numbers<[1], [1], [0], [0], [0, 0, 1, 0], [], []>} : vector<32x8xf32>, vector<16x8xf32>, vector<32x16xf32> -> vector<32x16xf32>
    %235 = arith.addf %234, %6 : vector<32x16xf32>
    %cst_63 = arith.constant dense<0xFF800000> : vector<32xf32>
    %236 = vector.multi_reduction <maximumf>, %235, %cst_63 [1] : vector<32x16xf32> to vector<32xf32>
    %237 = vector.shape_cast %236 : vector<32xf32> to vector<32x1xf32>
    %238 = vector.broadcast %237 : vector<32x1xf32> to vector<32x16xf32>
    %239 = arith.subf %235, %238 : vector<32x16xf32>
    %240 = math.exp %239 : vector<32x16xf32>
    %cst_64 = arith.constant dense<0.000000e+00> : vector<32xf32>
    %241 = vector.multi_reduction <add>, %240, %cst_64 [1] : vector<32x16xf32> to vector<32xf32>
    %242 = vector.shape_cast %241 : vector<32xf32> to vector<32x1xf32>
    %243 = tpu.reciprocal %242 {approx = true} : vector<32x1xf32> -> vector<32x1xf32>
    %244 = vector.broadcast %243 : vector<32x1xf32> to vector<32x16xf32>
    %245 = arith.mulf %240, %244 : vector<32x16xf32>
    %cst_65 = arith.constant dense<0.000000e+00> : vector<32x8xf32>
    %246 = tpu.matmul %245, %233, %cst_65 {dimension_numbers = #tpu.dot_dimension_numbers<[1], [0], [0], [1], [0, 0, 1, 1], [], []>} : vector<32x16xf32>, vector<16x8xf32>, vector<32x8xf32> -> vector<32x8xf32>
    %247 = vector.extract_strided_slice %246 {offsets = [0, 0], sizes = [16, 8], strides = [1, 1]} : vector<32x8xf32> to vector<16x8xf32>
    %248 = vector.extract_strided_slice %246 {offsets = [16, 0], sizes = [16, 8], strides = [1, 1]} : vector<32x8xf32> to vector<16x8xf32>
    %249 = tpu.concatenate %227, %228, %247, %248 in 1 : vector<16x8xf32>, vector<16x8xf32>, vector<16x8xf32>, vector<16x8xf32> -> vector<16x32xf32>
    %c1_66 = arith.constant 1 : index
    %c0_67 = arith.constant 0 : index
    %c0_68 = arith.constant 0 : index
    %250 = vector.load %arg5[%c1_66, %c0_67, %c0_68] : memref<2x32x32xf32, #tpu.memory_space<vmem>>, vector<1x32x32xf32>
    %251 = vector.shape_cast %250 : vector<1x32x32xf32> to vector<32x32xf32>
    %cst_69 = arith.constant dense<0.000000e+00> : vector<16x32xf32>
    %252 = tpu.matmul %249, %251, %cst_69 {dimension_numbers = #tpu.dot_dimension_numbers<[1], [0], [0], [1], [0, 0, 1, 1], [], []>} : vector<16x32xf32>, vector<32x32xf32>, vector<16x32xf32> -> vector<16x32xf32>
    %253 = arith.addf %160, %252 : vector<16x32xf32>
    %254 = vector.broadcast %164 : vector<1x32xf32> to vector<16x32xf32>
    %255 = arith.addf %253, %254 : vector<16x32xf32>
    %cst_70 = arith.constant dense<0.000000e+00> : vector<16xf32>
    %256 = vector.multi_reduction <add>, %255, %cst_70 [1] : vector<16x32xf32> to vector<16xf32>
    %257 = vector.shape_cast %256 : vector<16xf32> to vector<16x1xf32>
    %cst_71 = arith.constant 3.200000e+01 : f32
    %258 = vector.broadcast %cst_71 : f32 to vector<16x1xf32>
    %259 = arith.divf %257, %258 : vector<16x1xf32>
    %260 = vector.broadcast %259 : vector<16x1xf32> to vector<16x32xf32>
    %261 = arith.subf %255, %260 : vector<16x32xf32>
    %262 = arith.mulf %261, %261 : vector<16x32xf32>
    %cst_72 = arith.constant dense<0.000000e+00> : vector<16xf32>
    %263 = vector.multi_reduction <add>, %262, %cst_72 [1] : vector<16x32xf32> to vector<16xf32>
    %264 = vector.shape_cast %263 : vector<16xf32> to vector<16x1xf32>
    %cst_73 = arith.constant 3.200000e+01 : f32
    %265 = vector.broadcast %cst_73 : f32 to vector<16x1xf32>
    %266 = arith.divf %264, %265 : vector<16x1xf32>
    %267 = vector.broadcast %259 : vector<16x1xf32> to vector<16x32xf32>
    %268 = arith.subf %255, %267 : vector<16x32xf32>
    %cst_74 = arith.constant 9.99999974E-6 : f32
    %269 = vector.broadcast %cst_74 : f32 to vector<16x1xf32>
    %270 = arith.addf %266, %269 : vector<16x1xf32>
    %271 = math.rsqrt %270 : vector<16x1xf32>
    %272 = vector.broadcast %271 : vector<16x1xf32> to vector<16x32xf32>
    %273 = arith.mulf %268, %272 : vector<16x32xf32>
    %274 = vector.broadcast %167 : vector<1x32xf32> to vector<16x32xf32>
    %275 = arith.mulf %273, %274 : vector<16x32xf32>
    %276 = vector.broadcast %168 : vector<1x32xf32> to vector<16x32xf32>
    %277 = arith.addf %275, %276 : vector<16x32xf32>
    %c1_75 = arith.constant 1 : index
    %c0_76 = arith.constant 0 : index
    %c0_77 = arith.constant 0 : index
    %278 = vector.load %arg6[%c1_75, %c0_76, %c0_77] : memref<2x32x96xf32, #tpu.memory_space<vmem>>, vector<1x32x96xf32>
    %279 = vector.shape_cast %278 : vector<1x32x96xf32> to vector<32x96xf32>
    %cst_78 = arith.constant dense<0.000000e+00> : vector<16x96xf32>
    %280 = tpu.matmul %277, %279, %cst_78 {dimension_numbers = #tpu.dot_dimension_numbers<[1], [0], [0], [1], [0, 0, 1, 1], [], []>} : vector<16x32xf32>, vector<32x96xf32>, vector<16x96xf32> -> vector<16x96xf32>
    %281 = vector.broadcast %169 : vector<1x96xf32> to vector<16x96xf32>
    %282 = arith.addf %280, %281 : vector<16x96xf32>
    %283 = arith.mulf %282, %282 : vector<16x96xf32>
    %284 = arith.mulf %282, %283 : vector<16x96xf32>
    %cst_79 = arith.constant 4.471500e-02 : f32
    %285 = vector.broadcast %cst_79 : f32 to vector<16x96xf32>
    %286 = arith.mulf %285, %284 : vector<16x96xf32>
    %287 = arith.addf %282, %286 : vector<16x96xf32>
    %cst_80 = arith.constant 0.797884583 : f32
    %288 = vector.broadcast %cst_80 : f32 to vector<16x96xf32>
    %289 = arith.mulf %288, %287 : vector<16x96xf32>
    %290 = math.tanh %289 : vector<16x96xf32>
    %cst_81 = arith.constant 1.000000e+00 : f32
    %291 = vector.broadcast %cst_81 : f32 to vector<16x96xf32>
    %292 = arith.addf %291, %290 : vector<16x96xf32>
    %cst_82 = arith.constant 5.000000e-01 : f32
    %293 = vector.broadcast %cst_82 : f32 to vector<16x96xf32>
    %294 = arith.mulf %293, %292 : vector<16x96xf32>
    %295 = arith.mulf %282, %294 : vector<16x96xf32>
    %c1_83 = arith.constant 1 : index
    %c0_84 = arith.constant 0 : index
    %c0_85 = arith.constant 0 : index
    %296 = vector.load %arg7[%c1_83, %c0_84, %c0_85] : memref<2x96x32xf32, #tpu.memory_space<vmem>>, vector<1x96x32xf32>
    %297 = vector.shape_cast %296 : vector<1x96x32xf32> to vector<96x32xf32>
    %cst_86 = arith.constant dense<0.000000e+00> : vector<16x32xf32>
    %298 = tpu.matmul %295, %297, %cst_86 {dimension_numbers = #tpu.dot_dimension_numbers<[1], [0], [0], [1], [0, 0, 1, 1], [], []>} : vector<16x96xf32>, vector<96x32xf32>, vector<16x32xf32> -> vector<16x32xf32>
    %299 = arith.addf %255, %298 : vector<16x32xf32>
    %300 = vector.broadcast %170 : vector<1x32xf32> to vector<16x32xf32>
    %301 = arith.addf %299, %300 : vector<16x32xf32>
    %c0_87 = arith.constant 0 : index
    %c0_88 = arith.constant 0 : index
    %302 = vector.load %arg2[%c0_87, %c0_88] : memref<2x16xf32, #tpu.memory_space<vmem>>, vector<2x16xf32>
    %cst_89 = arith.constant dense<0.000000e+00> : vector<2x32xf32>
    %303 = tpu.matmul %302, %301, %cst_89 {dimension_numbers = #tpu.dot_dimension_numbers<[1], [0], [0], [1], [0, 0, 1, 1], [], []>} : vector<2x16xf32>, vector<16x32xf32>, vector<2x32xf32> -> vector<2x32xf32>
    %c0_90 = arith.constant 0 : index
    %c0_91 = arith.constant 0 : index
    %304 = vector.load %arg9[%c0_90, %c0_91] : memref<2x32xf32, #tpu.memory_space<vmem>>, vector<2x32xf32>
    tpu.vector_store %arg9[%c0_90, %c0_91], %303 {strides = array<i32>} : memref<2x32xf32, #tpu.memory_space<vmem>>, vector<2x32xf32>,
    return
  }
  func.func @transform_0(%arg0: i32) -> (i32, i32) {
    %c0_i32 = arith.constant 0 : i32
    %c0_i32_0 = arith.constant 0 : i32
    %c0_i32_1 = arith.constant 0 : i32
    return %c0_i32, %c0_i32_0 : i32, i32
  }
  func.func @transform_1(%arg0: i32) -> (i32, i32) {
    %c0_i32 = arith.constant 0 : i32
    %c0_i32_0 = arith.constant 0 : i32
    %c0_i32_1 = arith.constant 0 : i32
    return %c0_i32, %c0_i32_0 : i32, i32
  }
  func.func @transform_2(%arg0: i32) -> (i32, i32) {
    %c0_i32 = arith.constant 0 : i32
    %c0_i32_0 = arith.constant 0 : i32
    %c0_i32_1 = arith.constant 0 : i32
    return %c0_i32, %c0_i32_0 : i32, i32
  }
  func.func @transform_3(%arg0: i32) -> (i32, i32, i32) {
    %c0_i32 = arith.constant 0 : i32
    %c0_i32_0 = arith.constant 0 : i32
    %c0_i32_1 = arith.constant 0 : i32
    %c0_i32_2 = arith.constant 0 : i32
    return %c0_i32, %c0_i32_0, %c0_i32_1 : i32, i32, i32
  }
  func.func @transform_4(%arg0: i32) -> (i32, i32, i32) {
    %c0_i32 = arith.constant 0 : i32
    %c0_i32_0 = arith.constant 0 : i32
    %c0_i32_1 = arith.constant 0 : i32
    %c0_i32_2 = arith.constant 0 : i32
    return %c0_i32, %c0_i32_0, %c0_i32_1 : i32, i32, i32
  }
  func.func @transform_5(%arg0: i32) -> (i32, i32, i32) {
    %c0_i32 = arith.constant 0 : i32
    %c0_i32_0 = arith.constant 0 : i32
    %c0_i32_1 = arith.constant 0 : i32
    %c0_i32_2 = arith.constant 0 : i32
    return %c0_i32, %c0_i32_0, %c0_i32_1 : i32, i32, i32
  }
  func.func @transform_6(%arg0: i32) -> (i32, i32, i32) {
    %c0_i32 = arith.constant 0 : i32
    %c0_i32_0 = arith.constant 0 : i32
    %c0_i32_1 = arith.constant 0 : i32
    %c0_i32_2 = arith.constant 0 : i32
    return %c0_i32, %c0_i32_0, %c0_i32_1 : i32, i32, i32
  }
  func.func @transform_7(%arg0: i32) -> (i32, i32, i32) {
    %c0_i32 = arith.constant 0 : i32
    %c0_i32_0 = arith.constant 0 : i32
    %c0_i32_1 = arith.constant 0 : i32
    %c0_i32_2 = arith.constant 0 : i32
    return %c0_i32, %c0_i32_0, %c0_i32_1 : i32, i32, i32
  }
  func.func @transform_8(%arg0: i32) -> (i32, i32) {
    %c0_i32 = arith.constant 0 : i32
    %c0_i32_0 = arith.constant 0 : i32
    %c0_i32_1 = arith.constant 0 : i32
    return %c0_i32, %c0_i32_0 : i32, i32
  }
}

</mosaic_0001>

<llo_original>
// kernel: tile.33
$region0: #{tile.33}
  #allocation0 [shape = 's32[1]{0}', space=sflag, size = 0x4, scoped, tag = 'scoped memory for tile.33']
  %s0 = inlined_call_operand.vmem [shape: f32[8,8], index: 0, kind: input, shape index: {}]
  %s1 = inlined_call_operand.vmem [shape: f32[2,8,4,8], index: 1, kind: output, shape index: {}]
  // Predicated region
  $region2: #{tile.33} parent=0 // pred_check
    _
  $region3: #{tile.33} parent=0 // pred_check_branch
    %3 = sbr.rel (0) target = $region5
  $region4: #{tile.33} parent=0 // pred_region
    _
  $region5: #{tile.33} parent=0 // pred_fallthru
    _
  %v4 = vld [vmem:[%s0] ss:$0 sm:$0xff]
  %5 = vst [vmem:[%s1] sm:$0xf] %v4
  %s6 = scalar_lea.vmem %s1, 32
  %7 = vst [vmem:[%s6] sm:$0xf] %v4
  %s8 = scalar_lea.vmem %s0, 1
  %v9 = vld [vmem:[%s8] ss:$0 sm:$0xff]
  %s10 = scalar_lea.vmem %s1, 4
  %11 = vst [vmem:[%s10] sm:$0xf] %v9
  %s12 = scalar_lea.vmem %s1, 36
  %13 = vst [vmem:[%s12] sm:$0xf] %v9
  %s14 = scalar_lea.vmem %s0, 2
  %v15 = vld [vmem:[%s14] ss:$0 sm:$0xff]
  %s16 = scalar_lea.vmem %s1, 8
  %17 = vst [vmem:[%s16] sm:$0xf] %v15
  %s18 = scalar_lea.vmem %s1, 40
  %19 = vst [vmem:[%s18] sm:$0xf] %v15
  %s20 = scalar_lea.vmem %s0, 3
  %v21 = vld [vmem:[%s20] ss:$0 sm:$0xff]
  %s22 = scalar_lea.vmem %s1, 12
  %23 = vst [vmem:[%s22] sm:$0xf] %v21
  %s24 = scalar_lea.vmem %s1, 44
  %25 = vst [vmem:[%s24] sm:$0xf] %v21
  %s26 = scalar_lea.vmem %s0, 4
  %v27 = vld [vmem:[%s26] ss:$0 sm:$0xff]
  %s28 = scalar_lea.vmem %s1, 16
  %29 = vst [vmem:[%s28] sm:$0xf] %v27
  %s30 = scalar_lea.vmem %s1, 48
  %31 = vst [vmem:[%s30] sm:$0xf] %v27
  %s32 = scalar_lea.vmem %s0, 5
  %v33 = vld [vmem:[%s32] ss:$0 sm:$0xff]
  %s34 = scalar_lea.vmem %s1, 20
  %35 = vst [vmem:[%s34] sm:$0xf] %v33
  %s36 = scalar_lea.vmem %s1, 52
  %37 = vst [vmem:[%s36] sm:$0xf] %v33
  %s38 = scalar_lea.vmem %s0, 6
  %v39 = vld [vmem:[%s38] ss:$0 sm:$0xff]
  %s40 = scalar_lea.vmem %s1, 24
  %41 = vst [vmem:[%s40] sm:$0xf] %v39
  %s42 = scalar_lea.vmem %s1, 56
  %43 = vst [vmem:[%s42] sm:$0xf] %v39
  %s44 = scalar_lea.vmem %s0, 7
  %v45 = vld [vmem:[%s44] ss:$0 sm:$0xff]
  %s46 = scalar_lea.vmem %s1, 28
  %47 = vst [vmem:[%s46] sm:$0xf] %v45
  %s48 = scalar_lea.vmem %s1, 60
  %49 = vst [vmem:[%s48] sm:$0xf] %v45

// kernel: tile.43
$region0: #{tile.43}
  #allocation0 [shape = 's32[1]{0}', space=sflag, size = 0x4, scoped, tag = 'scoped memory for tile.43']
  %s0 = inlined_call_operand.vmem [shape: f32[8,8], index: 0, kind: input, shape index: {}]
  %s1 = inlined_call_operand.vmem [shape: f32[2,8,2,8], index: 1, kind: output, shape index: {}]
  // Predicated region
  $region2: #{tile.43} parent=0 // pred_check
    _
  $region3: #{tile.43} parent=0 // pred_check_branch
    %3 = sbr.rel (0) target = $region5
  $region4: #{tile.43} parent=0 // pred_region
    _
  $region5: #{tile.43} parent=0 // pred_fallthru
    _
  %v4 = vld [vmem:[%s0] ss:$0 sm:$0xff]
  %5 = vst [vmem:[%s1] sm:$0x3] %v4
  %s6 = scalar_lea.vmem %s1, 16
  %7 = vst [vmem:[%s6] sm:$0x3] %v4
  %s8 = scalar_lea.vmem %s0, 1
  %v9 = vld [vmem:[%s8] ss:$0 sm:$0xff]
  %s10 = scalar_lea.vmem %s1, 2
  %11 = vst [vmem:[%s10] sm:$0x3] %v9
  %s12 = scalar_lea.vmem %s1, 18
  %13 = vst [vmem:[%s12] sm:$0x3] %v9
  %s14 = scalar_lea.vmem %s0, 2
  %v15 = vld [vmem:[%s14] ss:$0 sm:$0xff]
  %s16 = scalar_lea.vmem %s1, 4
  %17 = vst [vmem:[%s16] sm:$0x3] %v15
  %s18 = scalar_lea.vmem %s1, 20
  %19 = vst [vmem:[%s18] sm:$0x3] %v15
  %s20 = scalar_lea.vmem %s0, 3
  %v21 = vld [vmem:[%s20] ss:$0 sm:$0xff]
  %s22 = scalar_lea.vmem %s1, 6
  %23 = vst [vmem:[%s22] sm:$0x3] %v21
  %s24 = scalar_lea.vmem %s1, 22
  %25 = vst [vmem:[%s24] sm:$0x3] %v21
  %s26 = scalar_lea.vmem %s0, 4
  %v27 = vld [vmem:[%s26] ss:$0 sm:$0xff]
  %s28 = scalar_lea.vmem %s1, 8
  %29 = vst [vmem:[%s28] sm:$0x3] %v27
  %s30 = scalar_lea.vmem %s1, 24
  %31 = vst [vmem:[%s30] sm:$0x3] %v27
  %s32 = scalar_lea.vmem %s0, 5
  %v33 = vld [vmem:[%s32] ss:$0 sm:$0xff]
  %s34 = scalar_lea.vmem %s1, 10
  %35 = vst [vmem:[%s34] sm:$0x3] %v33
  %s36 = scalar_lea.vmem %s1, 26
  %37 = vst [vmem:[%s36] sm:$0x3] %v33
  %s38 = scalar_lea.vmem %s0, 6
  %v39 = vld [vmem:[%s38] ss:$0 sm:$0xff]
  %s40 = scalar_lea.vmem %s1, 12
  %41 = vst [vmem:[%s40] sm:$0x3] %v39
  %s42 = scalar_lea.vmem %s1, 28
  %43 = vst [vmem:[%s42] sm:$0x3] %v39
  %s44 = scalar_lea.vmem %s0, 7
  %v45 = vld [vmem:[%s44] ss:$0 sm:$0xff]
  %s46 = scalar_lea.vmem %s1, 14
  %47 = vst [vmem:[%s46] sm:$0x3] %v45
  %s48 = scalar_lea.vmem %s1, 30
  %49 = vst [vmem:[%s48] sm:$0x3] %v45

// kernel: tile.44
$region0: #{tile.44}
  %s0 = inlined_call_operand.vmem [shape: f32[2,8,2,8], index: 0, kind: input, shape index: {}]
  %s1 = inlined_call_operand.vmem [shape: f32[16,16], index: 1, kind: output, shape index: {}]
  $region1: #{tile.44} parent=0
    #allocation0 [shape = 'u8[65536]{0}', space=vmem, size = 0x10000, scoped, tag = 'scoped mem for input reshape']
    %s3 = sshllo.u32 0, 2
    %s4 = smul.addr 2, 15
    %s5 = scalar_lea.vmem %s0, %s4
    %v6 = vld [vmem:[%s5] sm:%s3]
    %s7 = scalar_lea.vmem [#allocation0], 120
    %8 = vst [vmem:[%s7] sm:%s3] %v6
    %s9 = smul.addr 2, 14
    %s10 = scalar_lea.vmem %s0, %s9
    %v11 = vld [vmem:[%s10] sm:%s3]
    %s12 = scalar_lea.vmem [#allocation0], 112
    %13 = vst [vmem:[%s12] sm:%s3] %v11
    %s14 = smul.addr 2, 13
    %s15 = scalar_lea.vmem %s0, %s14
    %v16 = vld [vmem:[%s15] sm:%s3]
    %s17 = scalar_lea.vmem [#allocation0], 104
    %18 = vst [vmem:[%s17] sm:%s3] %v16
    %s19 = smul.addr 2, 12
    %s20 = scalar_lea.vmem %s0, %s19
    %v21 = vld [vmem:[%s20] sm:%s3]
    %s22 = scalar_lea.vmem [#allocation0], 96
    %23 = vst [vmem:[%s22] sm:%s3] %v21
    %s24 = smul.addr 2, 11
    %s25 = scalar_lea.vmem %s0, %s24
    %v26 = vld [vmem:[%s25] sm:%s3]
    %s27 = scalar_lea.vmem [#allocation0], 88
    %28 = vst [vmem:[%s27] sm:%s3] %v26
    %s29 = smul.addr 2, 10
    %s30 = scalar_lea.vmem %s0, %s29
    %v31 = vld [vmem:[%s30] sm:%s3]
    %s32 = scalar_lea.vmem [#allocation0], 80
    %33 = vst [vmem:[%s32] sm:%s3] %v31
    %s34 = smul.addr 2, 9
    %s35 = scalar_lea.vmem %s0, %s34
    %v36 = vld [vmem:[%s35] sm:%s3]
    %s37 = scalar_lea.vmem [#allocation0], 72
    %38 = vst [vmem:[%s37] sm:%s3] %v36
    %s39 = smul.addr 2, 8
    %s40 = scalar_lea.vmem %s0, %s39
    %v41 = vld [vmem:[%s40] sm:%s3]
    %s42 = scalar_lea.vmem [#allocation0], 64
    %43 = vst [vmem:[%s42] sm:%s3] %v41
    %s44 = smul.addr 2, 7
    %s45 = scalar_lea.vmem %s0, %s44
    %v46 = vld [vmem:[%s45] sm:%s3]
    %s47 = scalar_lea.vmem [#allocation0], 56
    %48 = vst [vmem:[%s47] sm:%s3] %v46
    %s49 = smul.addr 2, 6
    %s50 = scalar_lea.vmem %s0, %s49
    %v51 = vld [vmem:[%s50] sm:%s3]
    %s52 = scalar_lea.vmem [#allocation0], 48
    %53 = vst [vmem:[%s52] sm:%s3] %v51
    %s54 = smul.addr 2, 5
    %s55 = scalar_lea.vmem %s0, %s54
    %v56 = vld [vmem:[%s55] sm:%s3]
    %s57 = scalar_lea.vmem [#allocation0], 40
    %58 = vst [vmem:[%s57] sm:%s3] %v56
    %s59 = smul.addr 2, 4
    %s60 = scalar_lea.vmem %s0, %s59
    %v61 = vld [vmem:[%s60] sm:%s3]
    %s62 = scalar_lea.vmem [#allocation0], 32
    %63 = vst [vmem:[%s62] sm:%s3] %v61
    %s64 = smul.addr 2, 3
    %s65 = scalar_lea.vmem %s0, %s64
    %v66 = vld [vmem:[%s65] sm:%s3]
    %s67 = scalar_lea.vmem [#allocation0], 24
    %68 = vst [vmem:[%s67] sm:%s3] %v66
    %s69 = smul.addr 2, 2
    %s70 = scalar_lea.vmem %s0, %s69
    %v71 = vld [vmem:[%s70] sm:%s3]
    %s72 = scalar_lea.vmem [#allocation0], 16
    %73 = vst [vmem:[%s72] sm:%s3] %v71
    %s74 = scalar_lea.vmem %s0, 2
    %v75 = vld [vmem:[%s74] sm:%s3]
    %s76 = scalar_lea.vmem [#allocation0], 8
    %77 = vst [vmem:[%s76] sm:%s3] %v75
    %v78 = vld [vmem:[%s0] sm:%s3]
    %79 = vst [vmem:[#allocation0] sm:%s3] %v78
    %v80 = vld [vmem:[#allocation0] ss:$8 sm:$0xf]
    %v81 = vld [vmem:[#allocation0] ss:$8 sm:$0xf0]
    %vm82 = vcmask 1047556
    %v83 = vsel %vm82, %v81, %v80
    %vm84 = vcmask 64512
    %85 = vst.msk [vmem:[%s1] sm:$0xff] %vm84, %v83
    %s86 = scalar_lea.vmem [#allocation0], 64
    %v87 = vld [vmem:[%s86] ss:$8 sm:$0xf]
    %s88 = scalar_lea.vmem [#allocation0], 64
    %v89 = vld [vmem:[%s88] ss:$8 sm:$0xf0]
    %vm90 = vcmask 1047556
    %v91 = vsel %vm90, %v89, %v87
    %vm92 = vcmask 64512
    %s93 = scalar_lea.vmem %s1, 8
    %94 = vst.msk [vmem:[%s93] sm:$0xff] %vm92, %v91
    %s95 = scalar_lea.vmem [#allocation0], 1
    %v96 = vld [vmem:[%s95] ss:$8 sm:$0xf]
    %s97 = scalar_lea.vmem [#allocation0], 1
    %v98 = vld [vmem:[%s97] ss:$8 sm:$0xf0]
    %vm99 = vcmask 1047556
    %v100 = vsel %vm99, %v98, %v96
    %101 = vrot.lane.b32.xlu0 %v100, 8
    %v102 = vpop.permute.xlu0 %101
    %vm103 = vcmask 130112
    %104 = vst.msk [vmem:[%s1] sm:$0xff] %vm103, %v102
    %s105 = scalar_lea.vmem [#allocation0], 65
    %v106 = vld [vmem:[%s105] ss:$8 sm:$0xf]
    %s107 = scalar_lea.vmem [#allocation0], 65
    %v108 = vld [vmem:[%s107] ss:$8 sm:$0xf0]
    %vm109 = vcmask 1047556
    %v110 = vsel %vm109, %v108, %v106
    %111 = vrot.lane.b32.xlu0 %v110, 8
    %v112 = vpop.permute.xlu0 %111
    %vm113 = vcmask 130112
    %s114 = scalar_lea.vmem %s1, 8
    %115 = vst.msk [vmem:[%s114] sm:$0xff] %vm113, %v112

// kernel: tile.34
$region0: #{tile.34}
  %s0 = inlined_call_operand.vmem [shape: f32[2,8,4,8], index: 0, kind: input, shape index: {}]
  %s1 = inlined_call_operand.vmem [shape: f32[16,32], index: 1, kind: output, shape index: {}]
  $region1: #{tile.34} parent=0
    #allocation0 [shape = 'u8[65536]{0}', space=vmem, size = 0x10000, scoped, tag = 'scoped mem for input reshape']
    %s3 = sshllo.u32 0, 4
    %s4 = smul.addr 4, 15
    %s5 = scalar_lea.vmem %s0, %s4
    %v6 = vld [vmem:[%s5] sm:%s3]
    %s7 = scalar_lea.vmem [#allocation0], 120
    %8 = vst [vmem:[%s7] sm:%s3] %v6
    %s9 = smul.addr 4, 14
    %s10 = scalar_lea.vmem %s0, %s9
    %v11 = vld [vmem:[%s10] sm:%s3]
    %s12 = scalar_lea.vmem [#allocation0], 112
    %13 = vst [vmem:[%s12] sm:%s3] %v11
    %s14 = smul.addr 4, 13
    %s15 = scalar_lea.vmem %s0, %s14
    %v16 = vld [vmem:[%s15] sm:%s3]
    %s17 = scalar_lea.vmem [#allocation0], 104
    %18 = vst [vmem:[%s17] sm:%s3] %v16
    %s19 = smul.addr 4, 12
    %s20 = scalar_lea.vmem %s0, %s19
    %v21 = vld [vmem:[%s20] sm:%s3]
    %s22 = scalar_lea.vmem [#allocation0], 96
    %23 = vst [vmem:[%s22] sm:%s3] %v21
    %s24 = smul.addr 4, 11
    %s25 = scalar_lea.vmem %s0, %s24
    %v26 = vld [vmem:[%s25] sm:%s3]
    %s27 = scalar_lea.vmem [#allocation0], 88
    %28 = vst [vmem:[%s27] sm:%s3] %v26
    %s29 = smul.addr 4, 10
    %s30 = scalar_lea.vmem %s0, %s29
    %v31 = vld [vmem:[%s30] sm:%s3]
    %s32 = scalar_lea.vmem [#allocation0], 80
    %33 = vst [vmem:[%s32] sm:%s3] %v31
    %s34 = smul.addr 4, 9
    %s35 = scalar_lea.vmem %s0, %s34
    %v36 = vld [vmem:[%s35] sm:%s3]
    %s37 = scalar_lea.vmem [#allocation0], 72
    %38 = vst [vmem:[%s37] sm:%s3] %v36
    %s39 = smul.addr 4, 8
    %s40 = scalar_lea.vmem %s0, %s39
    %v41 = vld [vmem:[%s40] sm:%s3]
    %s42 = scalar_lea.vmem [#allocation0], 64
    %43 = vst [vmem:[%s42] sm:%s3] %v41
    %s44 = smul.addr 4, 7
    %s45 = scalar_lea.vmem %s0, %s44
    %v46 = vld [vmem:[%s45] sm:%s3]
    %s47 = scalar_lea.vmem [#allocation0], 56
    %48 = vst [vmem:[%s47] sm:%s3] %v46
    %s49 = smul.addr 4, 6
    %s50 = scalar_lea.vmem %s0, %s49
    %v51 = vld [vmem:[%s50] sm:%s3]
    %s52 = scalar_lea.vmem [#allocation0], 48
    %53 = vst [vmem:[%s52] sm:%s3] %v51
    %s54 = smul.addr 4, 5
    %s55 = scalar_lea.vmem %s0, %s54
    %v56 = vld [vmem:[%s55] sm:%s3]
    %s57 = scalar_lea.vmem [#allocation0], 40
    %58 = vst [vmem:[%s57] sm:%s3] %v56
    %s59 = smul.addr 4, 4
    %s60 = scalar_lea.vmem %s0, %s59
    %v61 = vld [vmem:[%s60] sm:%s3]
    %s62 = scalar_lea.vmem [#allocation0], 32
    %63 = vst [vmem:[%s62] sm:%s3] %v61
    %s64 = smul.addr 4, 3
    %s65 = scalar_lea.vmem %s0, %s64
    %v66 = vld [vmem:[%s65] sm:%s3]
    %s67 = scalar_lea.vmem [#allocation0], 24
    %68 = vst [vmem:[%s67] sm:%s3] %v66
    %s69 = smul.addr 4, 2
    %s70 = scalar_lea.vmem %s0, %s69
    %v71 = vld [vmem:[%s70] sm:%s3]
    %s72 = scalar_lea.vmem [#allocation0], 16
    %73 = vst [vmem:[%s72] sm:%s3] %v71
    %s74 = scalar_lea.vmem %s0, 4
    %v75 = vld [vmem:[%s74] sm:%s3]
    %s76 = scalar_lea.vmem [#allocation0], 8
    %77 = vst [vmem:[%s76] sm:%s3] %v75
    %v78 = vld [vmem:[%s0] sm:%s3]
    %79 = vst [vmem:[#allocation0] sm:%s3] %v78
    %v80 = vld [vmem:[#allocation0] ss:$8 sm:$0xf]
    %v81 = vld [vmem:[#allocation0] ss:$8 sm:$0xf0]
    %vm82 = vcmask 1047556
    %v83 = vsel %vm82, %v81, %v80
    %vm84 = vcmask 64512
    %85 = vst.msk [vmem:[%s1] sm:$0xff] %vm84, %v83
    %s86 = scalar_lea.vmem [#allocation0], 64
    %v87 = vld [vmem:[%s86] ss:$8 sm:$0xf]
    %s88 = scalar_lea.vmem [#allocation0], 64
    %v89 = vld [vmem:[%s88] ss:$8 sm:$0xf0]
    %vm90 = vcmask 1047556
    %v91 = vsel %vm90, %v89, %v87
    %vm92 = vcmask 64512
    %s93 = scalar_lea.vmem %s1, 8
    %94 = vst.msk [vmem:[%s93] sm:$0xff] %vm92, %v91
    %s95 = scalar_lea.vmem [#allocation0], 3
    %v96 = vld [vmem:[%s95] ss:$8 sm:$0xf]
    %s97 = scalar_lea.vmem [#allocation0], 3
    %v98 = vld [vmem:[%s97] ss:$8 sm:$0xf0]
    %vm99 = vcmask 1047556
    %v100 = vsel %vm99, %v98, %v96
    %101 = vrot.lane.b32.xlu0 %v100, 24
    %v102 = vpop.permute.xlu0 %101
    %vm103 = vcmask 261312
    %104 = vst.msk [vmem:[%s1] sm:$0xff] %vm103, %v102
    %s105 = scalar_lea.vmem [#allocation0], 67
    %v106 = vld [vmem:[%s105] ss:$8 sm:$0xf]
    %s107 = scalar_lea.vmem [#allocation0], 67
    %v108 = vld [vmem:[%s107] ss:$8 sm:$0xf0]
    %vm109 = vcmask 1047556
    %v110 = vsel %vm109, %v108, %v106
    %111 = vrot.lane.b32.xlu0 %v110, 24
    %v112 = vpop.permute.xlu0 %111
    %vm113 = vcmask 261312
    %s114 = scalar_lea.vmem %s1, 8
    %115 = vst.msk [vmem:[%s114] sm:$0xff] %vm113, %v112
    %s116 = scalar_lea.vmem [#allocation0], 2
    %v117 = vld [vmem:[%s116] ss:$8 sm:$0xf]
    %s118 = scalar_lea.vmem [#allocation0], 2
    %v119 = vld [vmem:[%s118] ss:$8 sm:$0xf0]
    %vm120 = vcmask 1047556
    %v121 = vsel %vm120, %v119, %v117
    %122 = vrot.lane.b32.xlu0 %v121, 16
    %v123 = vpop.permute.xlu0 %122
    %vm124 = vcmask 195712
    %125 = vst.msk [vmem:[%s1] sm:$0xff] %vm124, %v123
    %s126 = scalar_lea.vmem [#allocation0], 66
    %v127 = vld [vmem:[%s126] ss:$8 sm:$0xf]
    %s128 = scalar_lea.vmem [#allocation0], 66
    %v129 = vld [vmem:[%s128] ss:$8 sm:$0xf0]
    %vm130 = vcmask 1047556
    %v131 = vsel %vm130, %v129, %v127
    %132 = vrot.lane.b32.xlu0 %v131, 16
    %v133 = vpop.permute.xlu0 %132
    %vm134 = vcmask 195712
    %s135 = scalar_lea.vmem %s1, 8
    %136 = vst.msk [vmem:[%s135] sm:$0xff] %vm134, %v133
    %s137 = scalar_lea.vmem [#allocation0], 1
    %v138 = vld [vmem:[%s137] ss:$8 sm:$0xf]
    %s139 = scalar_lea.vmem [#allocation0], 1
    %v140 = vld [vmem:[%s139] ss:$8 sm:$0xf0]
    %vm141 = vcmask 1047556
    %v142 = vsel %vm141, %v140, %v138
    %143 = vrot.lane.b32.xlu0 %v142, 8
    %v144 = vpop.permute.xlu0 %143
    %vm145 = vcmask 130112
    %146 = vst.msk [vmem:[%s1] sm:$0xff] %vm145, %v144
    %s147 = scalar_lea.vmem [#allocation0], 65
    %v148 = vld [vmem:[%s147] ss:$8 sm:$0xf]
    %s149 = scalar_lea.vmem [#allocation0], 65
    %v150 = vld [vmem:[%s149] ss:$8 sm:$0xf0]
    %vm151 = vcmask 1047556
    %v152 = vsel %vm151, %v150, %v148
    %153 = vrot.lane.b32.xlu0 %v152, 8
    %v154 = vpop.permute.xlu0 %153
    %vm155 = vcmask 130112
    %s156 = scalar_lea.vmem %s1, 8
    %157 = vst.msk [vmem:[%s156] sm:$0xff] %vm155, %v154

// kernel: darvish_forward.1
$region0: #{darvish_forward.1}
  #allocation0 [shape = 'u32[]', space=smem, size = 0x4, offset = 0x4, fixed_abs, tag = 'smem constant byte address 0x4 - core index']
  #allocation1 [shape = 'u32[144,128]{1,0:T(1,128)}', space=vmem, size = 0x12000, scoped, tag = 'internal scratch']
  %s0 = inlined_call_operand.vmem [shape: f32[32,16], index: 0, kind: input, shape index: {}]
  %s1 = inlined_call_operand.vmem [shape: f32[2,16], index: 1, kind: input, shape index: {}]
  %s2 = inlined_call_operand.vmem [shape: f32[16,128], index: 2, kind: input, shape index: {}]
  %s3 = inlined_call_operand.vmem [shape: f32[2,32,112], index: 3, kind: input, shape index: {}]
  %s4 = inlined_call_operand.vmem [shape: f32[2,32,32], index: 4, kind: input, shape index: {}]
  %s5 = inlined_call_operand.vmem [shape: f32[2,32,96], index: 5, kind: input, shape index: {}]
  %s6 = inlined_call_operand.vmem [shape: f32[2,96,32], index: 6, kind: input, shape index: {}]
  %s7 = inlined_call_operand.vmem [shape: f32[2,8,128], index: 7, kind: input, shape index: {}]
  %s8 = inlined_call_operand.vmem [shape: f32[2,32], index: 8, kind: output, shape index: {}]
  %s9 = sld [smem:[#allocation0]]
  $region42: #{darvish_forward.1} parent=0
    _
  %s11 = ssub.s32 1, %s9
  %s12 = scalar_select 0, %s11, %s9
  // Predicated region
  $region2: #{darvish_forward.1} parent=0 // pred_check
    _
  $region3: #{darvish_forward.1} parent=0 // pred_check_branch
    %14 = sbr.rel (0) target = $region5
  $region4: #{darvish_forward.1} parent=0 // pred_region
    _
  $region5: #{darvish_forward.1} parent=0 // pred_fallthru
    _
  // Predicated region
  $region6: #{darvish_forward.1} parent=0 // pred_check
    _
  $region7: #{darvish_forward.1} parent=0 // pred_check_branch
    %16 = sbr.rel (0) target = $region9
  $region8: #{darvish_forward.1} parent=0 // pred_region
    _
  $region9: #{darvish_forward.1} parent=0 // pred_fallthru
    _
  // Predicated region
  $region10: #{darvish_forward.1} parent=0 // pred_check
    _
  $region11: #{darvish_forward.1} parent=0 // pred_check_branch
    %18 = sbr.rel (0) target = $region13
  $region12: #{darvish_forward.1} parent=0 // pred_region
    _
  $region13: #{darvish_forward.1} parent=0 // pred_fallthru
    _
  // Predicated region
  $region14: #{darvish_forward.1} parent=0 // pred_check
    _
  $region15: #{darvish_forward.1} parent=0 // pred_check_branch
    %20 = sbr.rel (0) target = $region17
  $region16: #{darvish_forward.1} parent=0 // pred_region
    _
  $region17: #{darvish_forward.1} parent=0 // pred_fallthru
    _
  // Predicated region
  $region18: #{darvish_forward.1} parent=0 // pred_check
    _
  $region19: #{darvish_forward.1} parent=0 // pred_check_branch
    %22 = sbr.rel (0) target = $region21
  $region20: #{darvish_forward.1} parent=0 // pred_region
    _
  $region21: #{darvish_forward.1} parent=0 // pred_fallthru
    _
  // Predicated region
  $region22: #{darvish_forward.1} parent=0 // pred_check
    _
  $region23: #{darvish_forward.1} parent=0 // pred_check_branch
    %24 = sbr.rel (0) target = $region25
  $region24: #{darvish_forward.1} parent=0 // pred_region
    _
  $region25: #{darvish_forward.1} parent=0 // pred_fallthru
    _
  // Predicated region
  $region26: #{darvish_forward.1} parent=0 // pred_check
    _
  $region27: #{darvish_forward.1} parent=0 // pred_check_branch
    %26 = sbr.rel (0) target = $region29
  $region28: #{darvish_forward.1} parent=0 // pred_region
    _
  $region29: #{darvish_forward.1} parent=0 // pred_fallthru
    _
  // Predicated region
  $region30: #{darvish_forward.1} parent=0 // pred_check
    _
  $region31: #{darvish_forward.1} parent=0 // pred_check_branch
    %28 = sbr.rel (0) target = $region33
  $region32: #{darvish_forward.1} parent=0 // pred_region
    _
  $region33: #{darvish_forward.1} parent=0 // pred_fallthru
    _
  %v29 = vld [vmem:[%s2] sm:$0xff]
  %v30 = vld [vmem:[%s2 + $0x8] sm:$0xff]
  %v31 = vld [vmem:[%s0] sm:$0xff]
  %v32 = vld [vmem:[%s0 + $0x8] sm:$0xff]
  %v33 = vld [vmem:[%s0 + $0x10] sm:$0xff]
  %v34 = vld [vmem:[%s0 + $0x18] sm:$0xff]
  %v35 = vmul.f32 %v29, %v29
  %v36 = vmul.f32 %v30, %v30
  %v37 = vmul.f32 %v29, %v35
  %v38 = vmul.f32 %v30, %v36
  %v39 = vmul.f32 %v37, 0.044715
  %v40 = vmul.f32 %v38, 0.044715
  %v41 = vadd.f32 %v29, %v39
  %v42 = vadd.f32 %v30, %v40
  %v43 = vmul.f32 %v41, 0.7978846
  %v44 = vmul.f32 %v42, 0.7978846
  %v45 = vtanh.pop %v43
  %v46 = vtanh.pop %v44
  %v47 = vadd.f32 %v45, 1.0
  %v48 = vadd.f32 %v46, 1.0
  %v49 = vmul.f32 %v47, 0.5
  %v50 = vmul.f32 %v48, 0.5
  %v51 = vmul.f32 %v29, %v49
  %v52 = vmul.f32 %v30, %v50
  %v53 = vld [vmem:[%s7] sm:$0xff]
  %vm54 = vcmask 261120
  %v55 = vsel %vm54, %v51, 0.0
  %56 = vadd.xlane.f32.xlu0 %v55
  %v57 = vpop.xlane.xlu0 %56
  %v58 = vsel %vm54, %v52, 0.0
  %59 = vadd.xlane.f32.xlu0 %v58
  %v60 = vpop.xlane.xlu0 %59
  %v61 = vrcp.pop 32.0
  %v62 = vmul.f32 %v57, %v61
  %v63 = vmul.f32 %v60, %v61
  %v64 = vsub.f32 %v51, %v62
  %v65 = vsub.f32 %v52, %v63
  %v66 = vmul.f32 %v64, %v64
  %v67 = vmul.f32 %v65, %v65
  %v68 = vsel %vm54, %v66, 0.0
  %69 = vadd.xlane.f32.xlu0 %v68
  %v70 = vpop.xlane.xlu0 %69
  %v71 = vsel %vm54, %v67, 0.0
  %72 = vadd.xlane.f32.xlu0 %v71
  %v73 = vpop.xlane.xlu0 %72
  %v74 = vmul.f32 %v70, %v61
  %v75 = vmul.f32 %v73, %v61
  %v76 = vadd.f32 %v74, 1e-05
  %v77 = vadd.f32 %v75, 1e-05
  %v78 = vrsqrt.pop %v76
  %v79 = vrsqrt.pop %v77
  %v80 = vmul.f32 %v64, %v78
  %v81 = vmul.f32 %v65, %v79
  %v82 = vlaneseq
  %v83 = vshrl.u32 %v82, 7
  %v84 = vsub.s32 2, %v83
  %v85 = vrot.slane %v53, %v84
  %v86 = vmul.f32 %v80, %v85
  %v87 = vmul.f32 %v81, %v85
  %v88 = vlaneseq
  %v89 = vshrl.u32 %v88, 7
  %v90 = vsub.s32 3, %v89
  %v91 = vrot.slane %v53, %v90
  %v92 = vadd.f32 %v86, %v91
  %v93 = vadd.f32 %v87, %v91
  %v94 = vld [vmem:[%s3] sm:$0xff]
  %v95 = vld [vmem:[%s3 + $0x8] sm:$0xff]
  %v96 = vld [vmem:[%s3 + $0x10] sm:$0xff]
  %v97 = vld [vmem:[%s3 + $0x18] sm:$0xff]
  %v98 = vlaneseq
  %v99 = vshrl.u32 %v98, 7
  %v100 = vsub.s32 0, %v99
  %v101 = vrot.slane %v53, %v100
  %v103 = vsel %vm54, %v92, 0
  %v106 = vsel %vm54, %v93, 0
  %108 = vmatprep.subr.mxu0 0.0
  %109 = vmatpush1.msra.mxu0 %v94
  %110 = vmatprep.subr.mxu0 0.0
  %111 = vmatpush1.msra.mxu0 %v95
  %112 = vmatprep.subr.mxu0 0.0
  %113 = vmatpush1.msra.mxu0 %v96
  %114 = vmatprep.subr.mxu0 0.0
  %115 = vmatpush1.msra.mxu0 %v97
  %116 = vmatprep.subr.mxu0 0.0
  %117 = vmatpush1.msra.mxu0 0.0
  %118 = vmatprep.subr.mxu0 0.0
  %119 = vmatpush1.msra.mxu0 0.0
  %120 = vmatprep.subr.mxu0 0.0
  %121 = vmatpush1.msra.mxu0 0.0
  %122 = vmatprep.subr.mxu0 0.0
  %123 = vmatpush1.msra.mxu0 0.0
  %124 = vmatprep.subr.mxu0 0.0
  %125 = vmatpush1.msra.mxu0 0.0
  %126 = vmatprep.subr.mxu0 0.0
  %127 = vmatpush1.msra.mxu0 0.0
  %128 = vmatprep.subr.mxu0 0.0
  %129 = vmatpush1.msra.mxu0 0.0
  %130 = vmatprep.subr.mxu0 0.0
  %131 = vmatpush1.msra.mxu0 0.0
  %132 = vmatprep.subr.mxu0 0.0
  %133 = vmatpush1.msra.mxu0 0.0
  %134 = vmatprep.subr.mxu0 0.0
  %135 = vmatpush1.msra.mxu0 0.0
  %136 = vmatprep.subr.mxu0 0.0
  %137 = vmatpush1.msra.mxu0 0.0
  %138 = vmatprep.subr.mxu0 0.0
  %139 = vmatpush1.msra.mxu0 0.0
  %140 = vmatprep.subr.mxu0 0.0
  %141 = vmatpush1.msra.mxu0 0.0
  %142 = vmatprep.subr.mxu0 0.0
  %143 = vmatpush1.msra.mxu0 0.0
  %144 = vmatprep.subr.mxu0 0.0
  %145 = vmatpush1.msra.mxu0 0.0
  %146 = vmatprep.subr.mxu0 0.0
  %147 = vmatpush1.msra.mxu0 0.0
  %148 = vmatprep.subr.mxu0 0.0
  %149 = vmatpush1.msra.mxu0 0.0
  %150 = vmatprep.subr.mxu0 0.0
  %151 = vmatpush1.msra.mxu0 0.0
  %152 = vmatprep.subr.mxu0 0.0
  %153 = vmatpush1.msra.mxu0 0.0
  %154 = vmatprep.subr.mxu0 0.0
  %155 = vmatpush1.msra.mxu0 0.0
  %156 = vmatprep.subr.mxu0 0.0
  %157 = vmatpush1.msra.mxu0 0.0
  %158 = vmatprep.subr.mxu0 0.0
  %159 = vmatpush1.msra.mxu0 0.0
  %160 = vmatprep.subr.mxu0 0.0
  %161 = vmatpush1.msra.mxu0 0.0
  %162 = vmatprep.subr.mxu0 0.0
  %163 = vmatpush1.msra.mxu0 0.0
  %164 = vmatprep.subr.mxu0 0.0
  %165 = vmatpush1.msra.mxu0 0.0
  %166 = vmatprep.subr.mxu0 0.0
  %167 = vmatpush1.msra.mxu0 0.0
  %168 = vmatprep.subr.mxu0 0.0
  %169 = vmatpush1.msra.mxu0 0.0
  %170 = vmatprep.subr.mxu0 0.0
  %171 = vmatpush1.msra.mxu0 0.0
  %172 = vmatprep.mubr.f32.mxu0 0.0
  %173 = vmatmul.mubr.f32.gmra.mrb[0].mxu0 %v103
  %v174 = vpop.f32.mrb[0].mxu0
  %v175 = vadd.f32 %v101, %v174
  %v176 = vpop.f32.mrb[0].mxu0
  %177 = vmatprep.mubr.f32.mxu0 0.0
  %178 = vmatmul.mubr.f32.gmra.mrb[0].mxu0 %v106
  %v179 = vpop.f32.mrb[0].mxu0
  %v180 = vadd.f32 %v101, %v179
  %v181 = vpop.f32.mrb[0].mxu0
  %182 = vdwg.mxu0
  %185 = vrot.lane.b32.xlu0 %v29, 96
  %v186 = vpop.permute.xlu0 %185
  %187 = vrot.lane.b32.xlu0 %v30, 96
  %v188 = vpop.permute.xlu0 %187
  %v191 = vmul.f32 %v175, %v186
  %v192 = vmul.f32 %v180, %v188
  %v193 = vmul.f32 %v175, %v29
  %v194 = vmul.f32 %v180, %v30
  %197 = vrot.lane.b32.xlu0 %v193, 64
  %v198 = vpop.permute.xlu0 %197
  %199 = vrot.lane.b32.xlu0 %v194, 64
  %v200 = vpop.permute.xlu0 %199
  %v203 = vadd.f32 %v191, %v198
  %v204 = vadd.f32 %v192, %v200
  %205 = vrot.lane.b32.xlu0 %v29, 64
  %v206 = vpop.permute.xlu0 %205
  %207 = vrot.lane.b32.xlu0 %v30, 64
  %v208 = vpop.permute.xlu0 %207
  %v211 = vmul.f32 %v175, %v206
  %v212 = vmul.f32 %v180, %v208
  %213 = vrot.lane.b32.xlu0 %v29, 112
  %v214 = vpop.permute.xlu0 %213
  %215 = vrot.lane.b32.xlu0 %v30, 112
  %v216 = vpop.permute.xlu0 %215
  %v219 = vmul.f32 %v175, %v214
  %v220 = vmul.f32 %v180, %v216
  %223 = vrot.lane.b32.xlu0 %v219, 64
  %v224 = vpop.permute.xlu0 %223
  %225 = vrot.lane.b32.xlu0 %v220, 64
  %v226 = vpop.permute.xlu0 %225
  %v229 = vadd.f32 %v211, %v224
  %v230 = vadd.f32 %v212, %v226
  %233 = vrot.lane.b32.xlu0 %v203, 120
  %v234 = vpop.permute.xlu0 %233
  %235 = vrot.lane.b32.xlu0 %v204, 120
  %v236 = vpop.permute.xlu0 %235
  %239 = vrot.lane.b32.xlu0 %v229, 96
  %v240 = vpop.permute.xlu0 %239
  %241 = vrot.lane.b32.xlu0 %v230, 96
  %v242 = vpop.permute.xlu0 %241
  %vm243 = vcmask 64512
  %v244 = vsel %vm243, %v203, 0
  %v246 = vsel %vm243, %v204, 0
  %v248 = vsel %vm243, %v234, 0
  %v250 = vsel %vm243, %v236, 0
  %v252 = vsel %vm243, %v240, 0
  %v254 = vsel %vm243, %v242, 0
  %256 = vmatprep.subr.mxu0 0.0
  %257 = vmatpush1.xpose.msra.mxu0 %v252
  %258 = vmatprep.subr.mxu0 0.0
  %259 = vmatpush1.xpose.msra.mxu0 %v254
  %260 = vmatprep.subr.mxu0 0.0
  %261 = vmatpush1.xpose.msra.mxu0 0.0
  %262 = vmatprep.subr.mxu0 0.0
  %263 = vmatpush1.xpose.msra.mxu0 0.0
  %264 = vmatprep.subr.mxu0 0.0
  %265 = vmatpush1.xpose.msra.mxu0 0.0
  %266 = vmatprep.subr.mxu0 0.0
  %267 = vmatpush1.xpose.msra.mxu0 0.0
  %268 = vmatprep.subr.mxu0 0.0
  %269 = vmatpush1.xpose.msra.mxu0 0.0
  %270 = vmatprep.subr.mxu0 0.0
  %271 = vmatpush1.xpose.msra.mxu0 0.0
  %272 = vmatprep.subr.mxu0 0.0
  %273 = vmatpush1.xpose.msra.mxu0 0.0
  %274 = vmatprep.subr.mxu0 0.0
  %275 = vmatpush1.xpose.msra.mxu0 0.0
  %276 = vmatprep.subr.mxu0 0.0
  %277 = vmatpush1.xpose.msra.mxu0 0.0
  %278 = vmatprep.subr.mxu0 0.0
  %279 = vmatpush1.xpose.msra.mxu0 0.0
  %280 = vmatprep.subr.mxu0 0.0
  %281 = vmatpush1.xpose.msra.mxu0 0.0
  %282 = vmatprep.subr.mxu0 0.0
  %283 = vmatpush1.xpose.msra.mxu0 0.0
  %284 = vmatprep.subr.mxu0 0.0
  %285 = vmatpush1.xpose.msra.mxu0 0.0
  %286 = vmatprep.subr.mxu0 0.0
  %287 = vmatpush1.xpose.msra.mxu0 0.0
  %288 = vmatprep.subr.mxu0 0.0
  %289 = vmatpush1.xpose.msra.mxu0 0.0
  %290 = vmatprep.subr.mxu0 0.0
  %291 = vmatpush1.xpose.msra.mxu0 0.0
  %292 = vmatprep.subr.mxu0 0.0
  %293 = vmatpush1.xpose.msra.mxu0 0.0
  %294 = vmatprep.subr.mxu0 0.0
  %295 = vmatpush1.xpose.msra.mxu0 0.0
  %296 = vmatprep.subr.mxu0 0.0
  %297 = vmatpush1.xpose.msra.mxu0 0.0
  %298 = vmatprep.subr.mxu0 0.0
  %299 = vmatpush1.xpose.msra.mxu0 0.0
  %300 = vmatprep.subr.mxu0 0.0
  %301 = vmatpush1.xpose.msra.mxu0 0.0
  %302 = vmatprep.subr.mxu0 0.0
  %303 = vmatpush1.xpose.msra.mxu0 0.0
  %304 = vmatprep.subr.mxu0 0.0
  %305 = vmatpush1.xpose.msra.mxu0 0.0
  %306 = vmatprep.subr.mxu0 0.0
  %307 = vmatpush1.xpose.msra.mxu0 0.0
  %308 = vmatprep.subr.mxu0 0.0
  %309 = vmatpush1.xpose.msra.mxu0 0.0
  %310 = vmatprep.subr.mxu0 0.0
  %311 = vmatpush1.xpose.msra.mxu0 0.0
  %312 = vmatprep.subr.mxu0 0.0
  %313 = vmatpush1.xpose.msra.mxu0 0.0
  %314 = vmatprep.subr.mxu0 0.0
  %315 = vmatpush1.xpose.msra.mxu0 0.0
  %316 = vmatprep.subr.mxu0 0.0
  %317 = vmatpush1.xpose.msra.mxu0 0.0
  %318 = vmatprep.subr.mxu0 0.0
  %319 = vmatpush1.xpose.msra.mxu0 0.0
  %320 = vmatprep.mubr.f32.mxu0 0.0
  %321 = vmatmul.mubr.f32.gmra.mrb[0].mxu0 %v244
  %v322 = vpop.f32.mrb[0].mxu0
  %v323 = vadd.f32 %v31, %v322
  %v324 = vpop.f32.mrb[0].mxu0
  %325 = vmatprep.mubr.f32.mxu0 0.0
  %326 = vmatmul.mubr.f32.gmra.mrb[0].mxu0 %v246
  %v327 = vpop.f32.mrb[0].mxu0
  %v328 = vadd.f32 %v32, %v327
  %v329 = vpop.f32.mrb[0].mxu0
  %330 = vmatprep.mubr.f32.mxu0 0.0
  %331 = vmatmul.mubr.f32.gmra.mrb[0].mxu0 %v248
  %v332 = vpop.f32.mrb[0].mxu0
  %v333 = vadd.f32 %v33, %v332
  %v334 = vpop.f32.mrb[0].mxu0
  %335 = vmatprep.mubr.f32.mxu0 0.0
  %336 = vmatmul.mubr.f32.gmra.mrb[0].mxu0 %v250
  %v337 = vpop.f32.mrb[0].mxu0
  %v338 = vadd.f32 %v34, %v337
  %v339 = vpop.f32.mrb[0].mxu0
  %340 = vdwg.mxu0
  %vm341 = vcmask 130048
  %v342 = vsel %vm341, %v323, -inf
  %343 = vmax.xlane.f32.xlu0 %v342
  %v344 = vpop.xlane.xlu0 %343
  %v345 = vsel %vm341, %v328, -inf
  %346 = vmax.xlane.f32.xlu0 %v345
  %v347 = vpop.xlane.xlu0 %346
  %v348 = vsel %vm341, %v333, -inf
  %349 = vmax.xlane.f32.xlu0 %v348
  %v350 = vpop.xlane.xlu0 %349
  %v351 = vsel %vm341, %v338, -inf
  %352 = vmax.xlane.f32.xlu0 %v351
  %v353 = vpop.xlane.xlu0 %352
  %v354 = vsub.f32 %v323, %v344
  %v355 = vsub.f32 %v328, %v347
  %v356 = vsub.f32 %v333, %v350
  %v357 = vsub.f32 %v338, %v353
  %v358 = vmul.f32 %v354, 1.442695
  %v359 = vpow.pop %v358
  %v360 = vmul.f32 %v355, 1.442695
  %v361 = vpow.pop %v360
  %v362 = vmul.f32 %v356, 1.442695
  %v363 = vpow.pop %v362
  %v364 = vmul.f32 %v357, 1.442695
  %v365 = vpow.pop %v364
  %v366 = vsel %vm341, %v359, 0.0
  %367 = vadd.xlane.f32.xlu0 %v366
  %v368 = vpop.xlane.xlu0 %367
  %v369 = vsel %vm341, %v361, 0.0
  %370 = vadd.xlane.f32.xlu0 %v369
  %v371 = vpop.xlane.xlu0 %370
  %v372 = vsel %vm341, %v363, 0.0
  %373 = vadd.xlane.f32.xlu0 %v372
  %v374 = vpop.xlane.xlu0 %373
  %v375 = vsel %vm341, %v365, 0.0
  %376 = vadd.xlane.f32.xlu0 %v375
  %v377 = vpop.xlane.xlu0 %376
  %v378 = vrcp.pop %v368
  %v379 = vrcp.pop %v371
  %v380 = vrcp.pop %v374
  %v381 = vrcp.pop %v377
  %v382 = vmul.f32 %v359, %v378
  %v383 = vmul.f32 %v361, %v379
  %v384 = vmul.f32 %v363, %v380
  %v385 = vmul.f32 %v365, %v381
  %388 = vrot.lane.b32.xlu0 %v175, 80
  %v389 = vpop.permute.xlu0 %388
  %390 = vrot.lane.b32.xlu0 %v180, 80
  %v391 = vpop.permute.xlu0 %390
  %v395 = vsel %vm341, %v382, 0
  %v398 = vsel %vm341, %v383, 0
  %v401 = vsel %vm341, %v384, 0
  %v404 = vsel %vm341, %v385, 0
  %406 = vmatprep.subr.mxu0 0.0
  %407 = vmatpush1.msra.mxu0 %v389
  %408 = vmatprep.subr.mxu0 0.0
  %409 = vmatpush1.msra.mxu0 %v391
  %410 = vmatprep.subr.mxu0 0.0
  %411 = vmatpush1.msra.mxu0 0.0
  %412 = vmatprep.subr.mxu0 0.0
  %413 = vmatpush1.msra.mxu0 0.0
  %414 = vmatprep.subr.mxu0 0.0
  %415 = vmatpush1.msra.mxu0 0.0
  %416 = vmatprep.subr.mxu0 0.0
  %417 = vmatpush1.msra.mxu0 0.0
  %418 = vmatprep.subr.mxu0 0.0
  %419 = vmatpush1.msra.mxu0 0.0
  %420 = vmatprep.subr.mxu0 0.0
  %421 = vmatpush1.msra.mxu0 0.0
  %422 = vmatprep.subr.mxu0 0.0
  %423 = vmatpush1.msra.mxu0 0.0
  %424 = vmatprep.subr.mxu0 0.0
  %425 = vmatpush1.msra.mxu0 0.0
  %426 = vmatprep.subr.mxu0 0.0
  %427 = vmatpush1.msra.mxu0 0.0
  %428 = vmatprep.subr.mxu0 0.0
  %429 = vmatpush1.msra.mxu0 0.0
  %430 = vmatprep.subr.mxu0 0.0
  %431 = vmatpush1.msra.mxu0 0.0
  %432 = vmatprep.subr.mxu0 0.0
  %433 = vmatpush1.msra.mxu0 0.0
  %434 = vmatprep.subr.mxu0 0.0
  %435 = vmatpush1.msra.mxu0 0.0
  %436 = vmatprep.subr.mxu0 0.0
  %437 = vmatpush1.msra.mxu0 0.0
  %438 = vmatprep.subr.mxu0 0.0
  %439 = vmatpush1.msra.mxu0 0.0
  %440 = vmatprep.subr.mxu0 0.0
  %441 = vmatpush1.msra.mxu0 0.0
  %442 = vmatprep.subr.mxu0 0.0
  %443 = vmatpush1.msra.mxu0 0.0
  %444 = vmatprep.subr.mxu0 0.0
  %445 = vmatpush1.msra.mxu0 0.0
  %446 = vmatprep.subr.mxu0 0.0
  %447 = vmatpush1.msra.mxu0 0.0
  %448 = vmatprep.subr.mxu0 0.0
  %449 = vmatpush1.msra.mxu0 0.0
  %450 = vmatprep.subr.mxu0 0.0
  %451 = vmatpush1.msra.mxu0 0.0
  %452 = vmatprep.subr.mxu0 0.0
  %453 = vmatpush1.msra.mxu0 0.0
  %454 = vmatprep.subr.mxu0 0.0
  %455 = vmatpush1.msra.mxu0 0.0
  %456 = vmatprep.subr.mxu0 0.0
  %457 = vmatpush1.msra.mxu0 0.0
  %458 = vmatprep.subr.mxu0 0.0
  %459 = vmatpush1.msra.mxu0 0.0
  %460 = vmatprep.subr.mxu0 0.0
  %461 = vmatpush1.msra.mxu0 0.0
  %462 = vmatprep.subr.mxu0 0.0
  %463 = vmatpush1.msra.mxu0 0.0
  %464 = vmatprep.subr.mxu0 0.0
  %465 = vmatpush1.msra.mxu0 0.0
  %466 = vmatprep.subr.mxu0 0.0
  %467 = vmatpush1.msra.mxu0 0.0
  %468 = vmatprep.subr.mxu0 0.0
  %469 = vmatpush1.msra.mxu0 0.0
  %470 = vmatprep.mubr.f32.mxu0 0.0
  %471 = vmatmul.mubr.f32.gmra.mrb[0].mxu0 %v395
  %v472 = vpop.f32.mrb[0].mxu0
  %v473 = vadd.f32 0.0, %v472
  %v474 = vpop.f32.mrb[0].mxu0
  %475 = vmatprep.mubr.f32.mxu0 0.0
  %476 = vmatmul.mubr.f32.gmra.mrb[0].mxu0 %v398
  %v477 = vpop.f32.mrb[0].mxu0
  %v478 = vadd.f32 0.0, %v477
  %v479 = vpop.f32.mrb[0].mxu0
  %480 = vmatprep.mubr.f32.mxu0 0.0
  %481 = vmatmul.mubr.f32.gmra.mrb[0].mxu0 %v401
  %v482 = vpop.f32.mrb[0].mxu0
  %v483 = vadd.f32 0.0, %v482
  %v484 = vpop.f32.mrb[0].mxu0
  %485 = vmatprep.mubr.f32.mxu0 0.0
  %486 = vmatmul.mubr.f32.gmra.mrb[0].mxu0 %v404
  %v487 = vpop.f32.mrb[0].mxu0
  %v488 = vadd.f32 0.0, %v487
  %v489 = vpop.f32.mrb[0].mxu0
  %490 = vdwg.mxu0
  %491 = vrot.lane.b32.xlu0 %v203, 112
  %v492 = vpop.permute.xlu0 %491
  %493 = vrot.lane.b32.xlu0 %v204, 112
  %v494 = vpop.permute.xlu0 %493
  %495 = vrot.lane.b32.xlu0 %v234, 112
  %v496 = vpop.permute.xlu0 %495
  %497 = vrot.lane.b32.xlu0 %v236, 112
  %v498 = vpop.permute.xlu0 %497
  %499 = vrot.lane.b32.xlu0 %v229, 88
  %v500 = vpop.permute.xlu0 %499
  %501 = vrot.lane.b32.xlu0 %v230, 88
  %v502 = vpop.permute.xlu0 %501
  %v503 = vsel %vm243, %v492, 0
  %v505 = vsel %vm243, %v494, 0
  %v507 = vsel %vm243, %v496, 0
  %v509 = vsel %vm243, %v498, 0
  %v511 = vsel %vm243, %v500, 0
  %v513 = vsel %vm243, %v502, 0
  %515 = vmatprep.subr.mxu0 0.0
  %516 = vmatpush1.xpose.msra.mxu0 %v511
  %517 = vmatprep.subr.mxu0 0.0
  %518 = vmatpush1.xpose.msra.mxu0 %v513
  %519 = vmatprep.subr.mxu0 0.0
  %520 = vmatpush1.xpose.msra.mxu0 0.0
  %521 = vmatprep.subr.mxu0 0.0
  %522 = vmatpush1.xpose.msra.mxu0 0.0
  %523 = vmatprep.subr.mxu0 0.0
  %524 = vmatpush1.xpose.msra.mxu0 0.0
  %525 = vmatprep.subr.mxu0 0.0
  %526 = vmatpush1.xpose.msra.mxu0 0.0
  %527 = vmatprep.subr.mxu0 0.0
  %528 = vmatpush1.xpose.msra.mxu0 0.0
  %529 = vmatprep.subr.mxu0 0.0
  %530 = vmatpush1.xpose.msra.mxu0 0.0
  %531 = vmatprep.subr.mxu0 0.0
  %532 = vmatpush1.xpose.msra.mxu0 0.0
  %533 = vmatprep.subr.mxu0 0.0
  %534 = vmatpush1.xpose.msra.mxu0 0.0
  %535 = vmatprep.subr.mxu0 0.0
  %536 = vmatpush1.xpose.msra.mxu0 0.0
  %537 = vmatprep.subr.mxu0 0.0
  %538 = vmatpush1.xpose.msra.mxu0 0.0
  %539 = vmatprep.subr.mxu0 0.0
  %540 = vmatpush1.xpose.msra.mxu0 0.0
  %541 = vmatprep.subr.mxu0 0.0
  %542 = vmatpush1.xpose.msra.mxu0 0.0
  %543 = vmatprep.subr.mxu0 0.0
  %544 = vmatpush1.xpose.msra.mxu0 0.0
  %545 = vmatprep.subr.mxu0 0.0
  %546 = vmatpush1.xpose.msra.mxu0 0.0
  %547 = vmatprep.subr.mxu0 0.0
  %548 = vmatpush1.xpose.msra.mxu0 0.0
  %549 = vmatprep.subr.mxu0 0.0
  %550 = vmatpush1.xpose.msra.mxu0 0.0
  %551 = vmatprep.subr.mxu0 0.0
  %552 = vmatpush1.xpose.msra.mxu0 0.0
  %553 = vmatprep.subr.mxu0 0.0
  %554 = vmatpush1.xpose.msra.mxu0 0.0
  %555 = vmatprep.subr.mxu0 0.0
  %556 = vmatpush1.xpose.msra.mxu0 0.0
  %557 = vmatprep.subr.mxu0 0.0
  %558 = vmatpush1.xpose.msra.mxu0 0.0
  %559 = vmatprep.subr.mxu0 0.0
  %560 = vmatpush1.xpose.msra.mxu0 0.0
  %561 = vmatprep.subr.mxu0 0.0
  %562 = vmatpush1.xpose.msra.mxu0 0.0
  %563 = vmatprep.subr.mxu0 0.0
  %564 = vmatpush1.xpose.msra.mxu0 0.0
  %565 = vmatprep.subr.mxu0 0.0
  %566 = vmatpush1.xpose.msra.mxu0 0.0
  %567 = vmatprep.subr.mxu0 0.0
  %568 = vmatpush1.xpose.msra.mxu0 0.0
  %569 = vmatprep.subr.mxu0 0.0
  %570 = vmatpush1.xpose.msra.mxu0 0.0
  %571 = vmatprep.subr.mxu0 0.0
  %572 = vmatpush1.xpose.msra.mxu0 0.0
  %573 = vmatprep.subr.mxu0 0.0
  %574 = vmatpush1.xpose.msra.mxu0 0.0
  %575 = vmatprep.subr.mxu0 0.0
  %576 = vmatpush1.xpose.msra.mxu0 0.0
  %577 = vmatprep.subr.mxu0 0.0
  %578 = vmatpush1.xpose.msra.mxu0 0.0
  %579 = vmatprep.mubr.f32.mxu0 0.0
  %580 = vmatmul.mubr.f32.gmra.mrb[0].mxu0 %v503
  %v581 = vpop.f32.mrb[0].mxu0
  %v582 = vadd.f32 %v31, %v581
  %v583 = vpop.f32.mrb[0].mxu0
  %584 = vmatprep.mubr.f32.mxu0 0.0
  %585 = vmatmul.mubr.f32.gmra.mrb[0].mxu0 %v505
  %v586 = vpop.f32.mrb[0].mxu0
  %v587 = vadd.f32 %v32, %v586
  %v588 = vpop.f32.mrb[0].mxu0
  %589 = vmatprep.mubr.f32.mxu0 0.0
  %590 = vmatmul.mubr.f32.gmra.mrb[0].mxu0 %v507
  %v591 = vpop.f32.mrb[0].mxu0
  %v592 = vadd.f32 %v33, %v591
  %v593 = vpop.f32.mrb[0].mxu0
  %594 = vmatprep.mubr.f32.mxu0 0.0
  %595 = vmatmul.mubr.f32.gmra.mrb[0].mxu0 %v509
  %v596 = vpop.f32.mrb[0].mxu0
  %v597 = vadd.f32 %v34, %v596
  %v598 = vpop.f32.mrb[0].mxu0
  %599 = vdwg.mxu0
  %v600 = vsel %vm341, %v582, -inf
  %601 = vmax.xlane.f32.xlu0 %v600
  %v602 = vpop.xlane.xlu0 %601
  %v603 = vsel %vm341, %v587, -inf
  %604 = vmax.xlane.f32.xlu0 %v603
  %v605 = vpop.xlane.xlu0 %604
  %v606 = vsel %vm341, %v592, -inf
  %607 = vmax.xlane.f32.xlu0 %v606
  %v608 = vpop.xlane.xlu0 %607
  %v609 = vsel %vm341, %v597, -inf
  %610 = vmax.xlane.f32.xlu0 %v609
  %v611 = vpop.xlane.xlu0 %610
  %v612 = vsub.f32 %v582, %v602
  %v613 = vsub.f32 %v587, %v605
  %v614 = vsub.f32 %v592, %v608
  %v615 = vsub.f32 %v597, %v611
  %v616 = vmul.f32 %v612, 1.442695
  %v617 = vpow.pop %v616
  %v618 = vmul.f32 %v613, 1.442695
  %v619 = vpow.pop %v618
  %v620 = vmul.f32 %v614, 1.442695
  %v621 = vpow.pop %v620
  %v622 = vmul.f32 %v615, 1.442695
  %v623 = vpow.pop %v622
  %v624 = vsel %vm341, %v617, 0.0
  %625 = vadd.xlane.f32.xlu0 %v624
  %v626 = vpop.xlane.xlu0 %625
  %v627 = vsel %vm341, %v619, 0.0
  %628 = vadd.xlane.f32.xlu0 %v627
  %v629 = vpop.xlane.xlu0 %628
  %v630 = vsel %vm341, %v621, 0.0
  %631 = vadd.xlane.f32.xlu0 %v630
  %v632 = vpop.xlane.xlu0 %631
  %v633 = vsel %vm341, %v623, 0.0
  %634 = vadd.xlane.f32.xlu0 %v633
  %v635 = vpop.xlane.xlu0 %634
  %v636 = vrcp.pop %v626
  %v637 = vrcp.pop %v629
  %v638 = vrcp.pop %v632
  %v639 = vrcp.pop %v635
  %v640 = vmul.f32 %v617, %v636
  %v641 = vmul.f32 %v619, %v637
  %v642 = vmul.f32 %v621, %v638
  %v643 = vmul.f32 %v623, %v639
  %644 = vrot.lane.b32.xlu0 %v175, 72
  %v645 = vpop.permute.xlu0 %644
  %646 = vrot.lane.b32.xlu0 %v180, 72
  %v647 = vpop.permute.xlu0 %646
  %v651 = vsel %vm341, %v640, 0
  %v654 = vsel %vm341, %v641, 0
  %v657 = vsel %vm341, %v642, 0
  %v660 = vsel %vm341, %v643, 0
  %662 = vmatprep.subr.mxu0 0.0
  %663 = vmatpush1.msra.mxu0 %v645
  %664 = vmatprep.subr.mxu0 0.0
  %665 = vmatpush1.msra.mxu0 %v647
  %666 = vmatprep.subr.mxu0 0.0
  %667 = vmatpush1.msra.mxu0 0.0
  %668 = vmatprep.subr.mxu0 0.0
  %669 = vmatpush1.msra.mxu0 0.0
  %670 = vmatprep.subr.mxu0 0.0
  %671 = vmatpush1.msra.mxu0 0.0
  %672 = vmatprep.subr.mxu0 0.0
  %673 = vmatpush1.msra.mxu0 0.0
  %674 = vmatprep.subr.mxu0 0.0
  %675 = vmatpush1.msra.mxu0 0.0
  %676 = vmatprep.subr.mxu0 0.0
  %677 = vmatpush1.msra.mxu0 0.0
  %678 = vmatprep.subr.mxu0 0.0
  %679 = vmatpush1.msra.mxu0 0.0
  %680 = vmatprep.subr.mxu0 0.0
  %681 = vmatpush1.msra.mxu0 0.0
  %682 = vmatprep.subr.mxu0 0.0
  %683 = vmatpush1.msra.mxu0 0.0
  %684 = vmatprep.subr.mxu0 0.0
  %685 = vmatpush1.msra.mxu0 0.0
  %686 = vmatprep.subr.mxu0 0.0
  %687 = vmatpush1.msra.mxu0 0.0
  %688 = vmatprep.subr.mxu0 0.0
  %689 = vmatpush1.msra.mxu0 0.0
  %690 = vmatprep.subr.mxu0 0.0
  %691 = vmatpush1.msra.mxu0 0.0
  %692 = vmatprep.subr.mxu0 0.0
  %693 = vmatpush1.msra.mxu0 0.0
  %694 = vmatprep.subr.mxu0 0.0
  %695 = vmatpush1.msra.mxu0 0.0
  %696 = vmatprep.subr.mxu0 0.0
  %697 = vmatpush1.msra.mxu0 0.0
  %698 = vmatprep.subr.mxu0 0.0
  %699 = vmatpush1.msra.mxu0 0.0
  %700 = vmatprep.subr.mxu0 0.0
  %701 = vmatpush1.msra.mxu0 0.0
  %702 = vmatprep.subr.mxu0 0.0
  %703 = vmatpush1.msra.mxu0 0.0
  %704 = vmatprep.subr.mxu0 0.0
  %705 = vmatpush1.msra.mxu0 0.0
  %706 = vmatprep.subr.mxu0 0.0
  %707 = vmatpush1.msra.mxu0 0.0
  %708 = vmatprep.subr.mxu0 0.0
  %709 = vmatpush1.msra.mxu0 0.0
  %710 = vmatprep.subr.mxu0 0.0
  %711 = vmatpush1.msra.mxu0 0.0
  %712 = vmatprep.subr.mxu0 0.0
  %713 = vmatpush1.msra.mxu0 0.0
  %714 = vmatprep.subr.mxu0 0.0
  %715 = vmatpush1.msra.mxu0 0.0
  %716 = vmatprep.subr.mxu0 0.0
  %717 = vmatpush1.msra.mxu0 0.0
  %718 = vmatprep.subr.mxu0 0.0
  %719 = vmatpush1.msra.mxu0 0.0
  %720 = vmatprep.subr.mxu0 0.0
  %721 = vmatpush1.msra.mxu0 0.0
  %722 = vmatprep.subr.mxu0 0.0
  %723 = vmatpush1.msra.mxu0 0.0
  %724 = vmatprep.subr.mxu0 0.0
  %725 = vmatpush1.msra.mxu0 0.0
  %726 = vmatprep.mubr.f32.mxu0 0.0
  %727 = vmatmul.mubr.f32.gmra.mrb[0].mxu0 %v651
  %v728 = vpop.f32.mrb[0].mxu0
  %v729 = vadd.f32 0.0, %v728
  %v730 = vpop.f32.mrb[0].mxu0
  %731 = vmatprep.mubr.f32.mxu0 0.0
  %732 = vmatmul.mubr.f32.gmra.mrb[0].mxu0 %v654
  %v733 = vpop.f32.mrb[0].mxu0
  %v734 = vadd.f32 0.0, %v733
  %v735 = vpop.f32.mrb[0].mxu0
  %736 = vmatprep.mubr.f32.mxu0 0.0
  %737 = vmatmul.mubr.f32.gmra.mrb[0].mxu0 %v657
  %v738 = vpop.f32.mrb[0].mxu0
  %v739 = vadd.f32 0.0, %v738
  %v740 = vpop.f32.mrb[0].mxu0
  %741 = vmatprep.mubr.f32.mxu0 0.0
  %742 = vmatmul.mubr.f32.gmra.mrb[0].mxu0 %v660
  %v743 = vpop.f32.mrb[0].mxu0
  %v744 = vadd.f32 0.0, %v743
  %v745 = vpop.f32.mrb[0].mxu0
  %746 = vdwg.mxu0
  %749 = vrot.lane.b32.xlu0 %v483, 8
  %v750 = vpop.permute.xlu0 %749
  %751 = vrot.lane.b32.xlu0 %v488, 8
  %v752 = vpop.permute.xlu0 %751
  %757 = vrot.lane.b32.xlu0 %v729, 16
  %v758 = vpop.permute.xlu0 %757
  %759 = vrot.lane.b32.xlu0 %v734, 16
  %v760 = vpop.permute.xlu0 %759
  %765 = vrot.lane.b32.xlu0 %v739, 24
  %v766 = vpop.permute.xlu0 %765
  %767 = vrot.lane.b32.xlu0 %v744, 24
  %v768 = vpop.permute.xlu0 %767
  %v771 = vsel %vm243, %v473, %v750
  %v772 = vsel %vm243, %v478, %v752
  %v773 = vsel %vm341, %v771, %v758
  %v774 = vsel %vm341, %v772, %v760
  %vm775 = vcmask 195584
  %v776 = vsel %vm775, %v773, %v766
  %v777 = vsel %vm775, %v774, %v768
  %v778 = vld [vmem:[%s4] sm:$0xff]
  %v779 = vld [vmem:[%s4 + $0x8] sm:$0xff]
  %v780 = vld [vmem:[%s4 + $0x10] sm:$0xff]
  %v781 = vld [vmem:[%s4 + $0x18] sm:$0xff]
  %v783 = vsel %vm54, %v776, 0
  %v786 = vsel %vm54, %v777, 0
  %788 = vmatprep.subr.mxu0 0.0
  %789 = vmatpush1.msra.mxu0 %v778
  %790 = vmatprep.subr.mxu0 0.0
  %791 = vmatpush1.msra.mxu0 %v779
  %792 = vmatprep.subr.mxu0 0.0
  %793 = vmatpush1.msra.mxu0 %v780
  %794 = vmatprep.subr.mxu0 0.0
  %795 = vmatpush1.msra.mxu0 %v781
  %796 = vmatprep.subr.mxu0 0.0
  %797 = vmatpush1.msra.mxu0 0.0
  %798 = vmatprep.subr.mxu0 0.0
  %799 = vmatpush1.msra.mxu0 0.0
  %800 = vmatprep.subr.mxu0 0.0
  %801 = vmatpush1.msra.mxu0 0.0
  %802 = vmatprep.subr.mxu0 0.0
  %803 = vmatpush1.msra.mxu0 0.0
  %804 = vmatprep.subr.mxu0 0.0
  %805 = vmatpush1.msra.mxu0 0.0
  %806 = vmatprep.subr.mxu0 0.0
  %807 = vmatpush1.msra.mxu0 0.0
  %808 = vmatprep.subr.mxu0 0.0
  %809 = vmatpush1.msra.mxu0 0.0
  %810 = vmatprep.subr.mxu0 0.0
  %811 = vmatpush1.msra.mxu0 0.0
  %812 = vmatprep.subr.mxu0 0.0
  %813 = vmatpush1.msra.mxu0 0.0
  %814 = vmatprep.subr.mxu0 0.0
  %815 = vmatpush1.msra.mxu0 0.0
  %816 = vmatprep.subr.mxu0 0.0
  %817 = vmatpush1.msra.mxu0 0.0
  %818 = vmatprep.subr.mxu0 0.0
  %819 = vmatpush1.msra.mxu0 0.0
  %820 = vmatprep.subr.mxu0 0.0
  %821 = vmatpush1.msra.mxu0 0.0
  %822 = vmatprep.subr.mxu0 0.0
  %823 = vmatpush1.msra.mxu0 0.0
  %824 = vmatprep.subr.mxu0 0.0
  %825 = vmatpush1.msra.mxu0 0.0
  %826 = vmatprep.subr.mxu0 0.0
  %827 = vmatpush1.msra.mxu0 0.0
  %828 = vmatprep.subr.mxu0 0.0
  %829 = vmatpush1.msra.mxu0 0.0
  %830 = vmatprep.subr.mxu0 0.0
  %831 = vmatpush1.msra.mxu0 0.0
  %832 = vmatprep.subr.mxu0 0.0
  %833 = vmatpush1.msra.mxu0 0.0
  %834 = vmatprep.subr.mxu0 0.0
  %835 = vmatpush1.msra.mxu0 0.0
  %836 = vmatprep.subr.mxu0 0.0
  %837 = vmatpush1.msra.mxu0 0.0
  %838 = vmatprep.subr.mxu0 0.0
  %839 = vmatpush1.msra.mxu0 0.0
  %840 = vmatprep.subr.mxu0 0.0
  %841 = vmatpush1.msra.mxu0 0.0
  %842 = vmatprep.subr.mxu0 0.0
  %843 = vmatpush1.msra.mxu0 0.0
  %844 = vmatprep.subr.mxu0 0.0
  %845 = vmatpush1.msra.mxu0 0.0
  %846 = vmatprep.subr.mxu0 0.0
  %847 = vmatpush1.msra.mxu0 0.0
  %848 = vmatprep.subr.mxu0 0.0
  %849 = vmatpush1.msra.mxu0 0.0
  %850 = vmatprep.subr.mxu0 0.0
  %851 = vmatpush1.msra.mxu0 0.0
  %852 = vmatprep.mubr.f32.mxu0 0.0
  %853 = vmatmul.mubr.f32.gmra.mrb[0].mxu0 %v783
  %v854 = vpop.f32.mrb[0].mxu0
  %v855 = vadd.f32 0.0, %v854
  %v856 = vpop.f32.mrb[0].mxu0
  %857 = vmatprep.mubr.f32.mxu0 0.0
  %858 = vmatmul.mubr.f32.gmra.mrb[0].mxu0 %v786
  %v859 = vpop.f32.mrb[0].mxu0
  %v860 = vadd.f32 0.0, %v859
  %v861 = vpop.f32.mrb[0].mxu0
  %862 = vdwg.mxu0
  %v863 = vadd.f32 %v51, %v855
  %v864 = vadd.f32 %v52, %v860
  %v865 = vlaneseq
  %v866 = vshrl.u32 %v865, 7
  %v867 = vsub.s32 1, %v866
  %v868 = vrot.slane %v53, %v867
  %v869 = vadd.f32 %v863, %v868
  %v870 = vadd.f32 %v864, %v868
  %v871 = vsel %vm54, %v869, 0.0
  %872 = vadd.xlane.f32.xlu0 %v871
  %v873 = vpop.xlane.xlu0 %872
  %v874 = vsel %vm54, %v870, 0.0
  %875 = vadd.xlane.f32.xlu0 %v874
  %v876 = vpop.xlane.xlu0 %875
  %v877 = vmul.f32 %v873, %v61
  %v878 = vmul.f32 %v876, %v61
  %v879 = vsub.f32 %v869, %v877
  %v880 = vsub.f32 %v870, %v878
  %v881 = vmul.f32 %v879, %v879
  %v882 = vmul.f32 %v880, %v880
  %v883 = vsel %vm54, %v881, 0.0
  %884 = vadd.xlane.f32.xlu0 %v883
  %v885 = vpop.xlane.xlu0 %884
  %v886 = vsel %vm54, %v882, 0.0
  %887 = vadd.xlane.f32.xlu0 %v886
  %v888 = vpop.xlane.xlu0 %887
  %v889 = vmul.f32 %v885, %v61
  %v890 = vmul.f32 %v888, %v61
  %v891 = vadd.f32 %v889, 1e-05
  %v892 = vadd.f32 %v890, 1e-05
  %v893 = vrsqrt.pop %v891
  %v894 = vrsqrt.pop %v892
  %v895 = vmul.f32 %v879, %v893
  %v896 = vmul.f32 %v880, %v894
  %v897 = vlaneseq
  %v898 = vshrl.u32 %v897, 7
  %v899 = vsub.s32 4, %v898
  %v900 = vrot.slane %v53, %v899
  %v901 = vmul.f32 %v895, %v900
  %v902 = vmul.f32 %v896, %v900
  %v903 = vlaneseq
  %v904 = vshrl.u32 %v903, 7
  %v905 = vsub.s32 5, %v904
  %v906 = vrot.slane %v53, %v905
  %v907 = vadd.f32 %v901, %v906
  %v908 = vadd.f32 %v902, %v906
  %v909 = vld [vmem:[%s5] sm:$0xff]
  %v910 = vld [vmem:[%s5 + $0x8] sm:$0xff]
  %v911 = vld [vmem:[%s5 + $0x10] sm:$0xff]
  %v912 = vld [vmem:[%s5 + $0x18] sm:$0xff]
  %v913 = vlaneseq
  %v914 = vshrl.u32 %v913, 7
  %v915 = vsub.s32 6, %v914
  %v916 = vrot.slane %v53, %v915
  %v918 = vsel %vm54, %v907, 0
  %v921 = vsel %vm54, %v908, 0
  %923 = vmatprep.subr.mxu0 0.0
  %924 = vmatpush1.msra.mxu0 %v909
  %925 = vmatprep.subr.mxu0 0.0
  %926 = vmatpush1.msra.mxu0 %v910
  %927 = vmatprep.subr.mxu0 0.0
  %928 = vmatpush1.msra.mxu0 %v911
  %929 = vmatprep.subr.mxu0 0.0
  %930 = vmatpush1.msra.mxu0 %v912
  %931 = vmatprep.subr.mxu0 0.0
  %932 = vmatpush1.msra.mxu0 0.0
  %933 = vmatprep.subr.mxu0 0.0
  %934 = vmatpush1.msra.mxu0 0.0
  %935 = vmatprep.subr.mxu0 0.0
  %936 = vmatpush1.msra.mxu0 0.0
  %937 = vmatprep.subr.mxu0 0.0
  %938 = vmatpush1.msra.mxu0 0.0
  %939 = vmatprep.subr.mxu0 0.0
  %940 = vmatpush1.msra.mxu0 0.0
  %941 = vmatprep.subr.mxu0 0.0
  %942 = vmatpush1.msra.mxu0 0.0
  %943 = vmatprep.subr.mxu0 0.0
  %944 = vmatpush1.msra.mxu0 0.0
  %945 = vmatprep.subr.mxu0 0.0
  %946 = vmatpush1.msra.mxu0 0.0
  %947 = vmatprep.subr.mxu0 0.0
  %948 = vmatpush1.msra.mxu0 0.0
  %949 = vmatprep.subr.mxu0 0.0
  %950 = vmatpush1.msra.mxu0 0.0
  %951 = vmatprep.subr.mxu0 0.0
  %952 = vmatpush1.msra.mxu0 0.0
  %953 = vmatprep.subr.mxu0 0.0
  %954 = vmatpush1.msra.mxu0 0.0
  %955 = vmatprep.subr.mxu0 0.0
  %956 = vmatpush1.msra.mxu0 0.0
  %957 = vmatprep.subr.mxu0 0.0
  %958 = vmatpush1.msra.mxu0 0.0
  %959 = vmatprep.subr.mxu0 0.0
  %960 = vmatpush1.msra.mxu0 0.0
  %961 = vmatprep.subr.mxu0 0.0
  %962 = vmatpush1.msra.mxu0 0.0
  %963 = vmatprep.subr.mxu0 0.0
  %964 = vmatpush1.msra.mxu0 0.0
  %965 = vmatprep.subr.mxu0 0.0
  %966 = vmatpush1.msra.mxu0 0.0
  %967 = vmatprep.subr.mxu0 0.0
  %968 = vmatpush1.msra.mxu0 0.0
  %969 = vmatprep.subr.mxu0 0.0
  %970 = vmatpush1.msra.mxu0 0.0
  %971 = vmatprep.subr.mxu0 0.0
  %972 = vmatpush1.msra.mxu0 0.0
  %973 = vmatprep.subr.mxu0 0.0
  %974 = vmatpush1.msra.mxu0 0.0
  %975 = vmatprep.subr.mxu0 0.0
  %976 = vmatpush1.msra.mxu0 0.0
  %977 = vmatprep.subr.mxu0 0.0
  %978 = vmatpush1.msra.mxu0 0.0
  %979 = vmatprep.subr.mxu0 0.0
  %980 = vmatpush1.msra.mxu0 0.0
  %981 = vmatprep.subr.mxu0 0.0
  %982 = vmatpush1.msra.mxu0 0.0
  %983 = vmatprep.subr.mxu0 0.0
  %984 = vmatpush1.msra.mxu0 0.0
  %985 = vmatprep.subr.mxu0 0.0
  %986 = vmatpush1.msra.mxu0 0.0
  %987 = vmatprep.mubr.f32.mxu0 0.0
  %988 = vmatmul.mubr.f32.gmra.mrb[0].mxu0 %v918
  %v989 = vpop.f32.mrb[0].mxu0
  %v990 = vadd.f32 %v916, %v989
  %v991 = vpop.f32.mrb[0].mxu0
  %992 = vmatprep.mubr.f32.mxu0 0.0
  %993 = vmatmul.mubr.f32.gmra.mrb[0].mxu0 %v921
  %v994 = vpop.f32.mrb[0].mxu0
  %v995 = vadd.f32 %v916, %v994
  %v996 = vpop.f32.mrb[0].mxu0
  %997 = vdwg.mxu0
  %v998 = vmul.f32 %v990, %v990
  %v999 = vmul.f32 %v995, %v995
  %v1000 = vmul.f32 %v990, %v998
  %v1001 = vmul.f32 %v995, %v999
  %v1002 = vmul.f32 %v1000, 0.044715
  %v1003 = vmul.f32 %v1001, 0.044715
  %v1004 = vadd.f32 %v990, %v1002
  %v1005 = vadd.f32 %v995, %v1003
  %v1006 = vmul.f32 %v1004, 0.7978846
  %v1007 = vmul.f32 %v1005, 0.7978846
  %v1008 = vtanh.pop %v1006
  %v1009 = vtanh.pop %v1007
  %v1010 = vadd.f32 %v1008, 1.0
  %v1011 = vadd.f32 %v1009, 1.0
  %v1012 = vmul.f32 %v1010, 0.5
  %v1013 = vmul.f32 %v1011, 0.5
  %v1014 = vmul.f32 %v990, %v1012
  %v1015 = vmul.f32 %v995, %v1013
  %v1016 = vld [vmem:[%s6] sm:$0xff]
  %v1017 = vld [vmem:[%s6 + $0x8] sm:$0xff]
  %v1018 = vld [vmem:[%s6 + $0x10] sm:$0xff]
  %v1019 = vld [vmem:[%s6 + $0x18] sm:$0xff]
  %v1020 = vld [vmem:[%s6 + $0x20] sm:$0xff]
  %v1021 = vld [vmem:[%s6 + $0x28] sm:$0xff]
  %v1022 = vld [vmem:[%s6 + $0x30] sm:$0xff]
  %v1023 = vld [vmem:[%s6 + $0x38] sm:$0xff]
  %v1024 = vld [vmem:[%s6 + $0x40] sm:$0xff]
  %v1025 = vld [vmem:[%s6 + $0x48] sm:$0xff]
  %v1026 = vld [vmem:[%s6 + $0x50] sm:$0xff]
  %v1027 = vld [vmem:[%s6 + $0x58] sm:$0xff]
  %vm1028 = vcmask 785408
  %v1030 = vsel %vm1028, %v1014, 0
  %v1033 = vsel %vm1028, %v1015, 0
  %1035 = vmatprep.subr.mxu0 0.0
  %1036 = vmatpush1.msra.mxu0 %v1016
  %1037 = vmatprep.subr.mxu0 0.0
  %1038 = vmatpush1.msra.mxu0 %v1017
  %1039 = vmatprep.subr.mxu0 0.0
  %1040 = vmatpush1.msra.mxu0 %v1018
  %1041 = vmatprep.subr.mxu0 0.0
  %1042 = vmatpush1.msra.mxu0 %v1019
  %1043 = vmatprep.subr.mxu0 0.0
  %1044 = vmatpush1.msra.mxu0 %v1020
  %1045 = vmatprep.subr.mxu0 0.0
  %1046 = vmatpush1.msra.mxu0 %v1021
  %1047 = vmatprep.subr.mxu0 0.0
  %1048 = vmatpush1.msra.mxu0 %v1022
  %1049 = vmatprep.subr.mxu0 0.0
  %1050 = vmatpush1.msra.mxu0 %v1023
  %1051 = vmatprep.subr.mxu0 0.0
  %1052 = vmatpush1.msra.mxu0 %v1024
  %1053 = vmatprep.subr.mxu0 0.0
  %1054 = vmatpush1.msra.mxu0 %v1025
  %1055 = vmatprep.subr.mxu0 0.0
  %1056 = vmatpush1.msra.mxu0 %v1026
  %1057 = vmatprep.subr.mxu0 0.0
  %1058 = vmatpush1.msra.mxu0 %v1027
  %1059 = vmatprep.subr.mxu0 0.0
  %1060 = vmatpush1.msra.mxu0 0.0
  %1061 = vmatprep.subr.mxu0 0.0
  %1062 = vmatpush1.msra.mxu0 0.0
  %1063 = vmatprep.subr.mxu0 0.0
  %1064 = vmatpush1.msra.mxu0 0.0
  %1065 = vmatprep.subr.mxu0 0.0
  %1066 = vmatpush1.msra.mxu0 0.0
  %1067 = vmatprep.subr.mxu0 0.0
  %1068 = vmatpush1.msra.mxu0 0.0
  %1069 = vmatprep.subr.mxu0 0.0
  %1070 = vmatpush1.msra.mxu0 0.0
  %1071 = vmatprep.subr.mxu0 0.0
  %1072 = vmatpush1.msra.mxu0 0.0
  %1073 = vmatprep.subr.mxu0 0.0
  %1074 = vmatpush1.msra.mxu0 0.0
  %1075 = vmatprep.subr.mxu0 0.0
  %1076 = vmatpush1.msra.mxu0 0.0
  %1077 = vmatprep.subr.mxu0 0.0
  %1078 = vmatpush1.msra.mxu0 0.0
  %1079 = vmatprep.subr.mxu0 0.0
  %1080 = vmatpush1.msra.mxu0 0.0
  %1081 = vmatprep.subr.mxu0 0.0
  %1082 = vmatpush1.msra.mxu0 0.0
  %1083 = vmatprep.subr.mxu0 0.0
  %1084 = vmatpush1.msra.mxu0 0.0
  %1085 = vmatprep.subr.mxu0 0.0
  %1086 = vmatpush1.msra.mxu0 0.0
  %1087 = vmatprep.subr.mxu0 0.0
  %1088 = vmatpush1.msra.mxu0 0.0
  %1089 = vmatprep.subr.mxu0 0.0
  %1090 = vmatpush1.msra.mxu0 0.0
  %1091 = vmatprep.subr.mxu0 0.0
  %1092 = vmatpush1.msra.mxu0 0.0
  %1093 = vmatprep.subr.mxu0 0.0
  %1094 = vmatpush1.msra.mxu0 0.0
  %1095 = vmatprep.subr.mxu0 0.0
  %1096 = vmatpush1.msra.mxu0 0.0
  %1097 = vmatprep.subr.mxu0 0.0
  %1098 = vmatpush1.msra.mxu0 0.0
  %1099 = vmatprep.mubr.f32.mxu0 0.0
  %1100 = vmatmul.mubr.f32.gmra.mrb[0].mxu0 %v1030
  %v1101 = vpop.f32.mrb[0].mxu0
  %v1102 = vadd.f32 0.0, %v1101
  %v1103 = vpop.f32.mrb[0].mxu0
  %1104 = vmatprep.mubr.f32.mxu0 0.0
  %1105 = vmatmul.mubr.f32.gmra.mrb[0].mxu0 %v1033
  %v1106 = vpop.f32.mrb[0].mxu0
  %v1107 = vadd.f32 0.0, %v1106
  %v1108 = vpop.f32.mrb[0].mxu0
  %1109 = vdwg.mxu0
  %v1110 = vadd.f32 %v869, %v1102
  %v1111 = vadd.f32 %v870, %v1107
  %v1112 = vlaneseq
  %v1113 = vshrl.u32 %v1112, 7
  %v1114 = vsub.s32 7, %v1113
  %v1115 = vrot.slane %v53, %v1114
  %v1116 = vadd.f32 %v1110, %v1115
  %v1117 = vadd.f32 %v1111, %v1115
  %s1118 = scalar_lea.vmem %s7, 8
  %v1119 = vld [vmem:[%s1118] sm:$0xff]
  %v1120 = vsel %vm54, %v1116, 0.0
  %1121 = vadd.xlane.f32.xlu0 %v1120
  %v1122 = vpop.xlane.xlu0 %1121
  %v1123 = vsel %vm54, %v1117, 0.0
  %1124 = vadd.xlane.f32.xlu0 %v1123
  %v1125 = vpop.xlane.xlu0 %1124
  %v1126 = vmul.f32 %v1122, %v61
  %v1127 = vmul.f32 %v1125, %v61
  %v1128 = vsub.f32 %v1116, %v1126
  %v1129 = vsub.f32 %v1117, %v1127
  %v1130 = vmul.f32 %v1128, %v1128
  %v1131 = vmul.f32 %v1129, %v1129
  %v1132 = vsel %vm54, %v1130, 0.0
  %1133 = vadd.xlane.f32.xlu0 %v1132
  %v1134 = vpop.xlane.xlu0 %1133
  %v1135 = vsel %vm54, %v1131, 0.0
  %1136 = vadd.xlane.f32.xlu0 %v1135
  %v1137 = vpop.xlane.xlu0 %1136
  %v1138 = vmul.f32 %v1134, %v61
  %v1139 = vmul.f32 %v1137, %v61
  %v1140 = vadd.f32 %v1138, 1e-05
  %v1141 = vadd.f32 %v1139, 1e-05
  %v1142 = vrsqrt.pop %v1140
  %v1143 = vrsqrt.pop %v1141
  %v1144 = vmul.f32 %v1128, %v1142
  %v1145 = vmul.f32 %v1129, %v1143
  %v1146 = vlaneseq
  %v1147 = vshrl.u32 %v1146, 7
  %v1148 = vsub.s32 2, %v1147
  %v1149 = vrot.slane %v1119, %v1148
  %v1150 = vmul.f32 %v1144, %v1149
  %v1151 = vmul.f32 %v1145, %v1149
  %v1152 = vlaneseq
  %v1153 = vshrl.u32 %v1152, 7
  %v1154 = vsub.s32 3, %v1153
  %v1155 = vrot.slane %v1119, %v1154
  %v1156 = vadd.f32 %v1150, %v1155
  %v1157 = vadd.f32 %v1151, %v1155
  %s1158 = scalar_lea.vmem %s3, 32
  %v1159 = vld [vmem:[%s1158] sm:$0xff]
  %v1160 = vld [vmem:[%s1158 + $0x8] sm:$0xff]
  %v1161 = vld [vmem:[%s1158 + $0x10] sm:$0xff]
  %v1162 = vld [vmem:[%s1158 + $0x18] sm:$0xff]
  %v1163 = vlaneseq
  %v1164 = vshrl.u32 %v1163, 7
  %v1165 = vsub.s32 0, %v1164
  %v1166 = vrot.slane %v1119, %v1165
  %v1168 = vsel %vm54, %v1156, 0
  %v1171 = vsel %vm54, %v1157, 0
  %1173 = vmatprep.subr.mxu0 0.0
  %1174 = vmatpush1.msra.mxu0 %v1159
  %1175 = vmatprep.subr.mxu0 0.0
  %1176 = vmatpush1.msra.mxu0 %v1160
  %1177 = vmatprep.subr.mxu0 0.0
  %1178 = vmatpush1.msra.mxu0 %v1161
  %1179 = vmatprep.subr.mxu0 0.0
  %1180 = vmatpush1.msra.mxu0 %v1162
  %1181 = vmatprep.subr.mxu0 0.0
  %1182 = vmatpush1.msra.mxu0 0.0
  %1183 = vmatprep.subr.mxu0 0.0
  %1184 = vmatpush1.msra.mxu0 0.0
  %1185 = vmatprep.subr.mxu0 0.0
  %1186 = vmatpush1.msra.mxu0 0.0
  %1187 = vmatprep.subr.mxu0 0.0
  %1188 = vmatpush1.msra.mxu0 0.0
  %1189 = vmatprep.subr.mxu0 0.0
  %1190 = vmatpush1.msra.mxu0 0.0
  %1191 = vmatprep.subr.mxu0 0.0
  %1192 = vmatpush1.msra.mxu0 0.0
  %1193 = vmatprep.subr.mxu0 0.0
  %1194 = vmatpush1.msra.mxu0 0.0
  %1195 = vmatprep.subr.mxu0 0.0
  %1196 = vmatpush1.msra.mxu0 0.0
  %1197 = vmatprep.subr.mxu0 0.0
  %1198 = vmatpush1.msra.mxu0 0.0
  %1199 = vmatprep.subr.mxu0 0.0
  %1200 = vmatpush1.msra.mxu0 0.0
  %1201 = vmatprep.subr.mxu0 0.0
  %1202 = vmatpush1.msra.mxu0 0.0
  %1203 = vmatprep.subr.mxu0 0.0
  %1204 = vmatpush1.msra.mxu0 0.0
  %1205 = vmatprep.subr.mxu0 0.0
  %1206 = vmatpush1.msra.mxu0 0.0
  %1207 = vmatprep.subr.mxu0 0.0
  %1208 = vmatpush1.msra.mxu0 0.0
  %1209 = vmatprep.subr.mxu0 0.0
  %1210 = vmatpush1.msra.mxu0 0.0
  %1211 = vmatprep.subr.mxu0 0.0
  %1212 = vmatpush1.msra.mxu0 0.0
  %1213 = vmatprep.subr.mxu0 0.0
  %1214 = vmatpush1.msra.mxu0 0.0
  %1215 = vmatprep.subr.mxu0 0.0
  %1216 = vmatpush1.msra.mxu0 0.0
  %1217 = vmatprep.subr.mxu0 0.0
  %1218 = vmatpush1.msra.mxu0 0.0
  %1219 = vmatprep.subr.mxu0 0.0
  %1220 = vmatpush1.msra.mxu0 0.0
  %1221 = vmatprep.subr.mxu0 0.0
  %1222 = vmatpush1.msra.mxu0 0.0
  %1223 = vmatprep.subr.mxu0 0.0
  %1224 = vmatpush1.msra.mxu0 0.0
  %1225 = vmatprep.subr.mxu0 0.0
  %1226 = vmatpush1.msra.mxu0 0.0
  %1227 = vmatprep.subr.mxu0 0.0
  %1228 = vmatpush1.msra.mxu0 0.0
  %1229 = vmatprep.subr.mxu0 0.0
  %1230 = vmatpush1.msra.mxu0 0.0
  %1231 = vmatprep.subr.mxu0 0.0
  %1232 = vmatpush1.msra.mxu0 0.0
  %1233 = vmatprep.subr.mxu0 0.0
  %1234 = vmatpush1.msra.mxu0 0.0
  %1235 = vmatprep.subr.mxu0 0.0
  %1236 = vmatpush1.msra.mxu0 0.0
  %1237 = vmatprep.mubr.f32.mxu0 0.0
  %1238 = vmatmul.mubr.f32.gmra.mrb[0].mxu0 %v1168
  %v1239 = vpop.f32.mrb[0].mxu0
  %v1240 = vadd.f32 %v1166, %v1239
  %v1241 = vpop.f32.mrb[0].mxu0
  %1242 = vmatprep.mubr.f32.mxu0 0.0
  %1243 = vmatmul.mubr.f32.gmra.mrb[0].mxu0 %v1171
  %v1244 = vpop.f32.mrb[0].mxu0
  %v1245 = vadd.f32 %v1166, %v1244
  %v1246 = vpop.f32.mrb[0].mxu0
  %1247 = vdwg.mxu0
  %v1248 = vmul.f32 %v1240, %v186
  %v1249 = vmul.f32 %v1245, %v188
  %v1250 = vmul.f32 %v1240, %v29
  %v1251 = vmul.f32 %v1245, %v30
  %1254 = vrot.lane.b32.xlu0 %v1250, 64
  %v1255 = vpop.permute.xlu0 %1254
  %1256 = vrot.lane.b32.xlu0 %v1251, 64
  %v1257 = vpop.permute.xlu0 %1256
  %v1260 = vadd.f32 %v1248, %v1255
  %v1261 = vadd.f32 %v1249, %v1257
  %v1262 = vmul.f32 %v1240, %v206
  %v1263 = vmul.f32 %v1245, %v208
  %v1264 = vmul.f32 %v1240, %v214
  %v1265 = vmul.f32 %v1245, %v216
  %1268 = vrot.lane.b32.xlu0 %v1264, 64
  %v1269 = vpop.permute.xlu0 %1268
  %1270 = vrot.lane.b32.xlu0 %v1265, 64
  %v1271 = vpop.permute.xlu0 %1270
  %v1274 = vadd.f32 %v1262, %v1269
  %v1275 = vadd.f32 %v1263, %v1271
  %1278 = vrot.lane.b32.xlu0 %v1260, 120
  %v1279 = vpop.permute.xlu0 %1278
  %1280 = vrot.lane.b32.xlu0 %v1261, 120
  %v1281 = vpop.permute.xlu0 %1280
  %1284 = vrot.lane.b32.xlu0 %v1274, 96
  %v1285 = vpop.permute.xlu0 %1284
  %1286 = vrot.lane.b32.xlu0 %v1275, 96
  %v1287 = vpop.permute.xlu0 %1286
  %v1288 = vsel %vm243, %v1260, 0
  %v1290 = vsel %vm243, %v1261, 0
  %v1292 = vsel %vm243, %v1279, 0
  %v1294 = vsel %vm243, %v1281, 0
  %v1296 = vsel %vm243, %v1285, 0
  %v1298 = vsel %vm243, %v1287, 0
  %1300 = vmatprep.subr.mxu0 0.0
  %1301 = vmatpush1.xpose.msra.mxu0 %v1296
  %1302 = vmatprep.subr.mxu0 0.0
  %1303 = vmatpush1.xpose.msra.mxu0 %v1298
  %1304 = vmatprep.subr.mxu0 0.0
  %1305 = vmatpush1.xpose.msra.mxu0 0.0
  %1306 = vmatprep.subr.mxu0 0.0
  %1307 = vmatpush1.xpose.msra.mxu0 0.0
  %1308 = vmatprep.subr.mxu0 0.0
  %1309 = vmatpush1.xpose.msra.mxu0 0.0
  %1310 = vmatprep.subr.mxu0 0.0
  %1311 = vmatpush1.xpose.msra.mxu0 0.0
  %1312 = vmatprep.subr.mxu0 0.0
  %1313 = vmatpush1.xpose.msra.mxu0 0.0
  %1314 = vmatprep.subr.mxu0 0.0
  %1315 = vmatpush1.xpose.msra.mxu0 0.0
  %1316 = vmatprep.subr.mxu0 0.0
  %1317 = vmatpush1.xpose.msra.mxu0 0.0
  %1318 = vmatprep.subr.mxu0 0.0
  %1319 = vmatpush1.xpose.msra.mxu0 0.0
  %1320 = vmatprep.subr.mxu0 0.0
  %1321 = vmatpush1.xpose.msra.mxu0 0.0
  %1322 = vmatprep.subr.mxu0 0.0
  %1323 = vmatpush1.xpose.msra.mxu0 0.0
  %1324 = vmatprep.subr.mxu0 0.0
  %1325 = vmatpush1.xpose.msra.mxu0 0.0
  %1326 = vmatprep.subr.mxu0 0.0
  %1327 = vmatpush1.xpose.msra.mxu0 0.0
  %1328 = vmatprep.subr.mxu0 0.0
  %1329 = vmatpush1.xpose.msra.mxu0 0.0
  %1330 = vmatprep.subr.mxu0 0.0
  %1331 = vmatpush1.xpose.msra.mxu0 0.0
  %1332 = vmatprep.subr.mxu0 0.0
  %1333 = vmatpush1.xpose.msra.mxu0 0.0
  %1334 = vmatprep.subr.mxu0 0.0
  %1335 = vmatpush1.xpose.msra.mxu0 0.0
  %1336 = vmatprep.subr.mxu0 0.0
  %1337 = vmatpush1.xpose.msra.mxu0 0.0
  %1338 = vmatprep.subr.mxu0 0.0
  %1339 = vmatpush1.xpose.msra.mxu0 0.0
  %1340 = vmatprep.subr.mxu0 0.0
  %1341 = vmatpush1.xpose.msra.mxu0 0.0
  %1342 = vmatprep.subr.mxu0 0.0
  %1343 = vmatpush1.xpose.msra.mxu0 0.0
  %1344 = vmatprep.subr.mxu0 0.0
  %1345 = vmatpush1.xpose.msra.mxu0 0.0
  %1346 = vmatprep.subr.mxu0 0.0
  %1347 = vmatpush1.xpose.msra.mxu0 0.0
  %1348 = vmatprep.subr.mxu0 0.0
  %1349 = vmatpush1.xpose.msra.mxu0 0.0
  %1350 = vmatprep.subr.mxu0 0.0
  %1351 = vmatpush1.xpose.msra.mxu0 0.0
  %1352 = vmatprep.subr.mxu0 0.0
  %1353 = vmatpush1.xpose.msra.mxu0 0.0
  %1354 = vmatprep.subr.mxu0 0.0
  %1355 = vmatpush1.xpose.msra.mxu0 0.0
  %1356 = vmatprep.subr.mxu0 0.0
  %1357 = vmatpush1.xpose.msra.mxu0 0.0
  %1358 = vmatprep.subr.mxu0 0.0
  %1359 = vmatpush1.xpose.msra.mxu0 0.0
  %1360 = vmatprep.subr.mxu0 0.0
  %1361 = vmatpush1.xpose.msra.mxu0 0.0
  %1362 = vmatprep.subr.mxu0 0.0
  %1363 = vmatpush1.xpose.msra.mxu0 0.0
  %1364 = vmatprep.mubr.f32.mxu0 0.0
  %1365 = vmatmul.mubr.f32.gmra.mrb[0].mxu0 %v1288
  %v1366 = vpop.f32.mrb[0].mxu0
  %v1367 = vadd.f32 %v31, %v1366
  %v1368 = vpop.f32.mrb[0].mxu0
  %1369 = vmatprep.mubr.f32.mxu0 0.0
  %1370 = vmatmul.mubr.f32.gmra.mrb[0].mxu0 %v1290
  %v1371 = vpop.f32.mrb[0].mxu0
  %v1372 = vadd.f32 %v32, %v1371
  %v1373 = vpop.f32.mrb[0].mxu0
  %1374 = vmatprep.mubr.f32.mxu0 0.0
  %1375 = vmatmul.mubr.f32.gmra.mrb[0].mxu0 %v1292
  %v1376 = vpop.f32.mrb[0].mxu0
  %v1377 = vadd.f32 %v33, %v1376
  %v1378 = vpop.f32.mrb[0].mxu0
  %1379 = vmatprep.mubr.f32.mxu0 0.0
  %1380 = vmatmul.mubr.f32.gmra.mrb[0].mxu0 %v1294
  %v1381 = vpop.f32.mrb[0].mxu0
  %v1382 = vadd.f32 %v34, %v1381
  %v1383 = vpop.f32.mrb[0].mxu0
  %1384 = vdwg.mxu0
  %v1385 = vsel %vm341, %v1367, -inf
  %1386 = vmax.xlane.f32.xlu0 %v1385
  %v1387 = vpop.xlane.xlu0 %1386
  %v1388 = vsel %vm341, %v1372, -inf
  %1389 = vmax.xlane.f32.xlu0 %v1388
  %v1390 = vpop.xlane.xlu0 %1389
  %v1391 = vsel %vm341, %v1377, -inf
  %1392 = vmax.xlane.f32.xlu0 %v1391
  %v1393 = vpop.xlane.xlu0 %1392
  %v1394 = vsel %vm341, %v1382, -inf
  %1395 = vmax.xlane.f32.xlu0 %v1394
  %v1396 = vpop.xlane.xlu0 %1395
  %v1397 = vsub.f32 %v1367, %v1387
  %v1398 = vsub.f32 %v1372, %v1390
  %v1399 = vsub.f32 %v1377, %v1393
  %v1400 = vsub.f32 %v1382, %v1396
  %v1401 = vmul.f32 %v1397, 1.442695
  %v1402 = vpow.pop %v1401
  %v1403 = vmul.f32 %v1398, 1.442695
  %v1404 = vpow.pop %v1403
  %v1405 = vmul.f32 %v1399, 1.442695
  %v1406 = vpow.pop %v1405
  %v1407 = vmul.f32 %v1400, 1.442695
  %v1408 = vpow.pop %v1407
  %v1409 = vsel %vm341, %v1402, 0.0
  %1410 = vadd.xlane.f32.xlu0 %v1409
  %v1411 = vpop.xlane.xlu0 %1410
  %v1412 = vsel %vm341, %v1404, 0.0
  %1413 = vadd.xlane.f32.xlu0 %v1412
  %v1414 = vpop.xlane.xlu0 %1413
  %v1415 = vsel %vm341, %v1406, 0.0
  %1416 = vadd.xlane.f32.xlu0 %v1415
  %v1417 = vpop.xlane.xlu0 %1416
  %v1418 = vsel %vm341, %v1408, 0.0
  %1419 = vadd.xlane.f32.xlu0 %v1418
  %v1420 = vpop.xlane.xlu0 %1419
  %v1421 = vrcp.pop %v1411
  %v1422 = vrcp.pop %v1414
  %v1423 = vrcp.pop %v1417
  %v1424 = vrcp.pop %v1420
  %v1425 = vmul.f32 %v1402, %v1421
  %v1426 = vmul.f32 %v1404, %v1422
  %v1427 = vmul.f32 %v1406, %v1423
  %v1428 = vmul.f32 %v1408, %v1424
  %1431 = vrot.lane.b32.xlu0 %v1240, 80
  %v1432 = vpop.permute.xlu0 %1431
  %1433 = vrot.lane.b32.xlu0 %v1245, 80
  %v1434 = vpop.permute.xlu0 %1433
  %v1438 = vsel %vm341, %v1425, 0
  %v1441 = vsel %vm341, %v1426, 0
  %v1444 = vsel %vm341, %v1427, 0
  %v1447 = vsel %vm341, %v1428, 0
  %1449 = vmatprep.subr.mxu0 0.0
  %1450 = vmatpush1.msra.mxu0 %v1432
  %1451 = vmatprep.subr.mxu0 0.0
  %1452 = vmatpush1.msra.mxu0 %v1434
  %1453 = vmatprep.subr.mxu0 0.0
  %1454 = vmatpush1.msra.mxu0 0.0
  %1455 = vmatprep.subr.mxu0 0.0
  %1456 = vmatpush1.msra.mxu0 0.0
  %1457 = vmatprep.subr.mxu0 0.0
  %1458 = vmatpush1.msra.mxu0 0.0
  %1459 = vmatprep.subr.mxu0 0.0
  %1460 = vmatpush1.msra.mxu0 0.0
  %1461 = vmatprep.subr.mxu0 0.0
  %1462 = vmatpush1.msra.mxu0 0.0
  %1463 = vmatprep.subr.mxu0 0.0
  %1464 = vmatpush1.msra.mxu0 0.0
  %1465 = vmatprep.subr.mxu0 0.0
  %1466 = vmatpush1.msra.mxu0 0.0
  %1467 = vmatprep.subr.mxu0 0.0
  %1468 = vmatpush1.msra.mxu0 0.0
  %1469 = vmatprep.subr.mxu0 0.0
  %1470 = vmatpush1.msra.mxu0 0.0
  %1471 = vmatprep.subr.mxu0 0.0
  %1472 = vmatpush1.msra.mxu0 0.0
  %1473 = vmatprep.subr.mxu0 0.0
  %1474 = vmatpush1.msra.mxu0 0.0
  %1475 = vmatprep.subr.mxu0 0.0
  %1476 = vmatpush1.msra.mxu0 0.0
  %1477 = vmatprep.subr.mxu0 0.0
  %1478 = vmatpush1.msra.mxu0 0.0
  %1479 = vmatprep.subr.mxu0 0.0
  %1480 = vmatpush1.msra.mxu0 0.0
  %1481 = vmatprep.subr.mxu0 0.0
  %1482 = vmatpush1.msra.mxu0 0.0
  %1483 = vmatprep.subr.mxu0 0.0
  %1484 = vmatpush1.msra.mxu0 0.0
  %1485 = vmatprep.subr.mxu0 0.0
  %1486 = vmatpush1.msra.mxu0 0.0
  %1487 = vmatprep.subr.mxu0 0.0
  %1488 = vmatpush1.msra.mxu0 0.0
  %1489 = vmatprep.subr.mxu0 0.0
  %1490 = vmatpush1.msra.mxu0 0.0
  %1491 = vmatprep.subr.mxu0 0.0
  %1492 = vmatpush1.msra.mxu0 0.0
  %1493 = vmatprep.subr.mxu0 0.0
  %1494 = vmatpush1.msra.mxu0 0.0
  %1495 = vmatprep.subr.mxu0 0.0
  %1496 = vmatpush1.msra.mxu0 0.0
  %1497 = vmatprep.subr.mxu0 0.0
  %1498 = vmatpush1.msra.mxu0 0.0
  %1499 = vmatprep.subr.mxu0 0.0
  %1500 = vmatpush1.msra.mxu0 0.0
  %1501 = vmatprep.subr.mxu0 0.0
  %1502 = vmatpush1.msra.mxu0 0.0
  %1503 = vmatprep.subr.mxu0 0.0
  %1504 = vmatpush1.msra.mxu0 0.0
  %1505 = vmatprep.subr.mxu0 0.0
  %1506 = vmatpush1.msra.mxu0 0.0
  %1507 = vmatprep.subr.mxu0 0.0
  %1508 = vmatpush1.msra.mxu0 0.0
  %1509 = vmatprep.subr.mxu0 0.0
  %1510 = vmatpush1.msra.mxu0 0.0
  %1511 = vmatprep.subr.mxu0 0.0
  %1512 = vmatpush1.msra.mxu0 0.0
  %1513 = vmatprep.mubr.f32.mxu0 0.0
  %1514 = vmatmul.mubr.f32.gmra.mrb[0].mxu0 %v1438
  %v1515 = vpop.f32.mrb[0].mxu0
  %v1516 = vadd.f32 0.0, %v1515
  %v1517 = vpop.f32.mrb[0].mxu0
  %1518 = vmatprep.mubr.f32.mxu0 0.0
  %1519 = vmatmul.mubr.f32.gmra.mrb[0].mxu0 %v1441
  %v1520 = vpop.f32.mrb[0].mxu0
  %v1521 = vadd.f32 0.0, %v1520
  %v1522 = vpop.f32.mrb[0].mxu0
  %1523 = vmatprep.mubr.f32.mxu0 0.0
  %1524 = vmatmul.mubr.f32.gmra.mrb[0].mxu0 %v1444
  %v1525 = vpop.f32.mrb[0].mxu0
  %v1526 = vadd.f32 0.0, %v1525
  %v1527 = vpop.f32.mrb[0].mxu0
  %1528 = vmatprep.mubr.f32.mxu0 0.0
  %1529 = vmatmul.mubr.f32.gmra.mrb[0].mxu0 %v1447
  %v1530 = vpop.f32.mrb[0].mxu0
  %v1531 = vadd.f32 0.0, %v1530
  %v1532 = vpop.f32.mrb[0].mxu0
  %1533 = vdwg.mxu0
  %1534 = vrot.lane.b32.xlu0 %v1260, 112
  %v1535 = vpop.permute.xlu0 %1534
  %1536 = vrot.lane.b32.xlu0 %v1261, 112
  %v1537 = vpop.permute.xlu0 %1536
  %1538 = vrot.lane.b32.xlu0 %v1279, 112
  %v1539 = vpop.permute.xlu0 %1538
  %1540 = vrot.lane.b32.xlu0 %v1281, 112
  %v1541 = vpop.permute.xlu0 %1540
  %1542 = vrot.lane.b32.xlu0 %v1274, 88
  %v1543 = vpop.permute.xlu0 %1542
  %1544 = vrot.lane.b32.xlu0 %v1275, 88
  %v1545 = vpop.permute.xlu0 %1544
  %v1546 = vsel %vm243, %v1535, 0
  %v1548 = vsel %vm243, %v1537, 0
  %v1550 = vsel %vm243, %v1539, 0
  %v1552 = vsel %vm243, %v1541, 0
  %v1554 = vsel %vm243, %v1543, 0
  %v1556 = vsel %vm243, %v1545, 0
  %1558 = vmatprep.subr.mxu0 0.0
  %1559 = vmatpush1.xpose.msra.mxu0 %v1554
  %1560 = vmatprep.subr.mxu0 0.0
  %1561 = vmatpush1.xpose.msra.mxu0 %v1556
  %1562 = vmatprep.subr.mxu0 0.0
  %1563 = vmatpush1.xpose.msra.mxu0 0.0
  %1564 = vmatprep.subr.mxu0 0.0
  %1565 = vmatpush1.xpose.msra.mxu0 0.0
  %1566 = vmatprep.subr.mxu0 0.0
  %1567 = vmatpush1.xpose.msra.mxu0 0.0
  %1568 = vmatprep.subr.mxu0 0.0
  %1569 = vmatpush1.xpose.msra.mxu0 0.0
  %1570 = vmatprep.subr.mxu0 0.0
  %1571 = vmatpush1.xpose.msra.mxu0 0.0
  %1572 = vmatprep.subr.mxu0 0.0
  %1573 = vmatpush1.xpose.msra.mxu0 0.0
  %1574 = vmatprep.subr.mxu0 0.0
  %1575 = vmatpush1.xpose.msra.mxu0 0.0
  %1576 = vmatprep.subr.mxu0 0.0
  %1577 = vmatpush1.xpose.msra.mxu0 0.0
  %1578 = vmatprep.subr.mxu0 0.0
  %1579 = vmatpush1.xpose.msra.mxu0 0.0
  %1580 = vmatprep.subr.mxu0 0.0
  %1581 = vmatpush1.xpose.msra.mxu0 0.0
  %1582 = vmatprep.subr.mxu0 0.0
  %1583 = vmatpush1.xpose.msra.mxu0 0.0
  %1584 = vmatprep.subr.mxu0 0.0
  %1585 = vmatpush1.xpose.msra.mxu0 0.0
  %1586 = vmatprep.subr.mxu0 0.0
  %1587 = vmatpush1.xpose.msra.mxu0 0.0
  %1588 = vmatprep.subr.mxu0 0.0
  %1589 = vmatpush1.xpose.msra.mxu0 0.0
  %1590 = vmatprep.subr.mxu0 0.0
  %1591 = vmatpush1.xpose.msra.mxu0 0.0
  %1592 = vmatprep.subr.mxu0 0.0
  %1593 = vmatpush1.xpose.msra.mxu0 0.0
  %1594 = vmatprep.subr.mxu0 0.0
  %1595 = vmatpush1.xpose.msra.mxu0 0.0
  %1596 = vmatprep.subr.mxu0 0.0
  %1597 = vmatpush1.xpose.msra.mxu0 0.0
  %1598 = vmatprep.subr.mxu0 0.0
  %1599 = vmatpush1.xpose.msra.mxu0 0.0
  %1600 = vmatprep.subr.mxu0 0.0
  %1601 = vmatpush1.xpose.msra.mxu0 0.0
  %1602 = vmatprep.subr.mxu0 0.0
  %1603 = vmatpush1.xpose.msra.mxu0 0.0
  %1604 = vmatprep.subr.mxu0 0.0
  %1605 = vmatpush1.xpose.msra.mxu0 0.0
  %1606 = vmatprep.subr.mxu0 0.0
  %1607 = vmatpush1.xpose.msra.mxu0 0.0
  %1608 = vmatprep.subr.mxu0 0.0
  %1609 = vmatpush1.xpose.msra.mxu0 0.0
  %1610 = vmatprep.subr.mxu0 0.0
  %1611 = vmatpush1.xpose.msra.mxu0 0.0
  %1612 = vmatprep.subr.mxu0 0.0
  %1613 = vmatpush1.xpose.msra.mxu0 0.0
  %1614 = vmatprep.subr.mxu0 0.0
  %1615 = vmatpush1.xpose.msra.mxu0 0.0
  %1616 = vmatprep.subr.mxu0 0.0
  %1617 = vmatpush1.xpose.msra.mxu0 0.0
  %1618 = vmatprep.subr.mxu0 0.0
  %1619 = vmatpush1.xpose.msra.mxu0 0.0
  %1620 = vmatprep.subr.mxu0 0.0
  %1621 = vmatpush1.xpose.msra.mxu0 0.0
  %1622 = vmatprep.mubr.f32.mxu0 0.0
  %1623 = vmatmul.mubr.f32.gmra.mrb[0].mxu0 %v1546
  %v1624 = vpop.f32.mrb[0].mxu0
  %v1625 = vadd.f32 %v31, %v1624
  %v1626 = vpop.f32.mrb[0].mxu0
  %1627 = vmatprep.mubr.f32.mxu0 0.0
  %1628 = vmatmul.mubr.f32.gmra.mrb[0].mxu0 %v1548
  %v1629 = vpop.f32.mrb[0].mxu0
  %v1630 = vadd.f32 %v32, %v1629
  %v1631 = vpop.f32.mrb[0].mxu0
  %1632 = vmatprep.mubr.f32.mxu0 0.0
  %1633 = vmatmul.mubr.f32.gmra.mrb[0].mxu0 %v1550
  %v1634 = vpop.f32.mrb[0].mxu0
  %v1635 = vadd.f32 %v33, %v1634
  %v1636 = vpop.f32.mrb[0].mxu0
  %1637 = vmatprep.mubr.f32.mxu0 0.0
  %1638 = vmatmul.mubr.f32.gmra.mrb[0].mxu0 %v1552
  %v1639 = vpop.f32.mrb[0].mxu0
  %v1640 = vadd.f32 %v34, %v1639
  %v1641 = vpop.f32.mrb[0].mxu0
  %1642 = vdwg.mxu0
  %v1643 = vsel %vm341, %v1625, -inf
  %1644 = vmax.xlane.f32.xlu0 %v1643
  %v1645 = vpop.xlane.xlu0 %1644
  %v1646 = vsel %vm341, %v1630, -inf
  %1647 = vmax.xlane.f32.xlu0 %v1646
  %v1648 = vpop.xlane.xlu0 %1647
  %v1649 = vsel %vm341, %v1635, -inf
  %1650 = vmax.xlane.f32.xlu0 %v1649
  %v1651 = vpop.xlane.xlu0 %1650
  %v1652 = vsel %vm341, %v1640, -inf
  %1653 = vmax.xlane.f32.xlu0 %v1652
  %v1654 = vpop.xlane.xlu0 %1653
  %v1655 = vsub.f32 %v1625, %v1645
  %v1656 = vsub.f32 %v1630, %v1648
  %v1657 = vsub.f32 %v1635, %v1651
  %v1658 = vsub.f32 %v1640, %v1654
  %v1659 = vmul.f32 %v1655, 1.442695
  %v1660 = vpow.pop %v1659
  %v1661 = vmul.f32 %v1656, 1.442695
  %v1662 = vpow.pop %v1661
  %v1663 = vmul.f32 %v1657, 1.442695
  %v1664 = vpow.pop %v1663
  %v1665 = vmul.f32 %v1658, 1.442695
  %v1666 = vpow.pop %v1665
  %v1667 = vsel %vm341, %v1660, 0.0
  %1668 = vadd.xlane.f32.xlu0 %v1667
  %v1669 = vpop.xlane.xlu0 %1668
  %v1670 = vsel %vm341, %v1662, 0.0
  %1671 = vadd.xlane.f32.xlu0 %v1670
  %v1672 = vpop.xlane.xlu0 %1671
  %v1673 = vsel %vm341, %v1664, 0.0
  %1674 = vadd.xlane.f32.xlu0 %v1673
  %v1675 = vpop.xlane.xlu0 %1674
  %v1676 = vsel %vm341, %v1666, 0.0
  %1677 = vadd.xlane.f32.xlu0 %v1676
  %v1678 = vpop.xlane.xlu0 %1677
  %v1679 = vrcp.pop %v1669
  %v1680 = vrcp.pop %v1672
  %v1681 = vrcp.pop %v1675
  %v1682 = vrcp.pop %v1678
  %v1683 = vmul.f32 %v1660, %v1679
  %v1684 = vmul.f32 %v1662, %v1680
  %v1685 = vmul.f32 %v1664, %v1681
  %v1686 = vmul.f32 %v1666, %v1682
  %1687 = vrot.lane.b32.xlu0 %v1240, 72
  %v1688 = vpop.permute.xlu0 %1687
  %1689 = vrot.lane.b32.xlu0 %v1245, 72
  %v1690 = vpop.permute.xlu0 %1689
  %v1694 = vsel %vm341, %v1683, 0
  %v1697 = vsel %vm341, %v1684, 0
  %v1700 = vsel %vm341, %v1685, 0
  %v1703 = vsel %vm341, %v1686, 0
  %1705 = vmatprep.subr.mxu0 0.0
  %1706 = vmatpush1.msra.mxu0 %v1688
  %1707 = vmatprep.subr.mxu0 0.0
  %1708 = vmatpush1.msra.mxu0 %v1690
  %1709 = vmatprep.subr.mxu0 0.0
  %1710 = vmatpush1.msra.mxu0 0.0
  %1711 = vmatprep.subr.mxu0 0.0
  %1712 = vmatpush1.msra.mxu0 0.0
  %1713 = vmatprep.subr.mxu0 0.0
  %1714 = vmatpush1.msra.mxu0 0.0
  %1715 = vmatprep.subr.mxu0 0.0
  %1716 = vmatpush1.msra.mxu0 0.0
  %1717 = vmatprep.subr.mxu0 0.0
  %1718 = vmatpush1.msra.mxu0 0.0
  %1719 = vmatprep.subr.mxu0 0.0
  %1720 = vmatpush1.msra.mxu0 0.0
  %1721 = vmatprep.subr.mxu0 0.0
  %1722 = vmatpush1.msra.mxu0 0.0
  %1723 = vmatprep.subr.mxu0 0.0
  %1724 = vmatpush1.msra.mxu0 0.0
  %1725 = vmatprep.subr.mxu0 0.0
  %1726 = vmatpush1.msra.mxu0 0.0
  %1727 = vmatprep.subr.mxu0 0.0
  %1728 = vmatpush1.msra.mxu0 0.0
  %1729 = vmatprep.subr.mxu0 0.0
  %1730 = vmatpush1.msra.mxu0 0.0
  %1731 = vmatprep.subr.mxu0 0.0
  %1732 = vmatpush1.msra.mxu0 0.0
  %1733 = vmatprep.subr.mxu0 0.0
  %1734 = vmatpush1.msra.mxu0 0.0
  %1735 = vmatprep.subr.mxu0 0.0
  %1736 = vmatpush1.msra.mxu0 0.0
  %1737 = vmatprep.subr.mxu0 0.0
  %1738 = vmatpush1.msra.mxu0 0.0
  %1739 = vmatprep.subr.mxu0 0.0
  %1740 = vmatpush1.msra.mxu0 0.0
  %1741 = vmatprep.subr.mxu0 0.0
  %1742 = vmatpush1.msra.mxu0 0.0
  %1743 = vmatprep.subr.mxu0 0.0
  %1744 = vmatpush1.msra.mxu0 0.0
  %1745 = vmatprep.subr.mxu0 0.0
  %1746 = vmatpush1.msra.mxu0 0.0
  %1747 = vmatprep.subr.mxu0 0.0
  %1748 = vmatpush1.msra.mxu0 0.0
  %1749 = vmatprep.subr.mxu0 0.0
  %1750 = vmatpush1.msra.mxu0 0.0
  %1751 = vmatprep.subr.mxu0 0.0
  %1752 = vmatpush1.msra.mxu0 0.0
  %1753 = vmatprep.subr.mxu0 0.0
  %1754 = vmatpush1.msra.mxu0 0.0
  %1755 = vmatprep.subr.mxu0 0.0
  %1756 = vmatpush1.msra.mxu0 0.0
  %1757 = vmatprep.subr.mxu0 0.0
  %1758 = vmatpush1.msra.mxu0 0.0
  %1759 = vmatprep.subr.mxu0 0.0
  %1760 = vmatpush1.msra.mxu0 0.0
  %1761 = vmatprep.subr.mxu0 0.0
  %1762 = vmatpush1.msra.mxu0 0.0
  %1763 = vmatprep.subr.mxu0 0.0
  %1764 = vmatpush1.msra.mxu0 0.0
  %1765 = vmatprep.subr.mxu0 0.0
  %1766 = vmatpush1.msra.mxu0 0.0
  %1767 = vmatprep.subr.mxu0 0.0
  %1768 = vmatpush1.msra.mxu0 0.0
  %1769 = vmatprep.mubr.f32.mxu0 0.0
  %1770 = vmatmul.mubr.f32.gmra.mrb[0].mxu0 %v1694
  %v1771 = vpop.f32.mrb[0].mxu0
  %v1772 = vadd.f32 0.0, %v1771
  %v1773 = vpop.f32.mrb[0].mxu0
  %1774 = vmatprep.mubr.f32.mxu0 0.0
  %1775 = vmatmul.mubr.f32.gmra.mrb[0].mxu0 %v1697
  %v1776 = vpop.f32.mrb[0].mxu0
  %v1777 = vadd.f32 0.0, %v1776
  %v1778 = vpop.f32.mrb[0].mxu0
  %1779 = vmatprep.mubr.f32.mxu0 0.0
  %1780 = vmatmul.mubr.f32.gmra.mrb[0].mxu0 %v1700
  %v1781 = vpop.f32.mrb[0].mxu0
  %v1782 = vadd.f32 0.0, %v1781
  %v1783 = vpop.f32.mrb[0].mxu0
  %1784 = vmatprep.mubr.f32.mxu0 0.0
  %1785 = vmatmul.mubr.f32.gmra.mrb[0].mxu0 %v1703
  %v1786 = vpop.f32.mrb[0].mxu0
  %v1787 = vadd.f32 0.0, %v1786
  %v1788 = vpop.f32.mrb[0].mxu0
  %1789 = vdwg.mxu0
  %1792 = vrot.lane.b32.xlu0 %v1526, 8
  %v1793 = vpop.permute.xlu0 %1792
  %1794 = vrot.lane.b32.xlu0 %v1531, 8
  %v1795 = vpop.permute.xlu0 %1794
  %1800 = vrot.lane.b32.xlu0 %v1772, 16
  %v1801 = vpop.permute.xlu0 %1800
  %1802 = vrot.lane.b32.xlu0 %v1777, 16
  %v1803 = vpop.permute.xlu0 %1802
  %1808 = vrot.lane.b32.xlu0 %v1782, 24
  %v1809 = vpop.permute.xlu0 %1808
  %1810 = vrot.lane.b32.xlu0 %v1787, 24
  %v1811 = vpop.permute.xlu0 %1810
  %v1814 = vsel %vm243, %v1516, %v1793
  %v1815 = vsel %vm243, %v1521, %v1795
  %v1816 = vsel %vm341, %v1814, %v1801
  %v1817 = vsel %vm341, %v1815, %v1803
  %v1818 = vsel %vm775, %v1816, %v1809
  %v1819 = vsel %vm775, %v1817, %v1811
  %s1820 = scalar_lea.vmem %s4, 32
  %v1821 = vld [vmem:[%s1820] sm:$0xff]
  %v1822 = vld [vmem:[%s1820 + $0x8] sm:$0xff]
  %v1823 = vld [vmem:[%s1820 + $0x10] sm:$0xff]
  %v1824 = vld [vmem:[%s1820 + $0x18] sm:$0xff]
  %v1826 = vsel %vm54, %v1818, 0
  %v1829 = vsel %vm54, %v1819, 0
  %1831 = vmatprep.subr.mxu0 0.0
  %1832 = vmatpush1.msra.mxu0 %v1821
  %1833 = vmatprep.subr.mxu0 0.0
  %1834 = vmatpush1.msra.mxu0 %v1822
  %1835 = vmatprep.subr.mxu0 0.0
  %1836 = vmatpush1.msra.mxu0 %v1823
  %1837 = vmatprep.subr.mxu0 0.0
  %1838 = vmatpush1.msra.mxu0 %v1824
  %1839 = vmatprep.subr.mxu0 0.0
  %1840 = vmatpush1.msra.mxu0 0.0
  %1841 = vmatprep.subr.mxu0 0.0
  %1842 = vmatpush1.msra.mxu0 0.0
  %1843 = vmatprep.subr.mxu0 0.0
  %1844 = vmatpush1.msra.mxu0 0.0
  %1845 = vmatprep.subr.mxu0 0.0
  %1846 = vmatpush1.msra.mxu0 0.0
  %1847 = vmatprep.subr.mxu0 0.0
  %1848 = vmatpush1.msra.mxu0 0.0
  %1849 = vmatprep.subr.mxu0 0.0
  %1850 = vmatpush1.msra.mxu0 0.0
  %1851 = vmatprep.subr.mxu0 0.0
  %1852 = vmatpush1.msra.mxu0 0.0
  %1853 = vmatprep.subr.mxu0 0.0
  %1854 = vmatpush1.msra.mxu0 0.0
  %1855 = vmatprep.subr.mxu0 0.0
  %1856 = vmatpush1.msra.mxu0 0.0
  %1857 = vmatprep.subr.mxu0 0.0
  %1858 = vmatpush1.msra.mxu0 0.0
  %1859 = vmatprep.subr.mxu0 0.0
  %1860 = vmatpush1.msra.mxu0 0.0
  %1861 = vmatprep.subr.mxu0 0.0
  %1862 = vmatpush1.msra.mxu0 0.0
  %1863 = vmatprep.subr.mxu0 0.0
  %1864 = vmatpush1.msra.mxu0 0.0
  %1865 = vmatprep.subr.mxu0 0.0
  %1866 = vmatpush1.msra.mxu0 0.0
  %1867 = vmatprep.subr.mxu0 0.0
  %1868 = vmatpush1.msra.mxu0 0.0
  %1869 = vmatprep.subr.mxu0 0.0
  %1870 = vmatpush1.msra.mxu0 0.0
  %1871 = vmatprep.subr.mxu0 0.0
  %1872 = vmatpush1.msra.mxu0 0.0
  %1873 = vmatprep.subr.mxu0 0.0
  %1874 = vmatpush1.msra.mxu0 0.0
  %1875 = vmatprep.subr.mxu0 0.0
  %1876 = vmatpush1.msra.mxu0 0.0
  %1877 = vmatprep.subr.mxu0 0.0
  %1878 = vmatpush1.msra.mxu0 0.0
  %1879 = vmatprep.subr.mxu0 0.0
  %1880 = vmatpush1.msra.mxu0 0.0
  %1881 = vmatprep.subr.mxu0 0.0
  %1882 = vmatpush1.msra.mxu0 0.0
  %1883 = vmatprep.subr.mxu0 0.0
  %1884 = vmatpush1.msra.mxu0 0.0
  %1885 = vmatprep.subr.mxu0 0.0
  %1886 = vmatpush1.msra.mxu0 0.0
  %1887 = vmatprep.subr.mxu0 0.0
  %1888 = vmatpush1.msra.mxu0 0.0
  %1889 = vmatprep.subr.mxu0 0.0
  %1890 = vmatpush1.msra.mxu0 0.0
  %1891 = vmatprep.subr.mxu0 0.0
  %1892 = vmatpush1.msra.mxu0 0.0
  %1893 = vmatprep.subr.mxu0 0.0
  %1894 = vmatpush1.msra.mxu0 0.0
  %1895 = vmatprep.mubr.f32.mxu0 0.0
  %1896 = vmatmul.mubr.f32.gmra.mrb[0].mxu0 %v1826
  %v1897 = vpop.f32.mrb[0].mxu0
  %v1898 = vadd.f32 0.0, %v1897
  %v1899 = vpop.f32.mrb[0].mxu0
  %1900 = vmatprep.mubr.f32.mxu0 0.0
  %1901 = vmatmul.mubr.f32.gmra.mrb[0].mxu0 %v1829
  %v1902 = vpop.f32.mrb[0].mxu0
  %v1903 = vadd.f32 0.0, %v1902
  %v1904 = vpop.f32.mrb[0].mxu0
  %1905 = vdwg.mxu0
  %v1906 = vadd.f32 %v1116, %v1898
  %v1907 = vadd.f32 %v1117, %v1903
  %v1908 = vlaneseq
  %v1909 = vshrl.u32 %v1908, 7
  %v1910 = vsub.s32 1, %v1909
  %v1911 = vrot.slane %v1119, %v1910
  %v1912 = vadd.f32 %v1906, %v1911
  %v1913 = vadd.f32 %v1907, %v1911
  %v1914 = vsel %vm54, %v1912, 0.0
  %1915 = vadd.xlane.f32.xlu0 %v1914
  %v1916 = vpop.xlane.xlu0 %1915
  %v1917 = vsel %vm54, %v1913, 0.0
  %1918 = vadd.xlane.f32.xlu0 %v1917
  %v1919 = vpop.xlane.xlu0 %1918
  %v1920 = vmul.f32 %v1916, %v61
  %v1921 = vmul.f32 %v1919, %v61
  %v1922 = vsub.f32 %v1912, %v1920
  %v1923 = vsub.f32 %v1913, %v1921
  %v1924 = vmul.f32 %v1922, %v1922
  %v1925 = vmul.f32 %v1923, %v1923
  %v1926 = vsel %vm54, %v1924, 0.0
  %1927 = vadd.xlane.f32.xlu0 %v1926
  %v1928 = vpop.xlane.xlu0 %1927
  %v1929 = vsel %vm54, %v1925, 0.0
  %1930 = vadd.xlane.f32.xlu0 %v1929
  %v1931 = vpop.xlane.xlu0 %1930
  %v1932 = vmul.f32 %v1928, %v61
  %v1933 = vmul.f32 %v1931, %v61
  %v1934 = vadd.f32 %v1932, 1e-05
  %v1935 = vadd.f32 %v1933, 1e-05
  %v1936 = vrsqrt.pop %v1934
  %v1937 = vrsqrt.pop %v1935
  %v1938 = vmul.f32 %v1922, %v1936
  %v1939 = vmul.f32 %v1923, %v1937
  %v1940 = vlaneseq
  %v1941 = vshrl.u32 %v1940, 7
  %v1942 = vsub.s32 4, %v1941
  %v1943 = vrot.slane %v1119, %v1942
  %v1944 = vmul.f32 %v1938, %v1943
  %v1945 = vmul.f32 %v1939, %v1943
  %v1946 = vlaneseq
  %v1947 = vshrl.u32 %v1946, 7
  %v1948 = vsub.s32 5, %v1947
  %v1949 = vrot.slane %v1119, %v1948
  %v1950 = vadd.f32 %v1944, %v1949
  %v1951 = vadd.f32 %v1945, %v1949
  %s1952 = scalar_lea.vmem %s5, 32
  %v1953 = vld [vmem:[%s1952] sm:$0xff]
  %v1954 = vld [vmem:[%s1952 + $0x8] sm:$0xff]
  %v1955 = vld [vmem:[%s1952 + $0x10] sm:$0xff]
  %v1956 = vld [vmem:[%s1952 + $0x18] sm:$0xff]
  %v1957 = vlaneseq
  %v1958 = vshrl.u32 %v1957, 7
  %v1959 = vsub.s32 6, %v1958
  %v1960 = vrot.slane %v1119, %v1959
  %v1962 = vsel %vm54, %v1950, 0
  %v1965 = vsel %vm54, %v1951, 0
  %1967 = vmatprep.subr.mxu0 0.0
  %1968 = vmatpush1.msra.mxu0 %v1953
  %1969 = vmatprep.subr.mxu0 0.0
  %1970 = vmatpush1.msra.mxu0 %v1954
  %1971 = vmatprep.subr.mxu0 0.0
  %1972 = vmatpush1.msra.mxu0 %v1955
  %1973 = vmatprep.subr.mxu0 0.0
  %1974 = vmatpush1.msra.mxu0 %v1956
  %1975 = vmatprep.subr.mxu0 0.0
  %1976 = vmatpush1.msra.mxu0 0.0
  %1977 = vmatprep.subr.mxu0 0.0
  %1978 = vmatpush1.msra.mxu0 0.0
  %1979 = vmatprep.subr.mxu0 0.0
  %1980 = vmatpush1.msra.mxu0 0.0
  %1981 = vmatprep.subr.mxu0 0.0
  %1982 = vmatpush1.msra.mxu0 0.0
  %1983 = vmatprep.subr.mxu0 0.0
  %1984 = vmatpush1.msra.mxu0 0.0
  %1985 = vmatprep.subr.mxu0 0.0
  %1986 = vmatpush1.msra.mxu0 0.0
  %1987 = vmatprep.subr.mxu0 0.0
  %1988 = vmatpush1.msra.mxu0 0.0
  %1989 = vmatprep.subr.mxu0 0.0
  %1990 = vmatpush1.msra.mxu0 0.0
  %1991 = vmatprep.subr.mxu0 0.0
  %1992 = vmatpush1.msra.mxu0 0.0
  %1993 = vmatprep.subr.mxu0 0.0
  %1994 = vmatpush1.msra.mxu0 0.0
  %1995 = vmatprep.subr.mxu0 0.0
  %1996 = vmatpush1.msra.mxu0 0.0
  %1997 = vmatprep.subr.mxu0 0.0
  %1998 = vmatpush1.msra.mxu0 0.0
  %1999 = vmatprep.subr.mxu0 0.0
  %2000 = vmatpush1.msra.mxu0 0.0
  %2001 = vmatprep.subr.mxu0 0.0
  %2002 = vmatpush1.msra.mxu0 0.0
  %2003 = vmatprep.subr.mxu0 0.0
  %2004 = vmatpush1.msra.mxu0 0.0
  %2005 = vmatprep.subr.mxu0 0.0
  %2006 = vmatpush1.msra.mxu0 0.0
  %2007 = vmatprep.subr.mxu0 0.0
  %2008 = vmatpush1.msra.mxu0 0.0
  %2009 = vmatprep.subr.mxu0 0.0
  %2010 = vmatpush1.msra.mxu0 0.0
  %2011 = vmatprep.subr.mxu0 0.0
  %2012 = vmatpush1.msra.mxu0 0.0
  %2013 = vmatprep.subr.mxu0 0.0
  %2014 = vmatpush1.msra.mxu0 0.0
  %2015 = vmatprep.subr.mxu0 0.0
  %2016 = vmatpush1.msra.mxu0 0.0
  %2017 = vmatprep.subr.mxu0 0.0
  %2018 = vmatpush1.msra.mxu0 0.0
  %2019 = vmatprep.subr.mxu0 0.0
  %2020 = vmatpush1.msra.mxu0 0.0
  %2021 = vmatprep.subr.mxu0 0.0
  %2022 = vmatpush1.msra.mxu0 0.0
  %2023 = vmatprep.subr.mxu0 0.0
  %2024 = vmatpush1.msra.mxu0 0.0
  %2025 = vmatprep.subr.mxu0 0.0
  %2026 = vmatpush1.msra.mxu0 0.0
  %2027 = vmatprep.subr.mxu0 0.0
  %2028 = vmatpush1.msra.mxu0 0.0
  %2029 = vmatprep.subr.mxu0 0.0
  %2030 = vmatpush1.msra.mxu0 0.0
  %2031 = vmatprep.mubr.f32.mxu0 0.0
  %2032 = vmatmul.mubr.f32.gmra.mrb[0].mxu0 %v1962
  %v2033 = vpop.f32.mrb[0].mxu0
  %v2034 = vadd.f32 %v1960, %v2033
  %v2035 = vpop.f32.mrb[0].mxu0
  %2036 = vmatprep.mubr.f32.mxu0 0.0
  %2037 = vmatmul.mubr.f32.gmra.mrb[0].mxu0 %v1965
  %v2038 = vpop.f32.mrb[0].mxu0
  %v2039 = vadd.f32 %v1960, %v2038
  %v2040 = vpop.f32.mrb[0].mxu0
  %2041 = vdwg.mxu0
  %v2042 = vmul.f32 %v2034, %v2034
  %v2043 = vmul.f32 %v2039, %v2039
  %v2044 = vmul.f32 %v2034, %v2042
  %v2045 = vmul.f32 %v2039, %v2043
  %v2046 = vmul.f32 %v2044, 0.044715
  %v2047 = vmul.f32 %v2045, 0.044715
  %v2048 = vadd.f32 %v2034, %v2046
  %v2049 = vadd.f32 %v2039, %v2047
  %v2050 = vmul.f32 %v2048, 0.7978846
  %v2051 = vmul.f32 %v2049, 0.7978846
  %v2052 = vtanh.pop %v2050
  %v2053 = vtanh.pop %v2051
  %v2054 = vadd.f32 %v2052, 1.0
  %v2055 = vadd.f32 %v2053, 1.0
  %v2056 = vmul.f32 %v2054, 0.5
  %v2057 = vmul.f32 %v2055, 0.5
  %v2058 = vmul.f32 %v2034, %v2056
  %v2059 = vmul.f32 %v2039, %v2057
  %s2060 = scalar_lea.vmem %s6, 96
  %v2061 = vld [vmem:[%s2060] sm:$0xff]
  %v2062 = vld [vmem:[%s2060 + $0x8] sm:$0xff]
  %v2063 = vld [vmem:[%s2060 + $0x10] sm:$0xff]
  %v2064 = vld [vmem:[%s2060 + $0x18] sm:$0xff]
  %v2065 = vld [vmem:[%s2060 + $0x20] sm:$0xff]
  %v2066 = vld [vmem:[%s2060 + $0x28] sm:$0xff]
  %v2067 = vld [vmem:[%s2060 + $0x30] sm:$0xff]
  %v2068 = vld [vmem:[%s2060 + $0x38] sm:$0xff]
  %v2069 = vld [vmem:[%s2060 + $0x40] sm:$0xff]
  %v2070 = vld [vmem:[%s2060 + $0x48] sm:$0xff]
  %v2071 = vld [vmem:[%s2060 + $0x50] sm:$0xff]
  %v2072 = vld [vmem:[%s2060 + $0x58] sm:$0xff]
  %v2074 = vsel %vm1028, %v2058, 0
  %v2077 = vsel %vm1028, %v2059, 0
  %2079 = vmatprep.subr.mxu0 0.0
  %2080 = vmatpush1.msra.mxu0 %v2061
  %2081 = vmatprep.subr.mxu0 0.0
  %2082 = vmatpush1.msra.mxu0 %v2062
  %2083 = vmatprep.subr.mxu0 0.0
  %2084 = vmatpush1.msra.mxu0 %v2063
  %2085 = vmatprep.subr.mxu0 0.0
  %2086 = vmatpush1.msra.mxu0 %v2064
  %2087 = vmatprep.subr.mxu0 0.0
  %2088 = vmatpush1.msra.mxu0 %v2065
  %2089 = vmatprep.subr.mxu0 0.0
  %2090 = vmatpush1.msra.mxu0 %v2066
  %2091 = vmatprep.subr.mxu0 0.0
  %2092 = vmatpush1.msra.mxu0 %v2067
  %2093 = vmatprep.subr.mxu0 0.0
  %2094 = vmatpush1.msra.mxu0 %v2068
  %2095 = vmatprep.subr.mxu0 0.0
  %2096 = vmatpush1.msra.mxu0 %v2069
  %2097 = vmatprep.subr.mxu0 0.0
  %2098 = vmatpush1.msra.mxu0 %v2070
  %2099 = vmatprep.subr.mxu0 0.0
  %2100 = vmatpush1.msra.mxu0 %v2071
  %2101 = vmatprep.subr.mxu0 0.0
  %2102 = vmatpush1.msra.mxu0 %v2072
  %2103 = vmatprep.subr.mxu0 0.0
  %2104 = vmatpush1.msra.mxu0 0.0
  %2105 = vmatprep.subr.mxu0 0.0
  %2106 = vmatpush1.msra.mxu0 0.0
  %2107 = vmatprep.subr.mxu0 0.0
  %2108 = vmatpush1.msra.mxu0 0.0
  %2109 = vmatprep.subr.mxu0 0.0
  %2110 = vmatpush1.msra.mxu0 0.0
  %2111 = vmatprep.subr.mxu0 0.0
  %2112 = vmatpush1.msra.mxu0 0.0
  %2113 = vmatprep.subr.mxu0 0.0
  %2114 = vmatpush1.msra.mxu0 0.0
  %2115 = vmatprep.subr.mxu0 0.0
  %2116 = vmatpush1.msra.mxu0 0.0
  %2117 = vmatprep.subr.mxu0 0.0
  %2118 = vmatpush1.msra.mxu0 0.0
  %2119 = vmatprep.subr.mxu0 0.0
  %2120 = vmatpush1.msra.mxu0 0.0
  %2121 = vmatprep.subr.mxu0 0.0
  %2122 = vmatpush1.msra.mxu0 0.0
  %2123 = vmatprep.subr.mxu0 0.0
  %2124 = vmatpush1.msra.mxu0 0.0
  %2125 = vmatprep.subr.mxu0 0.0
  %2126 = vmatpush1.msra.mxu0 0.0
  %2127 = vmatprep.subr.mxu0 0.0
  %2128 = vmatpush1.msra.mxu0 0.0
  %2129 = vmatprep.subr.mxu0 0.0
  %2130 = vmatpush1.msra.mxu0 0.0
  %2131 = vmatprep.subr.mxu0 0.0
  %2132 = vmatpush1.msra.mxu0 0.0
  %2133 = vmatprep.subr.mxu0 0.0
  %2134 = vmatpush1.msra.mxu0 0.0
  %2135 = vmatprep.subr.mxu0 0.0
  %2136 = vmatpush1.msra.mxu0 0.0
  %2137 = vmatprep.subr.mxu0 0.0
  %2138 = vmatpush1.msra.mxu0 0.0
  %2139 = vmatprep.subr.mxu0 0.0
  %2140 = vmatpush1.msra.mxu0 0.0
  %2141 = vmatprep.subr.mxu0 0.0
  %2142 = vmatpush1.msra.mxu0 0.0
  %2143 = vmatprep.mubr.f32.mxu0 0.0
  %2144 = vmatmul.mubr.f32.gmra.mrb[0].mxu0 %v2074
  %v2145 = vpop.f32.mrb[0].mxu0
  %v2146 = vadd.f32 0.0, %v2145
  %v2147 = vpop.f32.mrb[0].mxu0
  %2148 = vmatprep.mubr.f32.mxu0 0.0
  %2149 = vmatmul.mubr.f32.gmra.mrb[0].mxu0 %v2077
  %v2150 = vpop.f32.mrb[0].mxu0
  %v2151 = vadd.f32 0.0, %v2150
  %v2152 = vpop.f32.mrb[0].mxu0
  %2153 = vdwg.mxu0
  %v2154 = vadd.f32 %v1912, %v2146
  %v2155 = vadd.f32 %v1913, %v2151
  %v2156 = vlaneseq
  %v2157 = vshrl.u32 %v2156, 7
  %v2158 = vsub.s32 7, %v2157
  %v2159 = vrot.slane %v1119, %v2158
  %v2160 = vadd.f32 %v2154, %v2159
  %v2161 = vadd.f32 %v2155, %v2159
  %v2162 = vld [vmem:[%s1] sm:$0x3]
  %v2164 = vsel %vm341, %v2162, 0
  %2166 = vmatprep.subr.mxu0 0.0
  %2167 = vmatpush1.msra.mxu0 %v2160
  %2168 = vmatprep.subr.mxu0 0.0
  %2169 = vmatpush1.msra.mxu0 %v2161
  %2170 = vmatprep.subr.mxu0 0.0
  %2171 = vmatpush1.msra.mxu0 0.0
  %2172 = vmatprep.subr.mxu0 0.0
  %2173 = vmatpush1.msra.mxu0 0.0
  %2174 = vmatprep.subr.mxu0 0.0
  %2175 = vmatpush1.msra.mxu0 0.0
  %2176 = vmatprep.subr.mxu0 0.0
  %2177 = vmatpush1.msra.mxu0 0.0
  %2178 = vmatprep.subr.mxu0 0.0
  %2179 = vmatpush1.msra.mxu0 0.0
  %2180 = vmatprep.subr.mxu0 0.0
  %2181 = vmatpush1.msra.mxu0 0.0
  %2182 = vmatprep.subr.mxu0 0.0
  %2183 = vmatpush1.msra.mxu0 0.0
  %2184 = vmatprep.subr.mxu0 0.0
  %2185 = vmatpush1.msra.mxu0 0.0
  %2186 = vmatprep.subr.mxu0 0.0
  %2187 = vmatpush1.msra.mxu0 0.0
  %2188 = vmatprep.subr.mxu0 0.0
  %2189 = vmatpush1.msra.mxu0 0.0
  %2190 = vmatprep.subr.mxu0 0.0
  %2191 = vmatpush1.msra.mxu0 0.0
  %2192 = vmatprep.subr.mxu0 0.0
  %2193 = vmatpush1.msra.mxu0 0.0
  %2194 = vmatprep.subr.mxu0 0.0
  %2195 = vmatpush1.msra.mxu0 0.0
  %2196 = vmatprep.subr.mxu0 0.0
  %2197 = vmatpush1.msra.mxu0 0.0
  %2198 = vmatprep.subr.mxu0 0.0
  %2199 = vmatpush1.msra.mxu0 0.0
  %2200 = vmatprep.subr.mxu0 0.0
  %2201 = vmatpush1.msra.mxu0 0.0
  %2202 = vmatprep.subr.mxu0 0.0
  %2203 = vmatpush1.msra.mxu0 0.0
  %2204 = vmatprep.subr.mxu0 0.0
  %2205 = vmatpush1.msra.mxu0 0.0
  %2206 = vmatprep.subr.mxu0 0.0
  %2207 = vmatpush1.msra.mxu0 0.0
  %2208 = vmatprep.subr.mxu0 0.0
  %2209 = vmatpush1.msra.mxu0 0.0
  %2210 = vmatprep.subr.mxu0 0.0
  %2211 = vmatpush1.msra.mxu0 0.0
  %2212 = vmatprep.subr.mxu0 0.0
  %2213 = vmatpush1.msra.mxu0 0.0
  %2214 = vmatprep.subr.mxu0 0.0
  %2215 = vmatpush1.msra.mxu0 0.0
  %2216 = vmatprep.subr.mxu0 0.0
  %2217 = vmatpush1.msra.mxu0 0.0
  %2218 = vmatprep.subr.mxu0 0.0
  %2219 = vmatpush1.msra.mxu0 0.0
  %2220 = vmatprep.subr.mxu0 0.0
  %2221 = vmatpush1.msra.mxu0 0.0
  %2222 = vmatprep.subr.mxu0 0.0
  %2223 = vmatpush1.msra.mxu0 0.0
  %2224 = vmatprep.subr.mxu0 0.0
  %2225 = vmatpush1.msra.mxu0 0.0
  %2226 = vmatprep.subr.mxu0 0.0
  %2227 = vmatpush1.msra.mxu0 0.0
  %2228 = vmatprep.subr.mxu0 0.0
  %2229 = vmatpush1.msra.mxu0 0.0
  %2230 = vmatprep.mubr.f32.mxu0 0.0
  %2231 = vmatmul.mubr.f32.gmra.mrb[0].mxu0 %v2164
  %v2232 = vpop.f32.mrb[0].mxu0
  %v2233 = vadd.f32 0.0, %v2232
  %v2234 = vpop.f32.mrb[0].mxu0
  %2235 = vdwg.mxu0
  %vm2236 = vcmask 254976
  %2237 = vst.msk [vmem:[%s8] sm:$0x3] %vm2236, %v2233
  // Predicated region
  $region34: #{darvish_forward.1} parent=0 // pred_check
    _
  $region35: #{darvish_forward.1} parent=0 // pred_check_branch
    %2239 = sbr.rel (0) target = $region37
  $region36: #{darvish_forward.1} parent=0 // pred_region
    _
  $region37: #{darvish_forward.1} parent=0 // pred_fallthru
    _
  // Predicated region
  $region38: #{darvish_forward.1} parent=0 // pred_check
    _
  $region39: #{darvish_forward.1} parent=0 // pred_check_branch
    %2241 = sbr.rel (0) target = $region41
  $region40: #{darvish_forward.1} parent=0 // pred_region
    _
  $region41: #{darvish_forward.1} parent=0 // pred_fallthru
    _

</llo_original>
